<compile_context>
chip_gen: v6e
topology: v6e:2x2x1
jax: 0.10.0
libtpu: 0.0.40
codegen_flags: <defaults>
</compile_context>

<pallas_src>
import functools

import jax
import jax.numpy as jnp
from jax import lax
from jax.experimental import pallas as pl
from jax.experimental.pallas import tpu as pltpu


# ----------------------------- Pallas kernel (num_layers = 2) -----------------------------
def encoding_kernel(char_ref, part_ref, mask_ref,
                    wcf_ref, wpf_ref, b0_ref,
                    whh0T_ref, wih1T_ref, whh1T_ref, b1_ref,
                    w2T_ref, b2_ref,
                    out_ref,
                    g0_ref, h1s_ref,
                    *, batch: int):
    """Single-invocation kernel; whole (tiny) problem resident in VMEM.

    char_ref  : (T*Bp, Cc) f32      part_ref : (T*Bp, Cp) f32
    mask_ref  : (T*Bp, 1)  f32      1.0 where t < lengths[b], else 0.0
    wcf/wpf   : (Cc,4H)/(Cp,4H)     fused (linear_char / linear_part -> layer-0 ih)
    b0_ref    : (1, 4H)             fused layer-0 bias
    whh0T/wih1T/whh1T : (H, 4H)     b1_ref: (1, 4H)
    w2T_ref   : (H, Op)             b2_ref: (1, Op)   (Op = O padded to 128 lanes)
    out_ref   : (T*Bp, Op)
    g0_ref    : (T*Bp, 4H) scratch  layer-0 input gate pre-activations
    h1s_ref   : (T*Bp, H)  scratch  layer-1 hidden states for all timesteps
    """
    H = whh0T_ref.shape[0]
    TB = out_ref.shape[0]
    Bp = batch
    T = TB // Bp

    # ---- Phase 1: all non-recurrent input math for every timestep at once. ----
    g0_ref[...] = (
        jnp.dot(char_ref[...], wcf_ref[...], preferred_element_type=jnp.float32)
        + jnp.dot(part_ref[...], wpf_ref[...], preferred_element_type=jnp.float32)
        + b0_ref[...])

    # Load recurrent weights into vregs once (hoisted out of the time loop).
    whh0T = whh0T_ref[...]
    wih1T = wih1T_ref[...]
    whh1T = whh1T_ref[...]
    b1 = b1_ref[...]

    def lstm_cell(gates, c_prev):
        # PyTorch gate order: i, f, g, o ; gates is a full (Bp, 4H=128) tile.
        i = jax.nn.sigmoid(gates[:, 0 * H:1 * H])
        f = jax.nn.sigmoid(gates[:, 1 * H:2 * H])
        g = jnp.tanh(gates[:, 2 * H:3 * H])
        o = jax.nn.sigmoid(gates[:, 3 * H:4 * H])
        c = f * c_prev + i * g
        h = o * jnp.tanh(c)
        return h, c

    # ---- Phase 2: sequential recurrence; only h@Whh-style matmuls remain. ----
    def step(t, carry):
        h0, c0, h1, c1 = carry
        row = pl.multiple_of(t * Bp, Bp)           # sublane-aligned slice start
        gates0 = g0_ref[pl.ds(row, Bp), :] + jnp.dot(
            h0, whh0T, preferred_element_type=jnp.float32)
        h0, c0 = lstm_cell(gates0, c0)
        gates1 = (jnp.dot(h0, wih1T, preferred_element_type=jnp.float32)
                  + jnp.dot(h1, whh1T, preferred_element_type=jnp.float32)
                  + b1)
        h1, c1 = lstm_cell(gates1, c1)
        h1s_ref[pl.ds(row, Bp), :] = h1
        return h0, c0, h1, c1

    z = jnp.zeros((Bp, H), jnp.float32)
    lax.fori_loop(0, T, step, (z, z, z, z), unroll=True)

    # ---- Phase 3: one output projection over all timesteps + length masking. ----
    out = jnp.dot(h1s_ref[...], w2T_ref[...],
                  preferred_element_type=jnp.float32) + b2_ref[...]
    out_ref[...] = out * mask_ref[...]             # mask precomputed in wrapper


# ----------------------------- wrapper -----------------------------
@jax.jit
def encoding_forward(character, participant, lengths, params):
    """character: (T, B, Cc) f32, participant: (T, B, Cp) f32, lengths: (B,) int."""
    T, B, Cc = character.shape
    _, _, Cp = participant.shape
    H = params["whh0"].shape[1]
    O = params["w2"].shape[0]

    # Pad batch to full 8-sublane vreg occupancy; padded rows have length 0.
    Bp = max(8, ((B + 7) // 8) * 8)
    pad_b = Bp - B
    # Pad output feature dim to 128 lanes so the final store is unmasked / lane-dense.
    Op = max(128, ((O + 127) // 128) * 128)

    char_p = jnp.pad(character.astype(jnp.float32), ((0, 0), (0, pad_b), (0, 0)))
    part_p = jnp.pad(participant.astype(jnp.float32), ((0, 0), (0, pad_b), (0, 0)))
    len_p = jnp.pad(lengths.astype(jnp.int32), (0, pad_b))

    # Flatten time x batch so non-recurrent matmuls run over T*Bp rows.
    char_flat = char_p.reshape(T * Bp, Cc)
    part_flat = part_p.reshape(T * Bp, Cp)

    # Valid-step mask per flattened row (computed here so the kernel only multiplies).
    mask = (jnp.arange(T, dtype=jnp.int32)[:, None] < len_p[None, :]).astype(jnp.float32)
    mask_rows = mask.reshape(T * Bp, 1)

    # Fold linear_character / linear_participant / concat into layer-0 ih weights
    # (exact reassociation):
    #   x @ wih0.T = char@(wc.T @ wih0.T[:H]) + part@(wp.T @ wih0.T[H:])
    #                + bc @ wih0.T[:H] + bp @ wih0.T[H:]
    wih0T = params["wih0"].T                                     # (H+E, 4H)
    wih0T_c, wih0T_p = wih0T[:H], wih0T[H:]
    wc_fused = params["wc"].T @ wih0T_c                          # (Cc, 4H)
    wp_fused = params["wp"].T @ wih0T_p                          # (Cp, 4H)
    b0_fused = (params["bc"] @ wih0T_c + params["bp"] @ wih0T_p
                + params["bih0"] + params["bhh0"])[None, :]      # (1, 4H)

    whh0T = params["whh0"].T                                     # (H, 4H)
    wih1T = params["wih1"].T                                     # (H, 4H)
    whh1T = params["whh1"].T                                     # (H, 4H)
    b1_fused = (params["bih1"] + params["bhh1"])[None, :]        # (1, 4H)

    w2T = jnp.zeros((H, Op), jnp.float32).at[:, :O].set(params["w2"].T)   # (H, Op)
    b2 = jnp.zeros((1, Op), jnp.float32).at[:, :O].set(params["b2"][None, :])

    # Note: all operands stay f32 (tiny dims; bf16 MXU casts only pay off at scale).
    out_flat = pl.pallas_call(
        functools.partial(encoding_kernel, batch=Bp),
        out_shape=jax.ShapeDtypeStruct((T * Bp, Op), jnp.float32),
        scratch_shapes=[
            pltpu.VMEM((T * Bp, 4 * H), jnp.float32),   # layer-0 gate pre-activations
            pltpu.VMEM((T * Bp, H), jnp.float32),       # layer-1 hidden states (all t)
        ],
    )(char_flat, part_flat, mask_rows,
      wc_fused, wp_fused, b0_fused,
      whh0T, wih1T, whh1T, b1_fused,
      w2T, b2)

    # pad_packed_sequence returns max(lengths) steps; here max(lengths) == T in the
    # example, so the full (T, B, O) slab (zero-padded past lengths) matches PyTorch.
    out = out_flat.reshape(T, Bp, Op)[:, :B, :O]
    return out


# ----------------------------- pure-JAX reference -----------------------------
def encoding_reference(character, participant, lengths, params):
    x1 = character @ params["wc"].T + params["bc"]
    x2 = participant @ params["wp"].T + params["bp"]
    x = jnp.concatenate([x1, x2], axis=-1)
    T, B, _ = x.shape
    H = params["whh0"].shape[1]

    def run_layer(inp, wih, whh, bih, bhh):
        def step(carry, xt):
            h, c = carry
            gates = xt @ wih.T + h @ whh.T + bih + bhh
            i = jax.nn.sigmoid(gates[:, 0 * H:1 * H])
            f = jax.nn.sigmoid(gates[:, 1 * H:2 * H])
            g = jnp.tanh(gates[:, 2 * H:3 * H])
            o = jax.nn.sigmoid(gates[:, 3 * H:4 * H])
            c = f * c + i * g
            h = o * jnp.tanh(c)
            return (h, c), h
        init = (jnp.zeros((B, H), jnp.float32), jnp.zeros((B, H), jnp.float32))
        _, hs = lax.scan(step, init, inp)
        return hs

    x = run_layer(x, params["wih0"], params["whh0"], params["bih0"], params["bhh0"])
    x = run_layer(x, params["wih1"], params["whh1"], params["bih1"], params["bhh1"])
    out = x @ params["w2"].T + params["b2"]
    mask = (jnp.arange(T)[:, None] < lengths[None, :])[:, :, None]
    return jnp.where(mask, out, 0.0)


# ----------------------------- main -----------------------------
if __name__ == "__main__":
    # Module hyperparameters (small, consistent with __init__; num_layers fixed to 2).
    character_size, participant_size = 12, 10
    embedding_size, hidden_size = 16, 32
    num_layers, output_size = 2, 8
    T, B = 8, 4

    key = jax.random.PRNGKey(0)
    ks = jax.random.split(key, 16)
    s = 0.1
    H, E = hidden_size, embedding_size
    params = {
        "wc":  s * jax.random.normal(ks[0], (H, character_size), jnp.float32),
        "bc":  s * jax.random.normal(ks[1], (H,), jnp.float32),
        "wp":  s * jax.random.normal(ks[2], (E, participant_size), jnp.float32),
        "bp":  s * jax.random.normal(ks[3], (E,), jnp.float32),
        "wih0": s * jax.random.normal(ks[4], (4 * H, H + E), jnp.float32),
        "whh0": s * jax.random.normal(ks[5], (4 * H, H), jnp.float32),
        "bih0": s * jax.random.normal(ks[6], (4 * H,), jnp.float32),
        "bhh0": s * jax.random.normal(ks[7], (4 * H,), jnp.float32),
        "wih1": s * jax.random.normal(ks[8], (4 * H, H), jnp.float32),
        "whh1": s * jax.random.normal(ks[9], (4 * H, H), jnp.float32),
        "bih1": s * jax.random.normal(ks[10], (4 * H,), jnp.float32),
        "bhh1": s * jax.random.normal(ks[11], (4 * H,), jnp.float32),
        "w2":  s * jax.random.normal(ks[12], (output_size, H), jnp.float32),
        "b2":  s * jax.random.normal(ks[13], (output_size,), jnp.float32),
    }

    character = jax.random.normal(ks[14], (T, B, character_size), jnp.float32)
    participant = jax.random.normal(ks[15], (T, B, participant_size), jnp.float32)
    lengths = jnp.array([8, 6, 4, 2], dtype=jnp.int32)  # max == T, so full T is returned

    out = encoding_forward(character, participant, lengths, params)
    out = jax.block_until_ready(out)

    ref = encoding_reference(character, participant, lengths, params)
    assert out.shape == ref.shape, (out.shape, ref.shape)
    err = float(jnp.max(jnp.abs(out - ref)))
    assert err < 2e-5, err

    # TODO(synk): set_infer / dropout only affect training (requires_grad / inter-layer
    # dropout); they have no effect on this eval forward pass.
    print("KERNEL_OK")
</pallas_src>

<mosaic_0001>
module attributes {stable_mosaic.version = 11 : i64} {
  func.func @encoding_kernel(%arg0: memref<64x12xf32, #tpu.memory_space<vmem>>, %arg1: memref<64x10xf32, #tpu.memory_space<vmem>>, %arg2: memref<64x1xf32, #tpu.memory_space<vmem>>, %arg3: memref<12x128xf32, #tpu.memory_space<vmem>>, %arg4: memref<10x128xf32, #tpu.memory_space<vmem>>, %arg5: memref<1x128xf32, #tpu.memory_space<vmem>>, %arg6: memref<32x128xf32, #tpu.memory_space<vmem>>, %arg7: memref<32x128xf32, #tpu.memory_space<vmem>>, %arg8: memref<32x128xf32, #tpu.memory_space<vmem>>, %arg9: memref<1x128xf32, #tpu.memory_space<vmem>>, %arg10: memref<32x128xf32, #tpu.memory_space<vmem>>, %arg11: memref<1x128xf32, #tpu.memory_space<vmem>>, %arg12: memref<64x128xf32, #tpu.memory_space<vmem>>, %arg13: memref<64x128xf32, #tpu.memory_space<vmem>>, %arg14: memref<64x32xf32, #tpu.memory_space<vmem>>) attributes {dimension_semantics = [], scalar_prefetch = 0 : i64, scratch_operands = 2 : i64, tpu.core_type = #tpu.core_type<tc>} {
    %c0 = arith.constant 0 : index
    %c0_0 = arith.constant 0 : index
    %0 = vector.load %arg0[%c0, %c0_0] : memref<64x12xf32, #tpu.memory_space<vmem>>, vector<64x12xf32>
    %c0_1 = arith.constant 0 : index
    %c0_2 = arith.constant 0 : index
    %1 = vector.load %arg3[%c0_1, %c0_2] : memref<12x128xf32, #tpu.memory_space<vmem>>, vector<12x128xf32>
    %cst = arith.constant dense<0.000000e+00> : vector<64x128xf32>
    %2 = tpu.matmul %0, %1, %cst {dimension_numbers = #tpu.dot_dimension_numbers<[1], [0], [0], [1], [0, 0, 1, 1], [], []>} : vector<64x12xf32>, vector<12x128xf32>, vector<64x128xf32> -> vector<64x128xf32>
    %c0_3 = arith.constant 0 : index
    %c0_4 = arith.constant 0 : index
    %3 = vector.load %arg1[%c0_3, %c0_4] : memref<64x10xf32, #tpu.memory_space<vmem>>, vector<64x10xf32>
    %c0_5 = arith.constant 0 : index
    %c0_6 = arith.constant 0 : index
    %4 = vector.load %arg4[%c0_5, %c0_6] : memref<10x128xf32, #tpu.memory_space<vmem>>, vector<10x128xf32>
    %cst_7 = arith.constant dense<0.000000e+00> : vector<64x128xf32>
    %5 = tpu.matmul %3, %4, %cst_7 {dimension_numbers = #tpu.dot_dimension_numbers<[1], [0], [0], [1], [0, 0, 1, 1], [], []>} : vector<64x10xf32>, vector<10x128xf32>, vector<64x128xf32> -> vector<64x128xf32>
    %6 = arith.addf %2, %5 : vector<64x128xf32>
    %c0_8 = arith.constant 0 : index
    %c0_9 = arith.constant 0 : index
    %7 = vector.load %arg5[%c0_8, %c0_9] : memref<1x128xf32, #tpu.memory_space<vmem>>, vector<1x128xf32>
    %8 = vector.broadcast %7 : vector<1x128xf32> to vector<64x128xf32>
    %9 = arith.addf %6, %8 : vector<64x128xf32>
    %c0_10 = arith.constant 0 : index
    %c0_11 = arith.constant 0 : index
    %10 = vector.load %arg13[%c0_10, %c0_11] : memref<64x128xf32, #tpu.memory_space<vmem>>, vector<64x128xf32>
    tpu.vector_store %arg13[%c0_10, %c0_11], %9 {strides = array<i32>} : memref<64x128xf32, #tpu.memory_space<vmem>>, vector<64x128xf32>,
    %c0_12 = arith.constant 0 : index
    %c0_13 = arith.constant 0 : index
    %11 = vector.load %arg6[%c0_12, %c0_13] : memref<32x128xf32, #tpu.memory_space<vmem>>, vector<32x128xf32>
    %c0_14 = arith.constant 0 : index
    %c0_15 = arith.constant 0 : index
    %12 = vector.load %arg7[%c0_14, %c0_15] : memref<32x128xf32, #tpu.memory_space<vmem>>, vector<32x128xf32>
    %c0_16 = arith.constant 0 : index
    %c0_17 = arith.constant 0 : index
    %13 = vector.load %arg8[%c0_16, %c0_17] : memref<32x128xf32, #tpu.memory_space<vmem>>, vector<32x128xf32>
    %c0_18 = arith.constant 0 : index
    %c0_19 = arith.constant 0 : index
    %14 = vector.load %arg9[%c0_18, %c0_19] : memref<1x128xf32, #tpu.memory_space<vmem>>, vector<1x128xf32>
    %cst_20 = arith.constant 0.000000e+00 : f32
    %15 = vector.broadcast %cst_20 : f32 to vector<8x32xf32>
    %c0_i32 = arith.constant 0 : i32
    %c8_i32 = arith.constant 8 : i32
    %16 = arith.muli %c0_i32, %c8_i32 : i32
    %17 = tpu.assume_multiple %16, 8 : i32
    %18 = arith.index_cast %17 : i32 to index
    %c0_21 = arith.constant 0 : index
    %19 = vector.load %arg13[%18, %c0_21] : memref<64x128xf32, #tpu.memory_space<vmem>>, vector<8x128xf32>
    %cst_22 = arith.constant dense<0.000000e+00> : vector<8x128xf32>
    %20 = tpu.matmul %15, %11, %cst_22 {dimension_numbers = #tpu.dot_dimension_numbers<[1], [0], [0], [1], [0, 0, 1, 1], [], []>} : vector<8x32xf32>, vector<32x128xf32>, vector<8x128xf32> -> vector<8x128xf32>
    %21 = arith.addf %19, %20 : vector<8x128xf32>
    %22 = vector.extract_strided_slice %21 {offsets = [0, 0], sizes = [8, 32], strides = [1, 1]} : vector<8x128xf32> to vector<8x32xf32>
    %23 = arith.negf %22 : vector<8x32xf32>
    %24 = math.exp %23 : vector<8x32xf32>
    %cst_23 = arith.constant 1.000000e+00 : f32
    %25 = vector.broadcast %cst_23 : f32 to vector<8x32xf32>
    %26 = arith.addf %25, %24 : vector<8x32xf32>
    %27 = arith.divf %25, %26 : vector<8x32xf32>
    %28 = vector.extract_strided_slice %21 {offsets = [0, 32], sizes = [8, 32], strides = [1, 1]} : vector<8x128xf32> to vector<8x32xf32>
    %29 = arith.negf %28 : vector<8x32xf32>
    %30 = math.exp %29 : vector<8x32xf32>
    %cst_24 = arith.constant 1.000000e+00 : f32
    %31 = vector.broadcast %cst_24 : f32 to vector<8x32xf32>
    %32 = arith.addf %31, %30 : vector<8x32xf32>
    %33 = arith.divf %31, %32 : vector<8x32xf32>
    %34 = vector.extract_strided_slice %21 {offsets = [0, 64], sizes = [8, 32], strides = [1, 1]} : vector<8x128xf32> to vector<8x32xf32>
    %35 = math.tanh %34 : vector<8x32xf32>
    %36 = vector.extract_strided_slice %21 {offsets = [0, 96], sizes = [8, 32], strides = [1, 1]} : vector<8x128xf32> to vector<8x32xf32>
    %37 = arith.negf %36 : vector<8x32xf32>
    %38 = math.exp %37 : vector<8x32xf32>
    %cst_25 = arith.constant 1.000000e+00 : f32
    %39 = vector.broadcast %cst_25 : f32 to vector<8x32xf32>
    %40 = arith.addf %39, %38 : vector<8x32xf32>
    %41 = arith.divf %39, %40 : vector<8x32xf32>
    %42 = arith.mulf %33, %15 : vector<8x32xf32>
    %43 = arith.mulf %27, %35 : vector<8x32xf32>
    %44 = arith.addf %42, %43 : vector<8x32xf32>
    %45 = math.tanh %44 : vector<8x32xf32>
    %46 = arith.mulf %41, %45 : vector<8x32xf32>
    %cst_26 = arith.constant dense<0.000000e+00> : vector<8x128xf32>
    %47 = tpu.matmul %46, %12, %cst_26 {dimension_numbers = #tpu.dot_dimension_numbers<[1], [0], [0], [1], [0, 0, 1, 1], [], []>} : vector<8x32xf32>, vector<32x128xf32>, vector<8x128xf32> -> vector<8x128xf32>
    %cst_27 = arith.constant dense<0.000000e+00> : vector<8x128xf32>
    %48 = tpu.matmul %15, %13, %cst_27 {dimension_numbers = #tpu.dot_dimension_numbers<[1], [0], [0], [1], [0, 0, 1, 1], [], []>} : vector<8x32xf32>, vector<32x128xf32>, vector<8x128xf32> -> vector<8x128xf32>
    %49 = arith.addf %47, %48 : vector<8x128xf32>
    %50 = vector.broadcast %14 : vector<1x128xf32> to vector<8x128xf32>
    %51 = arith.addf %49, %50 : vector<8x128xf32>
    %52 = vector.extract_strided_slice %51 {offsets = [0, 0], sizes = [8, 32], strides = [1, 1]} : vector<8x128xf32> to vector<8x32xf32>
    %53 = arith.negf %52 : vector<8x32xf32>
    %54 = math.exp %53 : vector<8x32xf32>
    %cst_28 = arith.constant 1.000000e+00 : f32
    %55 = vector.broadcast %cst_28 : f32 to vector<8x32xf32>
    %56 = arith.addf %55, %54 : vector<8x32xf32>
    %57 = arith.divf %55, %56 : vector<8x32xf32>
    %58 = vector.extract_strided_slice %51 {offsets = [0, 32], sizes = [8, 32], strides = [1, 1]} : vector<8x128xf32> to vector<8x32xf32>
    %59 = arith.negf %58 : vector<8x32xf32>
    %60 = math.exp %59 : vector<8x32xf32>
    %cst_29 = arith.constant 1.000000e+00 : f32
    %61 = vector.broadcast %cst_29 : f32 to vector<8x32xf32>
    %62 = arith.addf %61, %60 : vector<8x32xf32>
    %63 = arith.divf %61, %62 : vector<8x32xf32>
    %64 = vector.extract_strided_slice %51 {offsets = [0, 64], sizes = [8, 32], strides = [1, 1]} : vector<8x128xf32> to vector<8x32xf32>
    %65 = math.tanh %64 : vector<8x32xf32>
    %66 = vector.extract_strided_slice %51 {offsets = [0, 96], sizes = [8, 32], strides = [1, 1]} : vector<8x128xf32> to vector<8x32xf32>
    %67 = arith.negf %66 : vector<8x32xf32>
    %68 = math.exp %67 : vector<8x32xf32>
    %cst_30 = arith.constant 1.000000e+00 : f32
    %69 = vector.broadcast %cst_30 : f32 to vector<8x32xf32>
    %70 = arith.addf %69, %68 : vector<8x32xf32>
    %71 = arith.divf %69, %70 : vector<8x32xf32>
    %72 = arith.mulf %63, %15 : vector<8x32xf32>
    %73 = arith.mulf %57, %65 : vector<8x32xf32>
    %74 = arith.addf %72, %73 : vector<8x32xf32>
    %75 = math.tanh %74 : vector<8x32xf32>
    %76 = arith.mulf %71, %75 : vector<8x32xf32>
    %77 = arith.index_cast %17 : i32 to index
    %c0_31 = arith.constant 0 : index
    %78 = vector.load %arg14[%77, %c0_31] : memref<64x32xf32, #tpu.memory_space<vmem>>, vector<8x32xf32>
    tpu.vector_store %arg14[%77, %c0_31], %76 {strides = array<i32>} : memref<64x32xf32, #tpu.memory_space<vmem>>, vector<8x32xf32>,
    %c1_i32 = arith.constant 1 : i32
    %c8_i32_32 = arith.constant 8 : i32
    %79 = arith.muli %c1_i32, %c8_i32_32 : i32
    %80 = tpu.assume_multiple %79, 8 : i32
    %81 = arith.index_cast %80 : i32 to index
    %c0_33 = arith.constant 0 : index
    %82 = vector.load %arg13[%81, %c0_33] : memref<64x128xf32, #tpu.memory_space<vmem>>, vector<8x128xf32>
    %cst_34 = arith.constant dense<0.000000e+00> : vector<8x128xf32>
    %83 = tpu.matmul %46, %11, %cst_34 {dimension_numbers = #tpu.dot_dimension_numbers<[1], [0], [0], [1], [0, 0, 1, 1], [], []>} : vector<8x32xf32>, vector<32x128xf32>, vector<8x128xf32> -> vector<8x128xf32>
    %84 = arith.addf %82, %83 : vector<8x128xf32>
    %85 = vector.extract_strided_slice %84 {offsets = [0, 0], sizes = [8, 32], strides = [1, 1]} : vector<8x128xf32> to vector<8x32xf32>
    %86 = arith.negf %85 : vector<8x32xf32>
    %87 = math.exp %86 : vector<8x32xf32>
    %cst_35 = arith.constant 1.000000e+00 : f32
    %88 = vector.broadcast %cst_35 : f32 to vector<8x32xf32>
    %89 = arith.addf %88, %87 : vector<8x32xf32>
    %90 = arith.divf %88, %89 : vector<8x32xf32>
    %91 = vector.extract_strided_slice %84 {offsets = [0, 32], sizes = [8, 32], strides = [1, 1]} : vector<8x128xf32> to vector<8x32xf32>
    %92 = arith.negf %91 : vector<8x32xf32>
    %93 = math.exp %92 : vector<8x32xf32>
    %cst_36 = arith.constant 1.000000e+00 : f32
    %94 = vector.broadcast %cst_36 : f32 to vector<8x32xf32>
    %95 = arith.addf %94, %93 : vector<8x32xf32>
    %96 = arith.divf %94, %95 : vector<8x32xf32>
    %97 = vector.extract_strided_slice %84 {offsets = [0, 64], sizes = [8, 32], strides = [1, 1]} : vector<8x128xf32> to vector<8x32xf32>
    %98 = math.tanh %97 : vector<8x32xf32>
    %99 = vector.extract_strided_slice %84 {offsets = [0, 96], sizes = [8, 32], strides = [1, 1]} : vector<8x128xf32> to vector<8x32xf32>
    %100 = arith.negf %99 : vector<8x32xf32>
    %101 = math.exp %100 : vector<8x32xf32>
    %cst_37 = arith.constant 1.000000e+00 : f32
    %102 = vector.broadcast %cst_37 : f32 to vector<8x32xf32>
    %103 = arith.addf %102, %101 : vector<8x32xf32>
    %104 = arith.divf %102, %103 : vector<8x32xf32>
    %105 = arith.mulf %96, %44 : vector<8x32xf32>
    %106 = arith.mulf %90, %98 : vector<8x32xf32>
    %107 = arith.addf %105, %106 : vector<8x32xf32>
    %108 = math.tanh %107 : vector<8x32xf32>
    %109 = arith.mulf %104, %108 : vector<8x32xf32>
    %cst_38 = arith.constant dense<0.000000e+00> : vector<8x128xf32>
    %110 = tpu.matmul %109, %12, %cst_38 {dimension_numbers = #tpu.dot_dimension_numbers<[1], [0], [0], [1], [0, 0, 1, 1], [], []>} : vector<8x32xf32>, vector<32x128xf32>, vector<8x128xf32> -> vector<8x128xf32>
    %cst_39 = arith.constant dense<0.000000e+00> : vector<8x128xf32>
    %111 = tpu.matmul %76, %13, %cst_39 {dimension_numbers = #tpu.dot_dimension_numbers<[1], [0], [0], [1], [0, 0, 1, 1], [], []>} : vector<8x32xf32>, vector<32x128xf32>, vector<8x128xf32> -> vector<8x128xf32>
    %112 = arith.addf %110, %111 : vector<8x128xf32>
    %113 = vector.broadcast %14 : vector<1x128xf32> to vector<8x128xf32>
    %114 = arith.addf %112, %113 : vector<8x128xf32>
    %115 = vector.extract_strided_slice %114 {offsets = [0, 0], sizes = [8, 32], strides = [1, 1]} : vector<8x128xf32> to vector<8x32xf32>
    %116 = arith.negf %115 : vector<8x32xf32>
    %117 = math.exp %116 : vector<8x32xf32>
    %cst_40 = arith.constant 1.000000e+00 : f32
    %118 = vector.broadcast %cst_40 : f32 to vector<8x32xf32>
    %119 = arith.addf %118, %117 : vector<8x32xf32>
    %120 = arith.divf %118, %119 : vector<8x32xf32>
    %121 = vector.extract_strided_slice %114 {offsets = [0, 32], sizes = [8, 32], strides = [1, 1]} : vector<8x128xf32> to vector<8x32xf32>
    %122 = arith.negf %121 : vector<8x32xf32>
    %123 = math.exp %122 : vector<8x32xf32>
    %cst_41 = arith.constant 1.000000e+00 : f32
    %124 = vector.broadcast %cst_41 : f32 to vector<8x32xf32>
    %125 = arith.addf %124, %123 : vector<8x32xf32>
    %126 = arith.divf %124, %125 : vector<8x32xf32>
    %127 = vector.extract_strided_slice %114 {offsets = [0, 64], sizes = [8, 32], strides = [1, 1]} : vector<8x128xf32> to vector<8x32xf32>
    %128 = math.tanh %127 : vector<8x32xf32>
    %129 = vector.extract_strided_slice %114 {offsets = [0, 96], sizes = [8, 32], strides = [1, 1]} : vector<8x128xf32> to vector<8x32xf32>
    %130 = arith.negf %129 : vector<8x32xf32>
    %131 = math.exp %130 : vector<8x32xf32>
    %cst_42 = arith.constant 1.000000e+00 : f32
    %132 = vector.broadcast %cst_42 : f32 to vector<8x32xf32>
    %133 = arith.addf %132, %131 : vector<8x32xf32>
    %134 = arith.divf %132, %133 : vector<8x32xf32>
    %135 = arith.mulf %126, %74 : vector<8x32xf32>
    %136 = arith.mulf %120, %128 : vector<8x32xf32>
    %137 = arith.addf %135, %136 : vector<8x32xf32>
    %138 = math.tanh %137 : vector<8x32xf32>
    %139 = arith.mulf %134, %138 : vector<8x32xf32>
    %140 = arith.index_cast %80 : i32 to index
    %c0_43 = arith.constant 0 : index
    %141 = vector.load %arg14[%140, %c0_43] : memref<64x32xf32, #tpu.memory_space<vmem>>, vector<8x32xf32>
    tpu.vector_store %arg14[%140, %c0_43], %139 {strides = array<i32>} : memref<64x32xf32, #tpu.memory_space<vmem>>, vector<8x32xf32>,
    %c2_i32 = arith.constant 2 : i32
    %c8_i32_44 = arith.constant 8 : i32
    %142 = arith.muli %c2_i32, %c8_i32_44 : i32
    %143 = tpu.assume_multiple %142, 8 : i32
    %144 = arith.index_cast %143 : i32 to index
    %c0_45 = arith.constant 0 : index
    %145 = vector.load %arg13[%144, %c0_45] : memref<64x128xf32, #tpu.memory_space<vmem>>, vector<8x128xf32>
    %cst_46 = arith.constant dense<0.000000e+00> : vector<8x128xf32>
    %146 = tpu.matmul %109, %11, %cst_46 {dimension_numbers = #tpu.dot_dimension_numbers<[1], [0], [0], [1], [0, 0, 1, 1], [], []>} : vector<8x32xf32>, vector<32x128xf32>, vector<8x128xf32> -> vector<8x128xf32>
    %147 = arith.addf %145, %146 : vector<8x128xf32>
    %148 = vector.extract_strided_slice %147 {offsets = [0, 0], sizes = [8, 32], strides = [1, 1]} : vector<8x128xf32> to vector<8x32xf32>
    %149 = arith.negf %148 : vector<8x32xf32>
    %150 = math.exp %149 : vector<8x32xf32>
    %cst_47 = arith.constant 1.000000e+00 : f32
    %151 = vector.broadcast %cst_47 : f32 to vector<8x32xf32>
    %152 = arith.addf %151, %150 : vector<8x32xf32>
    %153 = arith.divf %151, %152 : vector<8x32xf32>
    %154 = vector.extract_strided_slice %147 {offsets = [0, 32], sizes = [8, 32], strides = [1, 1]} : vector<8x128xf32> to vector<8x32xf32>
    %155 = arith.negf %154 : vector<8x32xf32>
    %156 = math.exp %155 : vector<8x32xf32>
    %cst_48 = arith.constant 1.000000e+00 : f32
    %157 = vector.broadcast %cst_48 : f32 to vector<8x32xf32>
    %158 = arith.addf %157, %156 : vector<8x32xf32>
    %159 = arith.divf %157, %158 : vector<8x32xf32>
    %160 = vector.extract_strided_slice %147 {offsets = [0, 64], sizes = [8, 32], strides = [1, 1]} : vector<8x128xf32> to vector<8x32xf32>
    %161 = math.tanh %160 : vector<8x32xf32>
    %162 = vector.extract_strided_slice %147 {offsets = [0, 96], sizes = [8, 32], strides = [1, 1]} : vector<8x128xf32> to vector<8x32xf32>
    %163 = arith.negf %162 : vector<8x32xf32>
    %164 = math.exp %163 : vector<8x32xf32>
    %cst_49 = arith.constant 1.000000e+00 : f32
    %165 = vector.broadcast %cst_49 : f32 to vector<8x32xf32>
    %166 = arith.addf %165, %164 : vector<8x32xf32>
    %167 = arith.divf %165, %166 : vector<8x32xf32>
    %168 = arith.mulf %159, %107 : vector<8x32xf32>
    %169 = arith.mulf %153, %161 : vector<8x32xf32>
    %170 = arith.addf %168, %169 : vector<8x32xf32>
    %171 = math.tanh %170 : vector<8x32xf32>
    %172 = arith.mulf %167, %171 : vector<8x32xf32>
    %cst_50 = arith.constant dense<0.000000e+00> : vector<8x128xf32>
    %173 = tpu.matmul %172, %12, %cst_50 {dimension_numbers = #tpu.dot_dimension_numbers<[1], [0], [0], [1], [0, 0, 1, 1], [], []>} : vector<8x32xf32>, vector<32x128xf32>, vector<8x128xf32> -> vector<8x128xf32>
    %cst_51 = arith.constant dense<0.000000e+00> : vector<8x128xf32>
    %174 = tpu.matmul %139, %13, %cst_51 {dimension_numbers = #tpu.dot_dimension_numbers<[1], [0], [0], [1], [0, 0, 1, 1], [], []>} : vector<8x32xf32>, vector<32x128xf32>, vector<8x128xf32> -> vector<8x128xf32>
    %175 = arith.addf %173, %174 : vector<8x128xf32>
    %176 = vector.broadcast %14 : vector<1x128xf32> to vector<8x128xf32>
    %177 = arith.addf %175, %176 : vector<8x128xf32>
    %178 = vector.extract_strided_slice %177 {offsets = [0, 0], sizes = [8, 32], strides = [1, 1]} : vector<8x128xf32> to vector<8x32xf32>
    %179 = arith.negf %178 : vector<8x32xf32>
    %180 = math.exp %179 : vector<8x32xf32>
    %cst_52 = arith.constant 1.000000e+00 : f32
    %181 = vector.broadcast %cst_52 : f32 to vector<8x32xf32>
    %182 = arith.addf %181, %180 : vector<8x32xf32>
    %183 = arith.divf %181, %182 : vector<8x32xf32>
    %184 = vector.extract_strided_slice %177 {offsets = [0, 32], sizes = [8, 32], strides = [1, 1]} : vector<8x128xf32> to vector<8x32xf32>
    %185 = arith.negf %184 : vector<8x32xf32>
    %186 = math.exp %185 : vector<8x32xf32>
    %cst_53 = arith.constant 1.000000e+00 : f32
    %187 = vector.broadcast %cst_53 : f32 to vector<8x32xf32>
    %188 = arith.addf %187, %186 : vector<8x32xf32>
    %189 = arith.divf %187, %188 : vector<8x32xf32>
    %190 = vector.extract_strided_slice %177 {offsets = [0, 64], sizes = [8, 32], strides = [1, 1]} : vector<8x128xf32> to vector<8x32xf32>
    %191 = math.tanh %190 : vector<8x32xf32>
    %192 = vector.extract_strided_slice %177 {offsets = [0, 96], sizes = [8, 32], strides = [1, 1]} : vector<8x128xf32> to vector<8x32xf32>
    %193 = arith.negf %192 : vector<8x32xf32>
    %194 = math.exp %193 : vector<8x32xf32>
    %cst_54 = arith.constant 1.000000e+00 : f32
    %195 = vector.broadcast %cst_54 : f32 to vector<8x32xf32>
    %196 = arith.addf %195, %194 : vector<8x32xf32>
    %197 = arith.divf %195, %196 : vector<8x32xf32>
    %198 = arith.mulf %189, %137 : vector<8x32xf32>
    %199 = arith.mulf %183, %191 : vector<8x32xf32>
    %200 = arith.addf %198, %199 : vector<8x32xf32>
    %201 = math.tanh %200 : vector<8x32xf32>
    %202 = arith.mulf %197, %201 : vector<8x32xf32>
    %203 = arith.index_cast %143 : i32 to index
    %c0_55 = arith.constant 0 : index
    %204 = vector.load %arg14[%203, %c0_55] : memref<64x32xf32, #tpu.memory_space<vmem>>, vector<8x32xf32>
    tpu.vector_store %arg14[%203, %c0_55], %202 {strides = array<i32>} : memref<64x32xf32, #tpu.memory_space<vmem>>, vector<8x32xf32>,
    %c3_i32 = arith.constant 3 : i32
    %c8_i32_56 = arith.constant 8 : i32
    %205 = arith.muli %c3_i32, %c8_i32_56 : i32
    %206 = tpu.assume_multiple %205, 8 : i32
    %207 = arith.index_cast %206 : i32 to index
    %c0_57 = arith.constant 0 : index
    %208 = vector.load %arg13[%207, %c0_57] : memref<64x128xf32, #tpu.memory_space<vmem>>, vector<8x128xf32>
    %cst_58 = arith.constant dense<0.000000e+00> : vector<8x128xf32>
    %209 = tpu.matmul %172, %11, %cst_58 {dimension_numbers = #tpu.dot_dimension_numbers<[1], [0], [0], [1], [0, 0, 1, 1], [], []>} : vector<8x32xf32>, vector<32x128xf32>, vector<8x128xf32> -> vector<8x128xf32>
    %210 = arith.addf %208, %209 : vector<8x128xf32>
    %211 = vector.extract_strided_slice %210 {offsets = [0, 0], sizes = [8, 32], strides = [1, 1]} : vector<8x128xf32> to vector<8x32xf32>
    %212 = arith.negf %211 : vector<8x32xf32>
    %213 = math.exp %212 : vector<8x32xf32>
    %cst_59 = arith.constant 1.000000e+00 : f32
    %214 = vector.broadcast %cst_59 : f32 to vector<8x32xf32>
    %215 = arith.addf %214, %213 : vector<8x32xf32>
    %216 = arith.divf %214, %215 : vector<8x32xf32>
    %217 = vector.extract_strided_slice %210 {offsets = [0, 32], sizes = [8, 32], strides = [1, 1]} : vector<8x128xf32> to vector<8x32xf32>
    %218 = arith.negf %217 : vector<8x32xf32>
    %219 = math.exp %218 : vector<8x32xf32>
    %cst_60 = arith.constant 1.000000e+00 : f32
    %220 = vector.broadcast %cst_60 : f32 to vector<8x32xf32>
    %221 = arith.addf %220, %219 : vector<8x32xf32>
    %222 = arith.divf %220, %221 : vector<8x32xf32>
    %223 = vector.extract_strided_slice %210 {offsets = [0, 64], sizes = [8, 32], strides = [1, 1]} : vector<8x128xf32> to vector<8x32xf32>
    %224 = math.tanh %223 : vector<8x32xf32>
    %225 = vector.extract_strided_slice %210 {offsets = [0, 96], sizes = [8, 32], strides = [1, 1]} : vector<8x128xf32> to vector<8x32xf32>
    %226 = arith.negf %225 : vector<8x32xf32>
    %227 = math.exp %226 : vector<8x32xf32>
    %cst_61 = arith.constant 1.000000e+00 : f32
    %228 = vector.broadcast %cst_61 : f32 to vector<8x32xf32>
    %229 = arith.addf %228, %227 : vector<8x32xf32>
    %230 = arith.divf %228, %229 : vector<8x32xf32>
    %231 = arith.mulf %222, %170 : vector<8x32xf32>
    %232 = arith.mulf %216, %224 : vector<8x32xf32>
    %233 = arith.addf %231, %232 : vector<8x32xf32>
    %234 = math.tanh %233 : vector<8x32xf32>
    %235 = arith.mulf %230, %234 : vector<8x32xf32>
    %cst_62 = arith.constant dense<0.000000e+00> : vector<8x128xf32>
    %236 = tpu.matmul %235, %12, %cst_62 {dimension_numbers = #tpu.dot_dimension_numbers<[1], [0], [0], [1], [0, 0, 1, 1], [], []>} : vector<8x32xf32>, vector<32x128xf32>, vector<8x128xf32> -> vector<8x128xf32>
    %cst_63 = arith.constant dense<0.000000e+00> : vector<8x128xf32>
    %237 = tpu.matmul %202, %13, %cst_63 {dimension_numbers = #tpu.dot_dimension_numbers<[1], [0], [0], [1], [0, 0, 1, 1], [], []>} : vector<8x32xf32>, vector<32x128xf32>, vector<8x128xf32> -> vector<8x128xf32>
    %238 = arith.addf %236, %237 : vector<8x128xf32>
    %239 = vector.broadcast %14 : vector<1x128xf32> to vector<8x128xf32>
    %240 = arith.addf %238, %239 : vector<8x128xf32>
    %241 = vector.extract_strided_slice %240 {offsets = [0, 0], sizes = [8, 32], strides = [1, 1]} : vector<8x128xf32> to vector<8x32xf32>
    %242 = arith.negf %241 : vector<8x32xf32>
    %243 = math.exp %242 : vector<8x32xf32>
    %cst_64 = arith.constant 1.000000e+00 : f32
    %244 = vector.broadcast %cst_64 : f32 to vector<8x32xf32>
    %245 = arith.addf %244, %243 : vector<8x32xf32>
    %246 = arith.divf %244, %245 : vector<8x32xf32>
    %247 = vector.extract_strided_slice %240 {offsets = [0, 32], sizes = [8, 32], strides = [1, 1]} : vector<8x128xf32> to vector<8x32xf32>
    %248 = arith.negf %247 : vector<8x32xf32>
    %249 = math.exp %248 : vector<8x32xf32>
    %cst_65 = arith.constant 1.000000e+00 : f32
    %250 = vector.broadcast %cst_65 : f32 to vector<8x32xf32>
    %251 = arith.addf %250, %249 : vector<8x32xf32>
    %252 = arith.divf %250, %251 : vector<8x32xf32>
    %253 = vector.extract_strided_slice %240 {offsets = [0, 64], sizes = [8, 32], strides = [1, 1]} : vector<8x128xf32> to vector<8x32xf32>
    %254 = math.tanh %253 : vector<8x32xf32>
    %255 = vector.extract_strided_slice %240 {offsets = [0, 96], sizes = [8, 32], strides = [1, 1]} : vector<8x128xf32> to vector<8x32xf32>
    %256 = arith.negf %255 : vector<8x32xf32>
    %257 = math.exp %256 : vector<8x32xf32>
    %cst_66 = arith.constant 1.000000e+00 : f32
    %258 = vector.broadcast %cst_66 : f32 to vector<8x32xf32>
    %259 = arith.addf %258, %257 : vector<8x32xf32>
    %260 = arith.divf %258, %259 : vector<8x32xf32>
    %261 = arith.mulf %252, %200 : vector<8x32xf32>
    %262 = arith.mulf %246, %254 : vector<8x32xf32>
    %263 = arith.addf %261, %262 : vector<8x32xf32>
    %264 = math.tanh %263 : vector<8x32xf32>
    %265 = arith.mulf %260, %264 : vector<8x32xf32>
    %266 = arith.index_cast %206 : i32 to index
    %c0_67 = arith.constant 0 : index
    %267 = vector.load %arg14[%266, %c0_67] : memref<64x32xf32, #tpu.memory_space<vmem>>, vector<8x32xf32>
    tpu.vector_store %arg14[%266, %c0_67], %265 {strides = array<i32>} : memref<64x32xf32, #tpu.memory_space<vmem>>, vector<8x32xf32>,
    %c4_i32 = arith.constant 4 : i32
    %c8_i32_68 = arith.constant 8 : i32
    %268 = arith.muli %c4_i32, %c8_i32_68 : i32
    %269 = tpu.assume_multiple %268, 8 : i32
    %270 = arith.index_cast %269 : i32 to index
    %c0_69 = arith.constant 0 : index
    %271 = vector.load %arg13[%270, %c0_69] : memref<64x128xf32, #tpu.memory_space<vmem>>, vector<8x128xf32>
    %cst_70 = arith.constant dense<0.000000e+00> : vector<8x128xf32>
    %272 = tpu.matmul %235, %11, %cst_70 {dimension_numbers = #tpu.dot_dimension_numbers<[1], [0], [0], [1], [0, 0, 1, 1], [], []>} : vector<8x32xf32>, vector<32x128xf32>, vector<8x128xf32> -> vector<8x128xf32>
    %273 = arith.addf %271, %272 : vector<8x128xf32>
    %274 = vector.extract_strided_slice %273 {offsets = [0, 0], sizes = [8, 32], strides = [1, 1]} : vector<8x128xf32> to vector<8x32xf32>
    %275 = arith.negf %274 : vector<8x32xf32>
    %276 = math.exp %275 : vector<8x32xf32>
    %cst_71 = arith.constant 1.000000e+00 : f32
    %277 = vector.broadcast %cst_71 : f32 to vector<8x32xf32>
    %278 = arith.addf %277, %276 : vector<8x32xf32>
    %279 = arith.divf %277, %278 : vector<8x32xf32>
    %280 = vector.extract_strided_slice %273 {offsets = [0, 32], sizes = [8, 32], strides = [1, 1]} : vector<8x128xf32> to vector<8x32xf32>
    %281 = arith.negf %280 : vector<8x32xf32>
    %282 = math.exp %281 : vector<8x32xf32>
    %cst_72 = arith.constant 1.000000e+00 : f32
    %283 = vector.broadcast %cst_72 : f32 to vector<8x32xf32>
    %284 = arith.addf %283, %282 : vector<8x32xf32>
    %285 = arith.divf %283, %284 : vector<8x32xf32>
    %286 = vector.extract_strided_slice %273 {offsets = [0, 64], sizes = [8, 32], strides = [1, 1]} : vector<8x128xf32> to vector<8x32xf32>
    %287 = math.tanh %286 : vector<8x32xf32>
    %288 = vector.extract_strided_slice %273 {offsets = [0, 96], sizes = [8, 32], strides = [1, 1]} : vector<8x128xf32> to vector<8x32xf32>
    %289 = arith.negf %288 : vector<8x32xf32>
    %290 = math.exp %289 : vector<8x32xf32>
    %cst_73 = arith.constant 1.000000e+00 : f32
    %291 = vector.broadcast %cst_73 : f32 to vector<8x32xf32>
    %292 = arith.addf %291, %290 : vector<8x32xf32>
    %293 = arith.divf %291, %292 : vector<8x32xf32>
    %294 = arith.mulf %285, %233 : vector<8x32xf32>
    %295 = arith.mulf %279, %287 : vector<8x32xf32>
    %296 = arith.addf %294, %295 : vector<8x32xf32>
    %297 = math.tanh %296 : vector<8x32xf32>
    %298 = arith.mulf %293, %297 : vector<8x32xf32>
    %cst_74 = arith.constant dense<0.000000e+00> : vector<8x128xf32>
    %299 = tpu.matmul %298, %12, %cst_74 {dimension_numbers = #tpu.dot_dimension_numbers<[1], [0], [0], [1], [0, 0, 1, 1], [], []>} : vector<8x32xf32>, vector<32x128xf32>, vector<8x128xf32> -> vector<8x128xf32>
    %cst_75 = arith.constant dense<0.000000e+00> : vector<8x128xf32>
    %300 = tpu.matmul %265, %13, %cst_75 {dimension_numbers = #tpu.dot_dimension_numbers<[1], [0], [0], [1], [0, 0, 1, 1], [], []>} : vector<8x32xf32>, vector<32x128xf32>, vector<8x128xf32> -> vector<8x128xf32>
    %301 = arith.addf %299, %300 : vector<8x128xf32>
    %302 = vector.broadcast %14 : vector<1x128xf32> to vector<8x128xf32>
    %303 = arith.addf %301, %302 : vector<8x128xf32>
    %304 = vector.extract_strided_slice %303 {offsets = [0, 0], sizes = [8, 32], strides = [1, 1]} : vector<8x128xf32> to vector<8x32xf32>
    %305 = arith.negf %304 : vector<8x32xf32>
    %306 = math.exp %305 : vector<8x32xf32>
    %cst_76 = arith.constant 1.000000e+00 : f32
    %307 = vector.broadcast %cst_76 : f32 to vector<8x32xf32>
    %308 = arith.addf %307, %306 : vector<8x32xf32>
    %309 = arith.divf %307, %308 : vector<8x32xf32>
    %310 = vector.extract_strided_slice %303 {offsets = [0, 32], sizes = [8, 32], strides = [1, 1]} : vector<8x128xf32> to vector<8x32xf32>
    %311 = arith.negf %310 : vector<8x32xf32>
    %312 = math.exp %311 : vector<8x32xf32>
    %cst_77 = arith.constant 1.000000e+00 : f32
    %313 = vector.broadcast %cst_77 : f32 to vector<8x32xf32>
    %314 = arith.addf %313, %312 : vector<8x32xf32>
    %315 = arith.divf %313, %314 : vector<8x32xf32>
    %316 = vector.extract_strided_slice %303 {offsets = [0, 64], sizes = [8, 32], strides = [1, 1]} : vector<8x128xf32> to vector<8x32xf32>
    %317 = math.tanh %316 : vector<8x32xf32>
    %318 = vector.extract_strided_slice %303 {offsets = [0, 96], sizes = [8, 32], strides = [1, 1]} : vector<8x128xf32> to vector<8x32xf32>
    %319 = arith.negf %318 : vector<8x32xf32>
    %320 = math.exp %319 : vector<8x32xf32>
    %cst_78 = arith.constant 1.000000e+00 : f32
    %321 = vector.broadcast %cst_78 : f32 to vector<8x32xf32>
    %322 = arith.addf %321, %320 : vector<8x32xf32>
    %323 = arith.divf %321, %322 : vector<8x32xf32>
    %324 = arith.mulf %315, %263 : vector<8x32xf32>
    %325 = arith.mulf %309, %317 : vector<8x32xf32>
    %326 = arith.addf %324, %325 : vector<8x32xf32>
    %327 = math.tanh %326 : vector<8x32xf32>
    %328 = arith.mulf %323, %327 : vector<8x32xf32>
    %329 = arith.index_cast %269 : i32 to index
    %c0_79 = arith.constant 0 : index
    %330 = vector.load %arg14[%329, %c0_79] : memref<64x32xf32, #tpu.memory_space<vmem>>, vector<8x32xf32>
    tpu.vector_store %arg14[%329, %c0_79], %328 {strides = array<i32>} : memref<64x32xf32, #tpu.memory_space<vmem>>, vector<8x32xf32>,
    %c5_i32 = arith.constant 5 : i32
    %c8_i32_80 = arith.constant 8 : i32
    %331 = arith.muli %c5_i32, %c8_i32_80 : i32
    %332 = tpu.assume_multiple %331, 8 : i32
    %333 = arith.index_cast %332 : i32 to index
    %c0_81 = arith.constant 0 : index
    %334 = vector.load %arg13[%333, %c0_81] : memref<64x128xf32, #tpu.memory_space<vmem>>, vector<8x128xf32>
    %cst_82 = arith.constant dense<0.000000e+00> : vector<8x128xf32>
    %335 = tpu.matmul %298, %11, %cst_82 {dimension_numbers = #tpu.dot_dimension_numbers<[1], [0], [0], [1], [0, 0, 1, 1], [], []>} : vector<8x32xf32>, vector<32x128xf32>, vector<8x128xf32> -> vector<8x128xf32>
    %336 = arith.addf %334, %335 : vector<8x128xf32>
    %337 = vector.extract_strided_slice %336 {offsets = [0, 0], sizes = [8, 32], strides = [1, 1]} : vector<8x128xf32> to vector<8x32xf32>
    %338 = arith.negf %337 : vector<8x32xf32>
    %339 = math.exp %338 : vector<8x32xf32>
    %cst_83 = arith.constant 1.000000e+00 : f32
    %340 = vector.broadcast %cst_83 : f32 to vector<8x32xf32>
    %341 = arith.addf %340, %339 : vector<8x32xf32>
    %342 = arith.divf %340, %341 : vector<8x32xf32>
    %343 = vector.extract_strided_slice %336 {offsets = [0, 32], sizes = [8, 32], strides = [1, 1]} : vector<8x128xf32> to vector<8x32xf32>
    %344 = arith.negf %343 : vector<8x32xf32>
    %345 = math.exp %344 : vector<8x32xf32>
    %cst_84 = arith.constant 1.000000e+00 : f32
    %346 = vector.broadcast %cst_84 : f32 to vector<8x32xf32>
    %347 = arith.addf %346, %345 : vector<8x32xf32>
    %348 = arith.divf %346, %347 : vector<8x32xf32>
    %349 = vector.extract_strided_slice %336 {offsets = [0, 64], sizes = [8, 32], strides = [1, 1]} : vector<8x128xf32> to vector<8x32xf32>
    %350 = math.tanh %349 : vector<8x32xf32>
    %351 = vector.extract_strided_slice %336 {offsets = [0, 96], sizes = [8, 32], strides = [1, 1]} : vector<8x128xf32> to vector<8x32xf32>
    %352 = arith.negf %351 : vector<8x32xf32>
    %353 = math.exp %352 : vector<8x32xf32>
    %cst_85 = arith.constant 1.000000e+00 : f32
    %354 = vector.broadcast %cst_85 : f32 to vector<8x32xf32>
    %355 = arith.addf %354, %353 : vector<8x32xf32>
    %356 = arith.divf %354, %355 : vector<8x32xf32>
    %357 = arith.mulf %348, %296 : vector<8x32xf32>
    %358 = arith.mulf %342, %350 : vector<8x32xf32>
    %359 = arith.addf %357, %358 : vector<8x32xf32>
    %360 = math.tanh %359 : vector<8x32xf32>
    %361 = arith.mulf %356, %360 : vector<8x32xf32>
    %cst_86 = arith.constant dense<0.000000e+00> : vector<8x128xf32>
    %362 = tpu.matmul %361, %12, %cst_86 {dimension_numbers = #tpu.dot_dimension_numbers<[1], [0], [0], [1], [0, 0, 1, 1], [], []>} : vector<8x32xf32>, vector<32x128xf32>, vector<8x128xf32> -> vector<8x128xf32>
    %cst_87 = arith.constant dense<0.000000e+00> : vector<8x128xf32>
    %363 = tpu.matmul %328, %13, %cst_87 {dimension_numbers = #tpu.dot_dimension_numbers<[1], [0], [0], [1], [0, 0, 1, 1], [], []>} : vector<8x32xf32>, vector<32x128xf32>, vector<8x128xf32> -> vector<8x128xf32>
    %364 = arith.addf %362, %363 : vector<8x128xf32>
    %365 = vector.broadcast %14 : vector<1x128xf32> to vector<8x128xf32>
    %366 = arith.addf %364, %365 : vector<8x128xf32>
    %367 = vector.extract_strided_slice %366 {offsets = [0, 0], sizes = [8, 32], strides = [1, 1]} : vector<8x128xf32> to vector<8x32xf32>
    %368 = arith.negf %367 : vector<8x32xf32>
    %369 = math.exp %368 : vector<8x32xf32>
    %cst_88 = arith.constant 1.000000e+00 : f32
    %370 = vector.broadcast %cst_88 : f32 to vector<8x32xf32>
    %371 = arith.addf %370, %369 : vector<8x32xf32>
    %372 = arith.divf %370, %371 : vector<8x32xf32>
    %373 = vector.extract_strided_slice %366 {offsets = [0, 32], sizes = [8, 32], strides = [1, 1]} : vector<8x128xf32> to vector<8x32xf32>
    %374 = arith.negf %373 : vector<8x32xf32>
    %375 = math.exp %374 : vector<8x32xf32>
    %cst_89 = arith.constant 1.000000e+00 : f32
    %376 = vector.broadcast %cst_89 : f32 to vector<8x32xf32>
    %377 = arith.addf %376, %375 : vector<8x32xf32>
    %378 = arith.divf %376, %377 : vector<8x32xf32>
    %379 = vector.extract_strided_slice %366 {offsets = [0, 64], sizes = [8, 32], strides = [1, 1]} : vector<8x128xf32> to vector<8x32xf32>
    %380 = math.tanh %379 : vector<8x32xf32>
    %381 = vector.extract_strided_slice %366 {offsets = [0, 96], sizes = [8, 32], strides = [1, 1]} : vector<8x128xf32> to vector<8x32xf32>
    %382 = arith.negf %381 : vector<8x32xf32>
    %383 = math.exp %382 : vector<8x32xf32>
    %cst_90 = arith.constant 1.000000e+00 : f32
    %384 = vector.broadcast %cst_90 : f32 to vector<8x32xf32>
    %385 = arith.addf %384, %383 : vector<8x32xf32>
    %386 = arith.divf %384, %385 : vector<8x32xf32>
    %387 = arith.mulf %378, %326 : vector<8x32xf32>
    %388 = arith.mulf %372, %380 : vector<8x32xf32>
    %389 = arith.addf %387, %388 : vector<8x32xf32>
    %390 = math.tanh %389 : vector<8x32xf32>
    %391 = arith.mulf %386, %390 : vector<8x32xf32>
    %392 = arith.index_cast %332 : i32 to index
    %c0_91 = arith.constant 0 : index
    %393 = vector.load %arg14[%392, %c0_91] : memref<64x32xf32, #tpu.memory_space<vmem>>, vector<8x32xf32>
    tpu.vector_store %arg14[%392, %c0_91], %391 {strides = array<i32>} : memref<64x32xf32, #tpu.memory_space<vmem>>, vector<8x32xf32>,
    %c6_i32 = arith.constant 6 : i32
    %c8_i32_92 = arith.constant 8 : i32
    %394 = arith.muli %c6_i32, %c8_i32_92 : i32
    %395 = tpu.assume_multiple %394, 8 : i32
    %396 = arith.index_cast %395 : i32 to index
    %c0_93 = arith.constant 0 : index
    %397 = vector.load %arg13[%396, %c0_93] : memref<64x128xf32, #tpu.memory_space<vmem>>, vector<8x128xf32>
    %cst_94 = arith.constant dense<0.000000e+00> : vector<8x128xf32>
    %398 = tpu.matmul %361, %11, %cst_94 {dimension_numbers = #tpu.dot_dimension_numbers<[1], [0], [0], [1], [0, 0, 1, 1], [], []>} : vector<8x32xf32>, vector<32x128xf32>, vector<8x128xf32> -> vector<8x128xf32>
    %399 = arith.addf %397, %398 : vector<8x128xf32>
    %400 = vector.extract_strided_slice %399 {offsets = [0, 0], sizes = [8, 32], strides = [1, 1]} : vector<8x128xf32> to vector<8x32xf32>
    %401 = arith.negf %400 : vector<8x32xf32>
    %402 = math.exp %401 : vector<8x32xf32>
    %cst_95 = arith.constant 1.000000e+00 : f32
    %403 = vector.broadcast %cst_95 : f32 to vector<8x32xf32>
    %404 = arith.addf %403, %402 : vector<8x32xf32>
    %405 = arith.divf %403, %404 : vector<8x32xf32>
    %406 = vector.extract_strided_slice %399 {offsets = [0, 32], sizes = [8, 32], strides = [1, 1]} : vector<8x128xf32> to vector<8x32xf32>
    %407 = arith.negf %406 : vector<8x32xf32>
    %408 = math.exp %407 : vector<8x32xf32>
    %cst_96 = arith.constant 1.000000e+00 : f32
    %409 = vector.broadcast %cst_96 : f32 to vector<8x32xf32>
    %410 = arith.addf %409, %408 : vector<8x32xf32>
    %411 = arith.divf %409, %410 : vector<8x32xf32>
    %412 = vector.extract_strided_slice %399 {offsets = [0, 64], sizes = [8, 32], strides = [1, 1]} : vector<8x128xf32> to vector<8x32xf32>
    %413 = math.tanh %412 : vector<8x32xf32>
    %414 = vector.extract_strided_slice %399 {offsets = [0, 96], sizes = [8, 32], strides = [1, 1]} : vector<8x128xf32> to vector<8x32xf32>
    %415 = arith.negf %414 : vector<8x32xf32>
    %416 = math.exp %415 : vector<8x32xf32>
    %cst_97 = arith.constant 1.000000e+00 : f32
    %417 = vector.broadcast %cst_97 : f32 to vector<8x32xf32>
    %418 = arith.addf %417, %416 : vector<8x32xf32>
    %419 = arith.divf %417, %418 : vector<8x32xf32>
    %420 = arith.mulf %411, %359 : vector<8x32xf32>
    %421 = arith.mulf %405, %413 : vector<8x32xf32>
    %422 = arith.addf %420, %421 : vector<8x32xf32>
    %423 = math.tanh %422 : vector<8x32xf32>
    %424 = arith.mulf %419, %423 : vector<8x32xf32>
    %cst_98 = arith.constant dense<0.000000e+00> : vector<8x128xf32>
    %425 = tpu.matmul %424, %12, %cst_98 {dimension_numbers = #tpu.dot_dimension_numbers<[1], [0], [0], [1], [0, 0, 1, 1], [], []>} : vector<8x32xf32>, vector<32x128xf32>, vector<8x128xf32> -> vector<8x128xf32>
    %cst_99 = arith.constant dense<0.000000e+00> : vector<8x128xf32>
    %426 = tpu.matmul %391, %13, %cst_99 {dimension_numbers = #tpu.dot_dimension_numbers<[1], [0], [0], [1], [0, 0, 1, 1], [], []>} : vector<8x32xf32>, vector<32x128xf32>, vector<8x128xf32> -> vector<8x128xf32>
    %427 = arith.addf %425, %426 : vector<8x128xf32>
    %428 = vector.broadcast %14 : vector<1x128xf32> to vector<8x128xf32>
    %429 = arith.addf %427, %428 : vector<8x128xf32>
    %430 = vector.extract_strided_slice %429 {offsets = [0, 0], sizes = [8, 32], strides = [1, 1]} : vector<8x128xf32> to vector<8x32xf32>
    %431 = arith.negf %430 : vector<8x32xf32>
    %432 = math.exp %431 : vector<8x32xf32>
    %cst_100 = arith.constant 1.000000e+00 : f32
    %433 = vector.broadcast %cst_100 : f32 to vector<8x32xf32>
    %434 = arith.addf %433, %432 : vector<8x32xf32>
    %435 = arith.divf %433, %434 : vector<8x32xf32>
    %436 = vector.extract_strided_slice %429 {offsets = [0, 32], sizes = [8, 32], strides = [1, 1]} : vector<8x128xf32> to vector<8x32xf32>
    %437 = arith.negf %436 : vector<8x32xf32>
    %438 = math.exp %437 : vector<8x32xf32>
    %cst_101 = arith.constant 1.000000e+00 : f32
    %439 = vector.broadcast %cst_101 : f32 to vector<8x32xf32>
    %440 = arith.addf %439, %438 : vector<8x32xf32>
    %441 = arith.divf %439, %440 : vector<8x32xf32>
    %442 = vector.extract_strided_slice %429 {offsets = [0, 64], sizes = [8, 32], strides = [1, 1]} : vector<8x128xf32> to vector<8x32xf32>
    %443 = math.tanh %442 : vector<8x32xf32>
    %444 = vector.extract_strided_slice %429 {offsets = [0, 96], sizes = [8, 32], strides = [1, 1]} : vector<8x128xf32> to vector<8x32xf32>
    %445 = arith.negf %444 : vector<8x32xf32>
    %446 = math.exp %445 : vector<8x32xf32>
    %cst_102 = arith.constant 1.000000e+00 : f32
    %447 = vector.broadcast %cst_102 : f32 to vector<8x32xf32>
    %448 = arith.addf %447, %446 : vector<8x32xf32>
    %449 = arith.divf %447, %448 : vector<8x32xf32>
    %450 = arith.mulf %441, %389 : vector<8x32xf32>
    %451 = arith.mulf %435, %443 : vector<8x32xf32>
    %452 = arith.addf %450, %451 : vector<8x32xf32>
    %453 = math.tanh %452 : vector<8x32xf32>
    %454 = arith.mulf %449, %453 : vector<8x32xf32>
    %455 = arith.index_cast %395 : i32 to index
    %c0_103 = arith.constant 0 : index
    %456 = vector.load %arg14[%455, %c0_103] : memref<64x32xf32, #tpu.memory_space<vmem>>, vector<8x32xf32>
    tpu.vector_store %arg14[%455, %c0_103], %454 {strides = array<i32>} : memref<64x32xf32, #tpu.memory_space<vmem>>, vector<8x32xf32>,
    %c7_i32 = arith.constant 7 : i32
    %c8_i32_104 = arith.constant 8 : i32
    %457 = arith.muli %c7_i32, %c8_i32_104 : i32
    %458 = tpu.assume_multiple %457, 8 : i32
    %459 = arith.index_cast %458 : i32 to index
    %c0_105 = arith.constant 0 : index
    %460 = vector.load %arg13[%459, %c0_105] : memref<64x128xf32, #tpu.memory_space<vmem>>, vector<8x128xf32>
    %cst_106 = arith.constant dense<0.000000e+00> : vector<8x128xf32>
    %461 = tpu.matmul %424, %11, %cst_106 {dimension_numbers = #tpu.dot_dimension_numbers<[1], [0], [0], [1], [0, 0, 1, 1], [], []>} : vector<8x32xf32>, vector<32x128xf32>, vector<8x128xf32> -> vector<8x128xf32>
    %462 = arith.addf %460, %461 : vector<8x128xf32>
    %463 = vector.extract_strided_slice %462 {offsets = [0, 0], sizes = [8, 32], strides = [1, 1]} : vector<8x128xf32> to vector<8x32xf32>
    %464 = arith.negf %463 : vector<8x32xf32>
    %465 = math.exp %464 : vector<8x32xf32>
    %cst_107 = arith.constant 1.000000e+00 : f32
    %466 = vector.broadcast %cst_107 : f32 to vector<8x32xf32>
    %467 = arith.addf %466, %465 : vector<8x32xf32>
    %468 = arith.divf %466, %467 : vector<8x32xf32>
    %469 = vector.extract_strided_slice %462 {offsets = [0, 32], sizes = [8, 32], strides = [1, 1]} : vector<8x128xf32> to vector<8x32xf32>
    %470 = arith.negf %469 : vector<8x32xf32>
    %471 = math.exp %470 : vector<8x32xf32>
    %cst_108 = arith.constant 1.000000e+00 : f32
    %472 = vector.broadcast %cst_108 : f32 to vector<8x32xf32>
    %473 = arith.addf %472, %471 : vector<8x32xf32>
    %474 = arith.divf %472, %473 : vector<8x32xf32>
    %475 = vector.extract_strided_slice %462 {offsets = [0, 64], sizes = [8, 32], strides = [1, 1]} : vector<8x128xf32> to vector<8x32xf32>
    %476 = math.tanh %475 : vector<8x32xf32>
    %477 = vector.extract_strided_slice %462 {offsets = [0, 96], sizes = [8, 32], strides = [1, 1]} : vector<8x128xf32> to vector<8x32xf32>
    %478 = arith.negf %477 : vector<8x32xf32>
    %479 = math.exp %478 : vector<8x32xf32>
    %cst_109 = arith.constant 1.000000e+00 : f32
    %480 = vector.broadcast %cst_109 : f32 to vector<8x32xf32>
    %481 = arith.addf %480, %479 : vector<8x32xf32>
    %482 = arith.divf %480, %481 : vector<8x32xf32>
    %483 = arith.mulf %474, %422 : vector<8x32xf32>
    %484 = arith.mulf %468, %476 : vector<8x32xf32>
    %485 = arith.addf %483, %484 : vector<8x32xf32>
    %486 = math.tanh %485 : vector<8x32xf32>
    %487 = arith.mulf %482, %486 : vector<8x32xf32>
    %cst_110 = arith.constant dense<0.000000e+00> : vector<8x128xf32>
    %488 = tpu.matmul %487, %12, %cst_110 {dimension_numbers = #tpu.dot_dimension_numbers<[1], [0], [0], [1], [0, 0, 1, 1], [], []>} : vector<8x32xf32>, vector<32x128xf32>, vector<8x128xf32> -> vector<8x128xf32>
    %cst_111 = arith.constant dense<0.000000e+00> : vector<8x128xf32>
    %489 = tpu.matmul %454, %13, %cst_111 {dimension_numbers = #tpu.dot_dimension_numbers<[1], [0], [0], [1], [0, 0, 1, 1], [], []>} : vector<8x32xf32>, vector<32x128xf32>, vector<8x128xf32> -> vector<8x128xf32>
    %490 = arith.addf %488, %489 : vector<8x128xf32>
    %491 = vector.broadcast %14 : vector<1x128xf32> to vector<8x128xf32>
    %492 = arith.addf %490, %491 : vector<8x128xf32>
    %493 = vector.extract_strided_slice %492 {offsets = [0, 0], sizes = [8, 32], strides = [1, 1]} : vector<8x128xf32> to vector<8x32xf32>
    %494 = arith.negf %493 : vector<8x32xf32>
    %495 = math.exp %494 : vector<8x32xf32>
    %cst_112 = arith.constant 1.000000e+00 : f32
    %496 = vector.broadcast %cst_112 : f32 to vector<8x32xf32>
    %497 = arith.addf %496, %495 : vector<8x32xf32>
    %498 = arith.divf %496, %497 : vector<8x32xf32>
    %499 = vector.extract_strided_slice %492 {offsets = [0, 32], sizes = [8, 32], strides = [1, 1]} : vector<8x128xf32> to vector<8x32xf32>
    %500 = arith.negf %499 : vector<8x32xf32>
    %501 = math.exp %500 : vector<8x32xf32>
    %cst_113 = arith.constant 1.000000e+00 : f32
    %502 = vector.broadcast %cst_113 : f32 to vector<8x32xf32>
    %503 = arith.addf %502, %501 : vector<8x32xf32>
    %504 = arith.divf %502, %503 : vector<8x32xf32>
    %505 = vector.extract_strided_slice %492 {offsets = [0, 64], sizes = [8, 32], strides = [1, 1]} : vector<8x128xf32> to vector<8x32xf32>
    %506 = math.tanh %505 : vector<8x32xf32>
    %507 = vector.extract_strided_slice %492 {offsets = [0, 96], sizes = [8, 32], strides = [1, 1]} : vector<8x128xf32> to vector<8x32xf32>
    %508 = arith.negf %507 : vector<8x32xf32>
    %509 = math.exp %508 : vector<8x32xf32>
    %cst_114 = arith.constant 1.000000e+00 : f32
    %510 = vector.broadcast %cst_114 : f32 to vector<8x32xf32>
    %511 = arith.addf %510, %509 : vector<8x32xf32>
    %512 = arith.divf %510, %511 : vector<8x32xf32>
    %513 = arith.mulf %504, %452 : vector<8x32xf32>
    %514 = arith.mulf %498, %506 : vector<8x32xf32>
    %515 = arith.addf %513, %514 : vector<8x32xf32>
    %516 = math.tanh %515 : vector<8x32xf32>
    %517 = arith.mulf %512, %516 : vector<8x32xf32>
    %518 = arith.index_cast %458 : i32 to index
    %c0_115 = arith.constant 0 : index
    %519 = vector.load %arg14[%518, %c0_115] : memref<64x32xf32, #tpu.memory_space<vmem>>, vector<8x32xf32>
    tpu.vector_store %arg14[%518, %c0_115], %517 {strides = array<i32>} : memref<64x32xf32, #tpu.memory_space<vmem>>, vector<8x32xf32>,
    %c8_i32_116 = arith.constant 8 : i32
    %c0_117 = arith.constant 0 : index
    %c0_118 = arith.constant 0 : index
    %520 = vector.load %arg14[%c0_117, %c0_118] : memref<64x32xf32, #tpu.memory_space<vmem>>, vector<64x32xf32>
    %c0_119 = arith.constant 0 : index
    %c0_120 = arith.constant 0 : index
    %521 = vector.load %arg10[%c0_119, %c0_120] : memref<32x128xf32, #tpu.memory_space<vmem>>, vector<32x128xf32>
    %cst_121 = arith.constant dense<0.000000e+00> : vector<64x128xf32>
    %522 = tpu.matmul %520, %521, %cst_121 {dimension_numbers = #tpu.dot_dimension_numbers<[1], [0], [0], [1], [0, 0, 1, 1], [], []>} : vector<64x32xf32>, vector<32x128xf32>, vector<64x128xf32> -> vector<64x128xf32>
    %c0_122 = arith.constant 0 : index
    %c0_123 = arith.constant 0 : index
    %523 = vector.load %arg11[%c0_122, %c0_123] : memref<1x128xf32, #tpu.memory_space<vmem>>, vector<1x128xf32>
    %524 = vector.broadcast %523 : vector<1x128xf32> to vector<64x128xf32>
    %525 = arith.addf %522, %524 : vector<64x128xf32>
    %c0_124 = arith.constant 0 : index
    %c0_125 = arith.constant 0 : index
    %526 = vector.load %arg2[%c0_124, %c0_125] : memref<64x1xf32, #tpu.memory_space<vmem>>, vector<64x1xf32>
    %527 = vector.broadcast %526 : vector<64x1xf32> to vector<64x128xf32>
    %528 = arith.mulf %525, %527 : vector<64x128xf32>
    %c0_126 = arith.constant 0 : index
    %c0_127 = arith.constant 0 : index
    %529 = vector.load %arg12[%c0_126, %c0_127] : memref<64x128xf32, #tpu.memory_space<vmem>>, vector<64x128xf32>
    tpu.vector_store %arg12[%c0_126, %c0_127], %528 {strides = array<i32>} : memref<64x128xf32, #tpu.memory_space<vmem>>, vector<64x128xf32>,
    return
  }
}

</mosaic_0001>

<llo_original>
// kernel: encoding_forward.1
$region0: #{encoding_forward.1}
  #allocation0 [shape = 'u32[]', space=smem, size = 0x4, offset = 0x4, fixed_abs, tag = 'smem constant byte address 0x4 - core index']
  #allocation1 [shape = 'u32[144,128]{1,0:T(1,128)}', space=vmem, size = 0x12000, scoped, tag = 'internal scratch']
  #allocation2 [shape = 'f32[64,128]{1,0:T(8,128)}', space=vmem, size = 0x8000, scoped, tag = 'scratch operand']
  #allocation3 [shape = 'f32[64,32]{1,0:T(8,128)}', space=vmem, size = 0x8000, scoped, tag = 'scratch operand']
  %s0 = inlined_call_operand.vmem [shape: f32[64,12], index: 0, kind: input, shape index: {}]
  %s1 = inlined_call_operand.vmem [shape: f32[64,10], index: 1, kind: input, shape index: {}]
  %s2 = inlined_call_operand.vmem [shape: f32[64,1], index: 2, kind: input, shape index: {}]
  %s3 = inlined_call_operand.vmem [shape: f32[12,128], index: 3, kind: input, shape index: {}]
  %s4 = inlined_call_operand.vmem [shape: f32[10,128], index: 4, kind: input, shape index: {}]
  %s5 = inlined_call_operand.vmem [shape: f32[1,128], index: 5, kind: input, shape index: {}]
  %s6 = inlined_call_operand.vmem [shape: f32[32,128], index: 6, kind: input, shape index: {}]
  %s7 = inlined_call_operand.vmem [shape: f32[32,128], index: 7, kind: input, shape index: {}]
  %s8 = inlined_call_operand.vmem [shape: f32[32,128], index: 8, kind: input, shape index: {}]
  %s9 = inlined_call_operand.vmem [shape: f32[1,128], index: 9, kind: input, shape index: {}]
  %s10 = inlined_call_operand.vmem [shape: f32[32,128], index: 10, kind: input, shape index: {}]
  %s11 = inlined_call_operand.vmem [shape: f32[1,128], index: 11, kind: input, shape index: {}]
  %s12 = inlined_call_operand.vmem [shape: f32[64,128], index: 12, kind: output, shape index: {}]
  %s13 = sld [smem:[#allocation0]]
  $region58: #{encoding_forward.1} parent=0
    _
  %s15 = ssub.s32 1, %s13
  %s16 = scalar_select 0, %s15, %s13
  // Predicated region
  $region2: #{encoding_forward.1} parent=0 // pred_check
    _
  $region3: #{encoding_forward.1} parent=0 // pred_check_branch
    %18 = sbr.rel (0) target = $region5
  $region4: #{encoding_forward.1} parent=0 // pred_region
    _
  $region5: #{encoding_forward.1} parent=0 // pred_fallthru
    _
  // Predicated region
  $region6: #{encoding_forward.1} parent=0 // pred_check
    _
  $region7: #{encoding_forward.1} parent=0 // pred_check_branch
    %20 = sbr.rel (0) target = $region9
  $region8: #{encoding_forward.1} parent=0 // pred_region
    _
  $region9: #{encoding_forward.1} parent=0 // pred_fallthru
    _
  // Predicated region
  $region10: #{encoding_forward.1} parent=0 // pred_check
    _
  $region11: #{encoding_forward.1} parent=0 // pred_check_branch
    %22 = sbr.rel (0) target = $region13
  $region12: #{encoding_forward.1} parent=0 // pred_region
    _
  $region13: #{encoding_forward.1} parent=0 // pred_fallthru
    _
  // Predicated region
  $region14: #{encoding_forward.1} parent=0 // pred_check
    _
  $region15: #{encoding_forward.1} parent=0 // pred_check_branch
    %24 = sbr.rel (0) target = $region17
  $region16: #{encoding_forward.1} parent=0 // pred_region
    _
  $region17: #{encoding_forward.1} parent=0 // pred_fallthru
    _
  // Predicated region
  $region18: #{encoding_forward.1} parent=0 // pred_check
    _
  $region19: #{encoding_forward.1} parent=0 // pred_check_branch
    %26 = sbr.rel (0) target = $region21
  $region20: #{encoding_forward.1} parent=0 // pred_region
    _
  $region21: #{encoding_forward.1} parent=0 // pred_fallthru
    _
  // Predicated region
  $region22: #{encoding_forward.1} parent=0 // pred_check
    _
  $region23: #{encoding_forward.1} parent=0 // pred_check_branch
    %28 = sbr.rel (0) target = $region25
  $region24: #{encoding_forward.1} parent=0 // pred_region
    _
  $region25: #{encoding_forward.1} parent=0 // pred_fallthru
    _
  // Predicated region
  $region26: #{encoding_forward.1} parent=0 // pred_check
    _
  $region27: #{encoding_forward.1} parent=0 // pred_check_branch
    %30 = sbr.rel (0) target = $region29
  $region28: #{encoding_forward.1} parent=0 // pred_region
    _
  $region29: #{encoding_forward.1} parent=0 // pred_fallthru
    _
  // Predicated region
  $region30: #{encoding_forward.1} parent=0 // pred_check
    _
  $region31: #{encoding_forward.1} parent=0 // pred_check_branch
    %32 = sbr.rel (0) target = $region33
  $region32: #{encoding_forward.1} parent=0 // pred_region
    _
  $region33: #{encoding_forward.1} parent=0 // pred_fallthru
    _
  // Predicated region
  $region34: #{encoding_forward.1} parent=0 // pred_check
    _
  $region35: #{encoding_forward.1} parent=0 // pred_check_branch
    %34 = sbr.rel (0) target = $region37
  $region36: #{encoding_forward.1} parent=0 // pred_region
    _
  $region37: #{encoding_forward.1} parent=0 // pred_fallthru
    _
  // Predicated region
  $region38: #{encoding_forward.1} parent=0 // pred_check
    _
  $region39: #{encoding_forward.1} parent=0 // pred_check_branch
    %36 = sbr.rel (0) target = $region41
  $region40: #{encoding_forward.1} parent=0 // pred_region
    _
  $region41: #{encoding_forward.1} parent=0 // pred_fallthru
    _
  // Predicated region
  $region42: #{encoding_forward.1} parent=0 // pred_check
    _
  $region43: #{encoding_forward.1} parent=0 // pred_check_branch
    %38 = sbr.rel (0) target = $region45
  $region44: #{encoding_forward.1} parent=0 // pred_region
    _
  $region45: #{encoding_forward.1} parent=0 // pred_fallthru
    _
  // Predicated region
  $region46: #{encoding_forward.1} parent=0 // pred_check
    _
  $region47: #{encoding_forward.1} parent=0 // pred_check_branch
    %40 = sbr.rel (0) target = $region49
  $region48: #{encoding_forward.1} parent=0 // pred_region
    _
  $region49: #{encoding_forward.1} parent=0 // pred_fallthru
    _
  %v41 = vld [vmem:[%s0] sm:$0xff]
  %v42 = vld [vmem:[%s0 + $0x8] sm:$0xff]
  %v43 = vld [vmem:[%s0 + $0x10] sm:$0xff]
  %v44 = vld [vmem:[%s0 + $0x18] sm:$0xff]
  %v45 = vld [vmem:[%s0 + $0x20] sm:$0xff]
  %v46 = vld [vmem:[%s0 + $0x28] sm:$0xff]
  %v47 = vld [vmem:[%s0 + $0x30] sm:$0xff]
  %v48 = vld [vmem:[%s0 + $0x38] sm:$0xff]
  %v49 = vld [vmem:[%s3] sm:$0xff]
  %v50 = vld [vmem:[%s3 + $0x8] sm:$0xf]
  %v51 = vld [vmem:[%s1] sm:$0xff]
  %v52 = vld [vmem:[%s1 + $0x8] sm:$0xff]
  %v53 = vld [vmem:[%s1 + $0x10] sm:$0xff]
  %v54 = vld [vmem:[%s1 + $0x18] sm:$0xff]
  %v55 = vld [vmem:[%s1 + $0x20] sm:$0xff]
  %v56 = vld [vmem:[%s1 + $0x28] sm:$0xff]
  %v57 = vld [vmem:[%s1 + $0x30] sm:$0xff]
  %v58 = vld [vmem:[%s1 + $0x38] sm:$0xff]
  %v59 = vld [vmem:[%s4] sm:$0xff]
  %v60 = vld [vmem:[%s4 + $0x8] sm:$0x3]
  %vm61 = vcmask 80896
  %v63 = vsel %vm61, %v51, 0
  %v66 = vsel %vm61, %v52, 0
  %v69 = vsel %vm61, %v53, 0
  %v72 = vsel %vm61, %v54, 0
  %v75 = vsel %vm61, %v55, 0
  %v78 = vsel %vm61, %v56, 0
  %v81 = vsel %vm61, %v57, 0
  %v84 = vsel %vm61, %v58, 0
  %vm86 = vcmask 1041408
  %v88 = vsel %vm86, %v60, 0
  %90 = vmatprep.subr.mxu0 0.0
  %91 = vmatpush1.msra.mxu0 0.0
  %92 = vmatprep.subr.mxu0 0.0
  %93 = vmatpush1.msra.mxu0 0.0
  %94 = vmatprep.subr.mxu0 0.0
  %95 = vmatpush1.msra.mxu0 0.0
  %96 = vmatprep.subr.mxu0 0.0
  %97 = vmatpush1.msra.mxu0 0.0
  %98 = vmatprep.subr.mxu0 0.0
  %99 = vmatpush1.msra.mxu0 0.0
  %100 = vmatprep.subr.mxu0 0.0
  %101 = vmatpush1.msra.mxu0 0.0
  %102 = vmatprep.subr.mxu0 0.0
  %103 = vmatpush1.msra.mxu0 0.0
  %104 = vmatprep.subr.mxu0 0.0
  %105 = vmatpush1.msra.mxu0 0.0
  %106 = vmatprep.subr.mxu0 0.0
  %107 = vmatpush1.msra.mxu0 0.0
  %108 = vmatprep.subr.mxu0 0.0
  %109 = vmatpush1.msra.mxu0 0.0
  %110 = vmatprep.subr.mxu0 0.0
  %111 = vmatpush1.msra.mxu0 0.0
  %112 = vmatprep.subr.mxu0 0.0
  %113 = vmatpush1.msra.mxu0 0.0
  %114 = vmatprep.subr.mxu0 0.0
  %115 = vmatpush1.msra.mxu0 0.0
  %116 = vmatprep.subr.mxu0 0.0
  %117 = vmatpush1.msra.mxu0 0.0
  %118 = vmatprep.subr.mxu0 0.0
  %119 = vmatpush1.msra.mxu0 %v88
  %120 = vmatprep.subr.mxu0 0.0
  %121 = vmatpush1.msra.mxu0 %v59
  %122 = vmatprep.subr.mxu0 0.0
  %123 = vmatpush2.msra.mxu0 0.0
  %124 = vmatprep.subr.mxu0 0.0
  %125 = vmatpush2.msra.mxu0 0.0
  %126 = vmatprep.subr.mxu0 0.0
  %127 = vmatpush2.msra.mxu0 0.0
  %128 = vmatprep.subr.mxu0 0.0
  %129 = vmatpush2.msra.mxu0 0.0
  %130 = vmatprep.subr.mxu0 0.0
  %131 = vmatpush2.msra.mxu0 0.0
  %132 = vmatprep.subr.mxu0 0.0
  %133 = vmatpush2.msra.mxu0 0.0
  %134 = vmatprep.subr.mxu0 0.0
  %135 = vmatpush2.msra.mxu0 0.0
  %136 = vmatprep.subr.mxu0 0.0
  %137 = vmatpush2.msra.mxu0 0.0
  %138 = vmatprep.subr.mxu0 0.0
  %139 = vmatpush2.msra.mxu0 0.0
  %140 = vmatprep.subr.mxu0 0.0
  %141 = vmatpush2.msra.mxu0 0.0
  %142 = vmatprep.subr.mxu0 0.0
  %143 = vmatpush2.msra.mxu0 0.0
  %144 = vmatprep.subr.mxu0 0.0
  %145 = vmatpush2.msra.mxu0 0.0
  %146 = vmatprep.subr.mxu0 0.0
  %147 = vmatpush2.msra.mxu0 0.0
  %148 = vmatprep.subr.mxu0 0.0
  %149 = vmatpush2.msra.mxu0 0.0
  %150 = vmatprep.subr.mxu0 0.0
  %151 = vmatpush2.msra.mxu0 0.0
  %152 = vmatprep.subr.mxu0 0.0
  %153 = vmatpush2.msra.mxu0 0.0
  %154 = vmatprep.mubr.f32.mxu0 0.0
  %155 = vmatmul.mubr.f32.gmra.mxu0 %v63
  %v156 = vpop.f32.mrf.mxu0
  %v157 = vadd.f32 0.0, %v156
  %v158 = vpop.f32.mrf.mxu0
  %159 = vmatprep.mubr.f32.mxu0 0.0
  %160 = vmatmul.mubr.f32.gmra.mxu0 %v66
  %v161 = vpop.f32.mrf.mxu0
  %v162 = vadd.f32 0.0, %v161
  %v163 = vpop.f32.mrf.mxu0
  %164 = vmatprep.mubr.f32.mxu0 0.0
  %165 = vmatmul.mubr.f32.gmra.mxu0 %v69
  %v166 = vpop.f32.mrf.mxu0
  %v167 = vadd.f32 0.0, %v166
  %v168 = vpop.f32.mrf.mxu0
  %169 = vmatprep.mubr.f32.mxu0 0.0
  %170 = vmatmul.mubr.f32.gmra.mxu0 %v72
  %v171 = vpop.f32.mrf.mxu0
  %v172 = vadd.f32 0.0, %v171
  %v173 = vpop.f32.mrf.mxu0
  %174 = vmatprep.mubr.f32.mxu0 0.0
  %175 = vmatmul.mubr.f32.gmra.mxu0 %v75
  %v176 = vpop.f32.mrf.mxu0
  %v177 = vadd.f32 0.0, %v176
  %v178 = vpop.f32.mrf.mxu0
  %179 = vmatprep.mubr.f32.mxu0 0.0
  %180 = vmatmul.mubr.f32.gmra.mxu0 %v78
  %v181 = vpop.f32.mrf.mxu0
  %v182 = vadd.f32 0.0, %v181
  %v183 = vpop.f32.mrf.mxu0
  %184 = vmatprep.mubr.f32.mxu0 0.0
  %185 = vmatmul.mubr.f32.gmra.mxu0 %v81
  %v186 = vpop.f32.mrf.mxu0
  %v187 = vadd.f32 0.0, %v186
  %v188 = vpop.f32.mrf.mxu0
  %189 = vmatprep.mubr.f32.mxu0 0.0
  %190 = vmatmul.mubr.f32.gmra.mxu0 %v84
  %v191 = vpop.f32.mrf.mxu0
  %v192 = vadd.f32 0.0, %v191
  %v193 = vpop.f32.mrf.mxu0
  %194 = vdwg.mxu0
  %vm195 = vcmask 97280
  %v197 = vsel %vm195, %v41, 0
  %v200 = vsel %vm195, %v42, 0
  %v203 = vsel %vm195, %v43, 0
  %v206 = vsel %vm195, %v44, 0
  %v209 = vsel %vm195, %v45, 0
  %v212 = vsel %vm195, %v46, 0
  %v215 = vsel %vm195, %v47, 0
  %v218 = vsel %vm195, %v48, 0
  %vm220 = vcmask 1043456
  %v222 = vsel %vm220, %v50, 0
  %224 = vmatprep.subr.mxu0 0.0
  %225 = vmatpush1.msra.mxu0 0.0
  %226 = vmatprep.subr.mxu0 0.0
  %227 = vmatpush1.msra.mxu0 0.0
  %228 = vmatprep.subr.mxu0 0.0
  %229 = vmatpush1.msra.mxu0 0.0
  %230 = vmatprep.subr.mxu0 0.0
  %231 = vmatpush1.msra.mxu0 0.0
  %232 = vmatprep.subr.mxu0 0.0
  %233 = vmatpush1.msra.mxu0 0.0
  %234 = vmatprep.subr.mxu0 0.0
  %235 = vmatpush1.msra.mxu0 0.0
  %236 = vmatprep.subr.mxu0 0.0
  %237 = vmatpush1.msra.mxu0 0.0
  %238 = vmatprep.subr.mxu0 0.0
  %239 = vmatpush1.msra.mxu0 0.0
  %240 = vmatprep.subr.mxu0 0.0
  %241 = vmatpush1.msra.mxu0 0.0
  %242 = vmatprep.subr.mxu0 0.0
  %243 = vmatpush1.msra.mxu0 0.0
  %244 = vmatprep.subr.mxu0 0.0
  %245 = vmatpush1.msra.mxu0 0.0
  %246 = vmatprep.subr.mxu0 0.0
  %247 = vmatpush1.msra.mxu0 0.0
  %248 = vmatprep.subr.mxu0 0.0
  %249 = vmatpush1.msra.mxu0 0.0
  %250 = vmatprep.subr.mxu0 0.0
  %251 = vmatpush1.msra.mxu0 0.0
  %252 = vmatprep.subr.mxu0 0.0
  %253 = vmatpush1.msra.mxu0 %v222
  %254 = vmatprep.subr.mxu0 0.0
  %255 = vmatpush1.msra.mxu0 %v49
  %256 = vmatprep.subr.mxu0 0.0
  %257 = vmatpush2.msra.mxu0 0.0
  %258 = vmatprep.subr.mxu0 0.0
  %259 = vmatpush2.msra.mxu0 0.0
  %260 = vmatprep.subr.mxu0 0.0
  %261 = vmatpush2.msra.mxu0 0.0
  %262 = vmatprep.subr.mxu0 0.0
  %263 = vmatpush2.msra.mxu0 0.0
  %264 = vmatprep.subr.mxu0 0.0
  %265 = vmatpush2.msra.mxu0 0.0
  %266 = vmatprep.subr.mxu0 0.0
  %267 = vmatpush2.msra.mxu0 0.0
  %268 = vmatprep.subr.mxu0 0.0
  %269 = vmatpush2.msra.mxu0 0.0
  %270 = vmatprep.subr.mxu0 0.0
  %271 = vmatpush2.msra.mxu0 0.0
  %272 = vmatprep.subr.mxu0 0.0
  %273 = vmatpush2.msra.mxu0 0.0
  %274 = vmatprep.subr.mxu0 0.0
  %275 = vmatpush2.msra.mxu0 0.0
  %276 = vmatprep.subr.mxu0 0.0
  %277 = vmatpush2.msra.mxu0 0.0
  %278 = vmatprep.subr.mxu0 0.0
  %279 = vmatpush2.msra.mxu0 0.0
  %280 = vmatprep.subr.mxu0 0.0
  %281 = vmatpush2.msra.mxu0 0.0
  %282 = vmatprep.subr.mxu0 0.0
  %283 = vmatpush2.msra.mxu0 0.0
  %284 = vmatprep.subr.mxu0 0.0
  %285 = vmatpush2.msra.mxu0 0.0
  %286 = vmatprep.subr.mxu0 0.0
  %287 = vmatpush2.msra.mxu0 0.0
  %288 = vmatprep.mubr.f32.mxu0 0.0
  %289 = vmatmul.mubr.f32.gmra.mxu0 %v197
  %v290 = vpop.f32.mrf.mxu0
  %v291 = vadd.f32 %v157, %v290
  %v292 = vpop.f32.mrf.mxu0
  %293 = vmatprep.mubr.f32.mxu0 0.0
  %294 = vmatmul.mubr.f32.gmra.mxu0 %v200
  %v295 = vpop.f32.mrf.mxu0
  %v296 = vadd.f32 %v162, %v295
  %v297 = vpop.f32.mrf.mxu0
  %298 = vmatprep.mubr.f32.mxu0 0.0
  %299 = vmatmul.mubr.f32.gmra.mxu0 %v203
  %v300 = vpop.f32.mrf.mxu0
  %v301 = vadd.f32 %v167, %v300
  %v302 = vpop.f32.mrf.mxu0
  %303 = vmatprep.mubr.f32.mxu0 0.0
  %304 = vmatmul.mubr.f32.gmra.mxu0 %v206
  %v305 = vpop.f32.mrf.mxu0
  %v306 = vadd.f32 %v172, %v305
  %v307 = vpop.f32.mrf.mxu0
  %308 = vmatprep.mubr.f32.mxu0 0.0
  %309 = vmatmul.mubr.f32.gmra.mxu0 %v209
  %v310 = vpop.f32.mrf.mxu0
  %v311 = vadd.f32 %v177, %v310
  %v312 = vpop.f32.mrf.mxu0
  %313 = vmatprep.mubr.f32.mxu0 0.0
  %314 = vmatmul.mubr.f32.gmra.mxu0 %v212
  %v315 = vpop.f32.mrf.mxu0
  %v316 = vadd.f32 %v182, %v315
  %v317 = vpop.f32.mrf.mxu0
  %318 = vmatprep.mubr.f32.mxu0 0.0
  %319 = vmatmul.mubr.f32.gmra.mxu0 %v215
  %v320 = vpop.f32.mrf.mxu0
  %v321 = vadd.f32 %v187, %v320
  %v322 = vpop.f32.mrf.mxu0
  %323 = vmatprep.mubr.f32.mxu0 0.0
  %324 = vmatmul.mubr.f32.gmra.mxu0 %v218
  %v325 = vpop.f32.mrf.mxu0
  %v326 = vadd.f32 %v192, %v325
  %v327 = vpop.f32.mrf.mxu0
  %328 = vdwg.mxu0
  %v329 = vld [vmem:[%s5] sm:$0x1]
  %v331 = vlaneseq
  %v332 = vshrl.u32 %v331, 7
  %v333 = vsub.s32 0, %v332
  %v334 = vrot.slane %v329, %v333
  %v336 = vadd.f32 %v291, %v334
  %v337 = vadd.f32 %v296, %v334
  %v338 = vadd.f32 %v301, %v334
  %v339 = vadd.f32 %v306, %v334
  %v340 = vadd.f32 %v311, %v334
  %v341 = vadd.f32 %v316, %v334
  %v342 = vadd.f32 %v321, %v334
  %v343 = vadd.f32 %v326, %v334
  %344 = vst [vmem:[#allocation2] sm:$0xff] %v336
  %345 = vst [vmem:[#allocation2 + $0x8] sm:$0xff] %v337
  %346 = vst [vmem:[#allocation2 + $0x10] sm:$0xff] %v338
  %347 = vst [vmem:[#allocation2 + $0x18] sm:$0xff] %v339
  %348 = vst [vmem:[#allocation2 + $0x20] sm:$0xff] %v340
  %349 = vst [vmem:[#allocation2 + $0x28] sm:$0xff] %v341
  %350 = vst [vmem:[#allocation2 + $0x30] sm:$0xff] %v342
  %351 = vst [vmem:[#allocation2 + $0x38] sm:$0xff] %v343
  %v352 = vld [vmem:[%s6] sm:$0xff]
  %v353 = vld [vmem:[%s6 + $0x8] sm:$0xff]
  %v354 = vld [vmem:[%s6 + $0x10] sm:$0xff]
  %v355 = vld [vmem:[%s6 + $0x18] sm:$0xff]
  %v356 = vld [vmem:[%s7] sm:$0xff]
  %v357 = vld [vmem:[%s7 + $0x8] sm:$0xff]
  %v358 = vld [vmem:[%s7 + $0x10] sm:$0xff]
  %v359 = vld [vmem:[%s7 + $0x18] sm:$0xff]
  %v360 = vld [vmem:[%s8] sm:$0xff]
  %v361 = vld [vmem:[%s8 + $0x8] sm:$0xff]
  %v362 = vld [vmem:[%s8 + $0x10] sm:$0xff]
  %v363 = vld [vmem:[%s8 + $0x18] sm:$0xff]
  %v364 = vld [vmem:[%s9] sm:$0x1]
  %v365 = vld [vmem:[#allocation2] sm:$0xff]
  %vm366 = vcmask 261120
  %v368 = vsel %vm366, 0.0, 0
  %370 = vmatprep.subr.mxu0 0.0
  %371 = vmatpush1.msra.mxu0 0.0
  %372 = vmatprep.subr.mxu0 0.0
  %373 = vmatpush1.msra.mxu0 0.0
  %374 = vmatprep.subr.mxu0 0.0
  %375 = vmatpush1.msra.mxu0 0.0
  %376 = vmatprep.subr.mxu0 0.0
  %377 = vmatpush1.msra.mxu0 0.0
  %378 = vmatprep.subr.mxu0 0.0
  %379 = vmatpush1.msra.mxu0 0.0
  %380 = vmatprep.subr.mxu0 0.0
  %381 = vmatpush1.msra.mxu0 0.0
  %382 = vmatprep.subr.mxu0 0.0
  %383 = vmatpush1.msra.mxu0 0.0
  %384 = vmatprep.subr.mxu0 0.0
  %385 = vmatpush1.msra.mxu0 0.0
  %386 = vmatprep.subr.mxu0 0.0
  %387 = vmatpush1.msra.mxu0 0.0
  %388 = vmatprep.subr.mxu0 0.0
  %389 = vmatpush1.msra.mxu0 0.0
  %390 = vmatprep.subr.mxu0 0.0
  %391 = vmatpush1.msra.mxu0 0.0
  %392 = vmatprep.subr.mxu0 0.0
  %393 = vmatpush1.msra.mxu0 0.0
  %394 = vmatprep.subr.mxu0 0.0
  %395 = vmatpush1.msra.mxu0 %v355
  %396 = vmatprep.subr.mxu0 0.0
  %397 = vmatpush1.msra.mxu0 %v354
  %398 = vmatprep.subr.mxu0 0.0
  %399 = vmatpush1.msra.mxu0 %v353
  %400 = vmatprep.subr.mxu0 0.0
  %401 = vmatpush1.msra.mxu0 %v352
  %402 = vmatprep.subr.mxu0 0.0
  %403 = vmatpush2.msra.mxu0 0.0
  %404 = vmatprep.subr.mxu0 0.0
  %405 = vmatpush2.msra.mxu0 0.0
  %406 = vmatprep.subr.mxu0 0.0
  %407 = vmatpush2.msra.mxu0 0.0
  %408 = vmatprep.subr.mxu0 0.0
  %409 = vmatpush2.msra.mxu0 0.0
  %410 = vmatprep.subr.mxu0 0.0
  %411 = vmatpush2.msra.mxu0 0.0
  %412 = vmatprep.subr.mxu0 0.0
  %413 = vmatpush2.msra.mxu0 0.0
  %414 = vmatprep.subr.mxu0 0.0
  %415 = vmatpush2.msra.mxu0 0.0
  %416 = vmatprep.subr.mxu0 0.0
  %417 = vmatpush2.msra.mxu0 0.0
  %418 = vmatprep.subr.mxu0 0.0
  %419 = vmatpush2.msra.mxu0 0.0
  %420 = vmatprep.subr.mxu0 0.0
  %421 = vmatpush2.msra.mxu0 0.0
  %422 = vmatprep.subr.mxu0 0.0
  %423 = vmatpush2.msra.mxu0 0.0
  %424 = vmatprep.subr.mxu0 0.0
  %425 = vmatpush2.msra.mxu0 0.0
  %426 = vmatprep.subr.mxu0 0.0
  %427 = vmatpush2.msra.mxu0 0.0
  %428 = vmatprep.subr.mxu0 0.0
  %429 = vmatpush2.msra.mxu0 0.0
  %430 = vmatprep.subr.mxu0 0.0
  %431 = vmatpush2.msra.mxu0 0.0
  %432 = vmatprep.subr.mxu0 0.0
  %433 = vmatpush2.msra.mxu0 0.0
  %434 = vmatprep.mubr.f32.mxu0 0.0
  %435 = vmatmul.mubr.f32.gmra.mxu0 %v368
  %v436 = vpop.f32.mrf.mxu0
  %v437 = vadd.f32 0.0, %v436
  %v438 = vpop.f32.mrf.mxu0
  %439 = vdwg.mxu0
  %v440 = vadd.f32 %v365, %v437
  %v441 = vxor.u32 %v440, 2147483648
  %v442 = vmul.f32 %v441, 1.442695
  %v443 = vpow.pop %v442
  %v444 = vadd.f32 %v443, 1.0
  %v445 = vrcp.pop %v444
  %v446 = vmul.f32 1.0, %v445
  %v447 = vtanh.pop %v440
  %v448 = vmul.f32 %v446, 0.0
  %450 = vrot.lane.b32.xlu0 %v447, 64
  %v451 = vpop.permute.xlu0 %450
  %v453 = vmul.f32 %v446, %v451
  %455 = vrot.lane.b32.xlu0 %v453, 32
  %v456 = vpop.permute.xlu0 %455
  %v458 = vadd.f32 %v448, %v456
  %v459 = vtanh.pop %v458
  %461 = vrot.lane.b32.xlu0 %v459, 64
  %v462 = vpop.permute.xlu0 %461
  %v464 = vmul.f32 %v446, %v462
  %465 = vmatprep.subr.mxu0 0.0
  %466 = vmatpush1.msra.mxu0 0.0
  %467 = vmatprep.subr.mxu0 0.0
  %468 = vmatpush1.msra.mxu0 0.0
  %469 = vmatprep.subr.mxu0 0.0
  %470 = vmatpush1.msra.mxu0 0.0
  %471 = vmatprep.subr.mxu0 0.0
  %472 = vmatpush1.msra.mxu0 0.0
  %473 = vmatprep.subr.mxu0 0.0
  %474 = vmatpush1.msra.mxu0 0.0
  %475 = vmatprep.subr.mxu0 0.0
  %476 = vmatpush1.msra.mxu0 0.0
  %477 = vmatprep.subr.mxu0 0.0
  %478 = vmatpush1.msra.mxu0 0.0
  %479 = vmatprep.subr.mxu0 0.0
  %480 = vmatpush1.msra.mxu0 0.0
  %481 = vmatprep.subr.mxu0 0.0
  %482 = vmatpush1.msra.mxu0 0.0
  %483 = vmatprep.subr.mxu0 0.0
  %484 = vmatpush1.msra.mxu0 0.0
  %485 = vmatprep.subr.mxu0 0.0
  %486 = vmatpush1.msra.mxu0 0.0
  %487 = vmatprep.subr.mxu0 0.0
  %488 = vmatpush1.msra.mxu0 0.0
  %489 = vmatprep.subr.mxu0 0.0
  %490 = vmatpush1.msra.mxu0 %v363
  %491 = vmatprep.subr.mxu0 0.0
  %492 = vmatpush1.msra.mxu0 %v362
  %493 = vmatprep.subr.mxu0 0.0
  %494 = vmatpush1.msra.mxu0 %v361
  %495 = vmatprep.subr.mxu0 0.0
  %496 = vmatpush1.msra.mxu0 %v360
  %497 = vmatprep.subr.mxu0 0.0
  %498 = vmatpush2.msra.mxu0 0.0
  %499 = vmatprep.subr.mxu0 0.0
  %500 = vmatpush2.msra.mxu0 0.0
  %501 = vmatprep.subr.mxu0 0.0
  %502 = vmatpush2.msra.mxu0 0.0
  %503 = vmatprep.subr.mxu0 0.0
  %504 = vmatpush2.msra.mxu0 0.0
  %505 = vmatprep.subr.mxu0 0.0
  %506 = vmatpush2.msra.mxu0 0.0
  %507 = vmatprep.subr.mxu0 0.0
  %508 = vmatpush2.msra.mxu0 0.0
  %509 = vmatprep.subr.mxu0 0.0
  %510 = vmatpush2.msra.mxu0 0.0
  %511 = vmatprep.subr.mxu0 0.0
  %512 = vmatpush2.msra.mxu0 0.0
  %513 = vmatprep.subr.mxu0 0.0
  %514 = vmatpush2.msra.mxu0 0.0
  %515 = vmatprep.subr.mxu0 0.0
  %516 = vmatpush2.msra.mxu0 0.0
  %517 = vmatprep.subr.mxu0 0.0
  %518 = vmatpush2.msra.mxu0 0.0
  %519 = vmatprep.subr.mxu0 0.0
  %520 = vmatpush2.msra.mxu0 0.0
  %521 = vmatprep.subr.mxu0 0.0
  %522 = vmatpush2.msra.mxu0 0.0
  %523 = vmatprep.subr.mxu0 0.0
  %524 = vmatpush2.msra.mxu0 0.0
  %525 = vmatprep.subr.mxu0 0.0
  %526 = vmatpush2.msra.mxu0 0.0
  %527 = vmatprep.subr.mxu0 0.0
  %528 = vmatpush2.msra.mxu0 0.0
  %529 = vmatprep.mubr.f32.mxu0 0.0
  %530 = vmatmul.mubr.f32.gmra.mxu0 %v368
  %v531 = vpop.f32.mrf.mxu0
  %v532 = vadd.f32 0.0, %v531
  %v533 = vpop.f32.mrf.mxu0
  %534 = vdwg.mxu0
  %536 = vrot.lane.b32.xlu0 %v464, 32
  %v537 = vpop.permute.xlu0 %536
  %v538 = vsel %vm366, %v537, 0
  %540 = vmatprep.subr.mxu0 0.0
  %541 = vmatpush1.msra.mxu0 0.0
  %542 = vmatprep.subr.mxu0 0.0
  %543 = vmatpush1.msra.mxu0 0.0
  %544 = vmatprep.subr.mxu0 0.0
  %545 = vmatpush1.msra.mxu0 0.0
  %546 = vmatprep.subr.mxu0 0.0
  %547 = vmatpush1.msra.mxu0 0.0
  %548 = vmatprep.subr.mxu0 0.0
  %549 = vmatpush1.msra.mxu0 0.0
  %550 = vmatprep.subr.mxu0 0.0
  %551 = vmatpush1.msra.mxu0 0.0
  %552 = vmatprep.subr.mxu0 0.0
  %553 = vmatpush1.msra.mxu0 0.0
  %554 = vmatprep.subr.mxu0 0.0
  %555 = vmatpush1.msra.mxu0 0.0
  %556 = vmatprep.subr.mxu0 0.0
  %557 = vmatpush1.msra.mxu0 0.0
  %558 = vmatprep.subr.mxu0 0.0
  %559 = vmatpush1.msra.mxu0 0.0
  %560 = vmatprep.subr.mxu0 0.0
  %561 = vmatpush1.msra.mxu0 0.0
  %562 = vmatprep.subr.mxu0 0.0
  %563 = vmatpush1.msra.mxu0 0.0
  %564 = vmatprep.subr.mxu0 0.0
  %565 = vmatpush1.msra.mxu0 %v359
  %566 = vmatprep.subr.mxu0 0.0
  %567 = vmatpush1.msra.mxu0 %v358
  %568 = vmatprep.subr.mxu0 0.0
  %569 = vmatpush1.msra.mxu0 %v357
  %570 = vmatprep.subr.mxu0 0.0
  %571 = vmatpush1.msra.mxu0 %v356
  %572 = vmatprep.subr.mxu0 0.0
  %573 = vmatpush2.msra.mxu0 0.0
  %574 = vmatprep.subr.mxu0 0.0
  %575 = vmatpush2.msra.mxu0 0.0
  %576 = vmatprep.subr.mxu0 0.0
  %577 = vmatpush2.msra.mxu0 0.0
  %578 = vmatprep.subr.mxu0 0.0
  %579 = vmatpush2.msra.mxu0 0.0
  %580 = vmatprep.subr.mxu0 0.0
  %581 = vmatpush2.msra.mxu0 0.0
  %582 = vmatprep.subr.mxu0 0.0
  %583 = vmatpush2.msra.mxu0 0.0
  %584 = vmatprep.subr.mxu0 0.0
  %585 = vmatpush2.msra.mxu0 0.0
  %586 = vmatprep.subr.mxu0 0.0
  %587 = vmatpush2.msra.mxu0 0.0
  %588 = vmatprep.subr.mxu0 0.0
  %589 = vmatpush2.msra.mxu0 0.0
  %590 = vmatprep.subr.mxu0 0.0
  %591 = vmatpush2.msra.mxu0 0.0
  %592 = vmatprep.subr.mxu0 0.0
  %593 = vmatpush2.msra.mxu0 0.0
  %594 = vmatprep.subr.mxu0 0.0
  %595 = vmatpush2.msra.mxu0 0.0
  %596 = vmatprep.subr.mxu0 0.0
  %597 = vmatpush2.msra.mxu0 0.0
  %598 = vmatprep.subr.mxu0 0.0
  %599 = vmatpush2.msra.mxu0 0.0
  %600 = vmatprep.subr.mxu0 0.0
  %601 = vmatpush2.msra.mxu0 0.0
  %602 = vmatprep.subr.mxu0 0.0
  %603 = vmatpush2.msra.mxu0 0.0
  %604 = vmatprep.mubr.f32.mxu0 0.0
  %605 = vmatmul.mubr.f32.gmra.mxu0 %v538
  %v606 = vpop.f32.mrf.mxu0
  %v607 = vadd.f32 %v532, %v606
  %v608 = vpop.f32.mrf.mxu0
  %609 = vdwg.mxu0
  %v611 = vlaneseq
  %v612 = vshrl.u32 %v611, 7
  %v613 = vsub.s32 0, %v612
  %v614 = vrot.slane %v364, %v613
  %v616 = vadd.f32 %v607, %v614
  %v617 = vxor.u32 %v616, 2147483648
  %v618 = vmul.f32 %v617, 1.442695
  %v619 = vpow.pop %v618
  %v620 = vadd.f32 %v619, 1.0
  %v621 = vrcp.pop %v620
  %v622 = vmul.f32 1.0, %v621
  %v623 = vtanh.pop %v616
  %v624 = vmul.f32 %v622, 0.0
  %626 = vrot.lane.b32.xlu0 %v623, 64
  %v627 = vpop.permute.xlu0 %626
  %v629 = vmul.f32 %v622, %v627
  %631 = vrot.lane.b32.xlu0 %v629, 32
  %v632 = vpop.permute.xlu0 %631
  %v634 = vadd.f32 %v624, %v632
  %v635 = vtanh.pop %v634
  %637 = vrot.lane.b32.xlu0 %v635, 64
  %v638 = vpop.permute.xlu0 %637
  %v640 = vmul.f32 %v622, %v638
  %642 = vrot.lane.b32.xlu0 %v640, 32
  %v643 = vpop.permute.xlu0 %642
  %645 = vst.msk [vmem:[#allocation3] sm:$0xff] %vm366, %v643
  %s646 = scalar_lea.vmem [#allocation2], 8
  %v647 = vld [vmem:[%s646] sm:$0xff]
  %648 = vmatprep.subr.mxu0 0.0
  %649 = vmatpush1.msra.mxu0 0.0
  %650 = vmatprep.subr.mxu0 0.0
  %651 = vmatpush1.msra.mxu0 0.0
  %652 = vmatprep.subr.mxu0 0.0
  %653 = vmatpush1.msra.mxu0 0.0
  %654 = vmatprep.subr.mxu0 0.0
  %655 = vmatpush1.msra.mxu0 0.0
  %656 = vmatprep.subr.mxu0 0.0
  %657 = vmatpush1.msra.mxu0 0.0
  %658 = vmatprep.subr.mxu0 0.0
  %659 = vmatpush1.msra.mxu0 0.0
  %660 = vmatprep.subr.mxu0 0.0
  %661 = vmatpush1.msra.mxu0 0.0
  %662 = vmatprep.subr.mxu0 0.0
  %663 = vmatpush1.msra.mxu0 0.0
  %664 = vmatprep.subr.mxu0 0.0
  %665 = vmatpush1.msra.mxu0 0.0
  %666 = vmatprep.subr.mxu0 0.0
  %667 = vmatpush1.msra.mxu0 0.0
  %668 = vmatprep.subr.mxu0 0.0
  %669 = vmatpush1.msra.mxu0 0.0
  %670 = vmatprep.subr.mxu0 0.0
  %671 = vmatpush1.msra.mxu0 0.0
  %672 = vmatprep.subr.mxu0 0.0
  %673 = vmatpush1.msra.mxu0 %v355
  %674 = vmatprep.subr.mxu0 0.0
  %675 = vmatpush1.msra.mxu0 %v354
  %676 = vmatprep.subr.mxu0 0.0
  %677 = vmatpush1.msra.mxu0 %v353
  %678 = vmatprep.subr.mxu0 0.0
  %679 = vmatpush1.msra.mxu0 %v352
  %680 = vmatprep.subr.mxu0 0.0
  %681 = vmatpush2.msra.mxu0 0.0
  %682 = vmatprep.subr.mxu0 0.0
  %683 = vmatpush2.msra.mxu0 0.0
  %684 = vmatprep.subr.mxu0 0.0
  %685 = vmatpush2.msra.mxu0 0.0
  %686 = vmatprep.subr.mxu0 0.0
  %687 = vmatpush2.msra.mxu0 0.0
  %688 = vmatprep.subr.mxu0 0.0
  %689 = vmatpush2.msra.mxu0 0.0
  %690 = vmatprep.subr.mxu0 0.0
  %691 = vmatpush2.msra.mxu0 0.0
  %692 = vmatprep.subr.mxu0 0.0
  %693 = vmatpush2.msra.mxu0 0.0
  %694 = vmatprep.subr.mxu0 0.0
  %695 = vmatpush2.msra.mxu0 0.0
  %696 = vmatprep.subr.mxu0 0.0
  %697 = vmatpush2.msra.mxu0 0.0
  %698 = vmatprep.subr.mxu0 0.0
  %699 = vmatpush2.msra.mxu0 0.0
  %700 = vmatprep.subr.mxu0 0.0
  %701 = vmatpush2.msra.mxu0 0.0
  %702 = vmatprep.subr.mxu0 0.0
  %703 = vmatpush2.msra.mxu0 0.0
  %704 = vmatprep.subr.mxu0 0.0
  %705 = vmatpush2.msra.mxu0 0.0
  %706 = vmatprep.subr.mxu0 0.0
  %707 = vmatpush2.msra.mxu0 0.0
  %708 = vmatprep.subr.mxu0 0.0
  %709 = vmatpush2.msra.mxu0 0.0
  %710 = vmatprep.subr.mxu0 0.0
  %711 = vmatpush2.msra.mxu0 0.0
  %712 = vmatprep.mubr.f32.mxu0 0.0
  %713 = vmatmul.mubr.f32.gmra.mxu0 %v538
  %v714 = vpop.f32.mrf.mxu0
  %v715 = vadd.f32 0.0, %v714
  %v716 = vpop.f32.mrf.mxu0
  %717 = vdwg.mxu0
  %v718 = vadd.f32 %v647, %v715
  %v719 = vxor.u32 %v718, 2147483648
  %v720 = vmul.f32 %v719, 1.442695
  %v721 = vpow.pop %v720
  %v722 = vadd.f32 %v721, 1.0
  %v723 = vrcp.pop %v722
  %v724 = vmul.f32 1.0, %v723
  %v725 = vtanh.pop %v718
  %v726 = vmul.f32 %v724, %v458
  %728 = vrot.lane.b32.xlu0 %v725, 64
  %v729 = vpop.permute.xlu0 %728
  %v731 = vmul.f32 %v724, %v729
  %733 = vrot.lane.b32.xlu0 %v731, 32
  %v734 = vpop.permute.xlu0 %733
  %v736 = vadd.f32 %v726, %v734
  %v737 = vtanh.pop %v736
  %739 = vrot.lane.b32.xlu0 %v737, 64
  %v740 = vpop.permute.xlu0 %739
  %v742 = vmul.f32 %v724, %v740
  %v743 = vsel %vm366, %v643, 0
  %745 = vmatprep.subr.mxu0 0.0
  %746 = vmatpush1.msra.mxu0 0.0
  %747 = vmatprep.subr.mxu0 0.0
  %748 = vmatpush1.msra.mxu0 0.0
  %749 = vmatprep.subr.mxu0 0.0
  %750 = vmatpush1.msra.mxu0 0.0
  %751 = vmatprep.subr.mxu0 0.0
  %752 = vmatpush1.msra.mxu0 0.0
  %753 = vmatprep.subr.mxu0 0.0
  %754 = vmatpush1.msra.mxu0 0.0
  %755 = vmatprep.subr.mxu0 0.0
  %756 = vmatpush1.msra.mxu0 0.0
  %757 = vmatprep.subr.mxu0 0.0
  %758 = vmatpush1.msra.mxu0 0.0
  %759 = vmatprep.subr.mxu0 0.0
  %760 = vmatpush1.msra.mxu0 0.0
  %761 = vmatprep.subr.mxu0 0.0
  %762 = vmatpush1.msra.mxu0 0.0
  %763 = vmatprep.subr.mxu0 0.0
  %764 = vmatpush1.msra.mxu0 0.0
  %765 = vmatprep.subr.mxu0 0.0
  %766 = vmatpush1.msra.mxu0 0.0
  %767 = vmatprep.subr.mxu0 0.0
  %768 = vmatpush1.msra.mxu0 0.0
  %769 = vmatprep.subr.mxu0 0.0
  %770 = vmatpush1.msra.mxu0 %v363
  %771 = vmatprep.subr.mxu0 0.0
  %772 = vmatpush1.msra.mxu0 %v362
  %773 = vmatprep.subr.mxu0 0.0
  %774 = vmatpush1.msra.mxu0 %v361
  %775 = vmatprep.subr.mxu0 0.0
  %776 = vmatpush1.msra.mxu0 %v360
  %777 = vmatprep.subr.mxu0 0.0
  %778 = vmatpush2.msra.mxu0 0.0
  %779 = vmatprep.subr.mxu0 0.0
  %780 = vmatpush2.msra.mxu0 0.0
  %781 = vmatprep.subr.mxu0 0.0
  %782 = vmatpush2.msra.mxu0 0.0
  %783 = vmatprep.subr.mxu0 0.0
  %784 = vmatpush2.msra.mxu0 0.0
  %785 = vmatprep.subr.mxu0 0.0
  %786 = vmatpush2.msra.mxu0 0.0
  %787 = vmatprep.subr.mxu0 0.0
  %788 = vmatpush2.msra.mxu0 0.0
  %789 = vmatprep.subr.mxu0 0.0
  %790 = vmatpush2.msra.mxu0 0.0
  %791 = vmatprep.subr.mxu0 0.0
  %792 = vmatpush2.msra.mxu0 0.0
  %793 = vmatprep.subr.mxu0 0.0
  %794 = vmatpush2.msra.mxu0 0.0
  %795 = vmatprep.subr.mxu0 0.0
  %796 = vmatpush2.msra.mxu0 0.0
  %797 = vmatprep.subr.mxu0 0.0
  %798 = vmatpush2.msra.mxu0 0.0
  %799 = vmatprep.subr.mxu0 0.0
  %800 = vmatpush2.msra.mxu0 0.0
  %801 = vmatprep.subr.mxu0 0.0
  %802 = vmatpush2.msra.mxu0 0.0
  %803 = vmatprep.subr.mxu0 0.0
  %804 = vmatpush2.msra.mxu0 0.0
  %805 = vmatprep.subr.mxu0 0.0
  %806 = vmatpush2.msra.mxu0 0.0
  %807 = vmatprep.subr.mxu0 0.0
  %808 = vmatpush2.msra.mxu0 0.0
  %809 = vmatprep.mubr.f32.mxu0 0.0
  %810 = vmatmul.mubr.f32.gmra.mxu0 %v743
  %v811 = vpop.f32.mrf.mxu0
  %v812 = vadd.f32 0.0, %v811
  %v813 = vpop.f32.mrf.mxu0
  %814 = vdwg.mxu0
  %816 = vrot.lane.b32.xlu0 %v742, 32
  %v817 = vpop.permute.xlu0 %816
  %v818 = vsel %vm366, %v817, 0
  %820 = vmatprep.subr.mxu0 0.0
  %821 = vmatpush1.msra.mxu0 0.0
  %822 = vmatprep.subr.mxu0 0.0
  %823 = vmatpush1.msra.mxu0 0.0
  %824 = vmatprep.subr.mxu0 0.0
  %825 = vmatpush1.msra.mxu0 0.0
  %826 = vmatprep.subr.mxu0 0.0
  %827 = vmatpush1.msra.mxu0 0.0
  %828 = vmatprep.subr.mxu0 0.0
  %829 = vmatpush1.msra.mxu0 0.0
  %830 = vmatprep.subr.mxu0 0.0
  %831 = vmatpush1.msra.mxu0 0.0
  %832 = vmatprep.subr.mxu0 0.0
  %833 = vmatpush1.msra.mxu0 0.0
  %834 = vmatprep.subr.mxu0 0.0
  %835 = vmatpush1.msra.mxu0 0.0
  %836 = vmatprep.subr.mxu0 0.0
  %837 = vmatpush1.msra.mxu0 0.0
  %838 = vmatprep.subr.mxu0 0.0
  %839 = vmatpush1.msra.mxu0 0.0
  %840 = vmatprep.subr.mxu0 0.0
  %841 = vmatpush1.msra.mxu0 0.0
  %842 = vmatprep.subr.mxu0 0.0
  %843 = vmatpush1.msra.mxu0 0.0
  %844 = vmatprep.subr.mxu0 0.0
  %845 = vmatpush1.msra.mxu0 %v359
  %846 = vmatprep.subr.mxu0 0.0
  %847 = vmatpush1.msra.mxu0 %v358
  %848 = vmatprep.subr.mxu0 0.0
  %849 = vmatpush1.msra.mxu0 %v357
  %850 = vmatprep.subr.mxu0 0.0
  %851 = vmatpush1.msra.mxu0 %v356
  %852 = vmatprep.subr.mxu0 0.0
  %853 = vmatpush2.msra.mxu0 0.0
  %854 = vmatprep.subr.mxu0 0.0
  %855 = vmatpush2.msra.mxu0 0.0
  %856 = vmatprep.subr.mxu0 0.0
  %857 = vmatpush2.msra.mxu0 0.0
  %858 = vmatprep.subr.mxu0 0.0
  %859 = vmatpush2.msra.mxu0 0.0
  %860 = vmatprep.subr.mxu0 0.0
  %861 = vmatpush2.msra.mxu0 0.0
  %862 = vmatprep.subr.mxu0 0.0
  %863 = vmatpush2.msra.mxu0 0.0
  %864 = vmatprep.subr.mxu0 0.0
  %865 = vmatpush2.msra.mxu0 0.0
  %866 = vmatprep.subr.mxu0 0.0
  %867 = vmatpush2.msra.mxu0 0.0
  %868 = vmatprep.subr.mxu0 0.0
  %869 = vmatpush2.msra.mxu0 0.0
  %870 = vmatprep.subr.mxu0 0.0
  %871 = vmatpush2.msra.mxu0 0.0
  %872 = vmatprep.subr.mxu0 0.0
  %873 = vmatpush2.msra.mxu0 0.0
  %874 = vmatprep.subr.mxu0 0.0
  %875 = vmatpush2.msra.mxu0 0.0
  %876 = vmatprep.subr.mxu0 0.0
  %877 = vmatpush2.msra.mxu0 0.0
  %878 = vmatprep.subr.mxu0 0.0
  %879 = vmatpush2.msra.mxu0 0.0
  %880 = vmatprep.subr.mxu0 0.0
  %881 = vmatpush2.msra.mxu0 0.0
  %882 = vmatprep.subr.mxu0 0.0
  %883 = vmatpush2.msra.mxu0 0.0
  %884 = vmatprep.mubr.f32.mxu0 0.0
  %885 = vmatmul.mubr.f32.gmra.mxu0 %v818
  %v886 = vpop.f32.mrf.mxu0
  %v887 = vadd.f32 %v812, %v886
  %v888 = vpop.f32.mrf.mxu0
  %889 = vdwg.mxu0
  %v890 = vadd.f32 %v887, %v614
  %v891 = vxor.u32 %v890, 2147483648
  %v892 = vmul.f32 %v891, 1.442695
  %v893 = vpow.pop %v892
  %v894 = vadd.f32 %v893, 1.0
  %v895 = vrcp.pop %v894
  %v896 = vmul.f32 1.0, %v895
  %v897 = vtanh.pop %v890
  %v898 = vmul.f32 %v896, %v634
  %900 = vrot.lane.b32.xlu0 %v897, 64
  %v901 = vpop.permute.xlu0 %900
  %v903 = vmul.f32 %v896, %v901
  %905 = vrot.lane.b32.xlu0 %v903, 32
  %v906 = vpop.permute.xlu0 %905
  %v908 = vadd.f32 %v898, %v906
  %v909 = vtanh.pop %v908
  %911 = vrot.lane.b32.xlu0 %v909, 64
  %v912 = vpop.permute.xlu0 %911
  %v914 = vmul.f32 %v896, %v912
  %916 = vrot.lane.b32.xlu0 %v914, 32
  %v917 = vpop.permute.xlu0 %916
  %s919 = scalar_lea.vmem [#allocation3], 8
  %920 = vst.msk [vmem:[%s919] sm:$0xff] %vm366, %v917
  %s921 = scalar_lea.vmem [#allocation2], 16
  %v922 = vld [vmem:[%s921] sm:$0xff]
  %923 = vmatprep.subr.mxu0 0.0
  %924 = vmatpush1.msra.mxu0 0.0
  %925 = vmatprep.subr.mxu0 0.0
  %926 = vmatpush1.msra.mxu0 0.0
  %927 = vmatprep.subr.mxu0 0.0
  %928 = vmatpush1.msra.mxu0 0.0
  %929 = vmatprep.subr.mxu0 0.0
  %930 = vmatpush1.msra.mxu0 0.0
  %931 = vmatprep.subr.mxu0 0.0
  %932 = vmatpush1.msra.mxu0 0.0
  %933 = vmatprep.subr.mxu0 0.0
  %934 = vmatpush1.msra.mxu0 0.0
  %935 = vmatprep.subr.mxu0 0.0
  %936 = vmatpush1.msra.mxu0 0.0
  %937 = vmatprep.subr.mxu0 0.0
  %938 = vmatpush1.msra.mxu0 0.0
  %939 = vmatprep.subr.mxu0 0.0
  %940 = vmatpush1.msra.mxu0 0.0
  %941 = vmatprep.subr.mxu0 0.0
  %942 = vmatpush1.msra.mxu0 0.0
  %943 = vmatprep.subr.mxu0 0.0
  %944 = vmatpush1.msra.mxu0 0.0
  %945 = vmatprep.subr.mxu0 0.0
  %946 = vmatpush1.msra.mxu0 0.0
  %947 = vmatprep.subr.mxu0 0.0
  %948 = vmatpush1.msra.mxu0 %v355
  %949 = vmatprep.subr.mxu0 0.0
  %950 = vmatpush1.msra.mxu0 %v354
  %951 = vmatprep.subr.mxu0 0.0
  %952 = vmatpush1.msra.mxu0 %v353
  %953 = vmatprep.subr.mxu0 0.0
  %954 = vmatpush1.msra.mxu0 %v352
  %955 = vmatprep.subr.mxu0 0.0
  %956 = vmatpush2.msra.mxu0 0.0
  %957 = vmatprep.subr.mxu0 0.0
  %958 = vmatpush2.msra.mxu0 0.0
  %959 = vmatprep.subr.mxu0 0.0
  %960 = vmatpush2.msra.mxu0 0.0
  %961 = vmatprep.subr.mxu0 0.0
  %962 = vmatpush2.msra.mxu0 0.0
  %963 = vmatprep.subr.mxu0 0.0
  %964 = vmatpush2.msra.mxu0 0.0
  %965 = vmatprep.subr.mxu0 0.0
  %966 = vmatpush2.msra.mxu0 0.0
  %967 = vmatprep.subr.mxu0 0.0
  %968 = vmatpush2.msra.mxu0 0.0
  %969 = vmatprep.subr.mxu0 0.0
  %970 = vmatpush2.msra.mxu0 0.0
  %971 = vmatprep.subr.mxu0 0.0
  %972 = vmatpush2.msra.mxu0 0.0
  %973 = vmatprep.subr.mxu0 0.0
  %974 = vmatpush2.msra.mxu0 0.0
  %975 = vmatprep.subr.mxu0 0.0
  %976 = vmatpush2.msra.mxu0 0.0
  %977 = vmatprep.subr.mxu0 0.0
  %978 = vmatpush2.msra.mxu0 0.0
  %979 = vmatprep.subr.mxu0 0.0
  %980 = vmatpush2.msra.mxu0 0.0
  %981 = vmatprep.subr.mxu0 0.0
  %982 = vmatpush2.msra.mxu0 0.0
  %983 = vmatprep.subr.mxu0 0.0
  %984 = vmatpush2.msra.mxu0 0.0
  %985 = vmatprep.subr.mxu0 0.0
  %986 = vmatpush2.msra.mxu0 0.0
  %987 = vmatprep.mubr.f32.mxu0 0.0
  %988 = vmatmul.mubr.f32.gmra.mxu0 %v818
  %v989 = vpop.f32.mrf.mxu0
  %v990 = vadd.f32 0.0, %v989
  %v991 = vpop.f32.mrf.mxu0
  %992 = vdwg.mxu0
  %v993 = vadd.f32 %v922, %v990
  %v994 = vxor.u32 %v993, 2147483648
  %v995 = vmul.f32 %v994, 1.442695
  %v996 = vpow.pop %v995
  %v997 = vadd.f32 %v996, 1.0
  %v998 = vrcp.pop %v997
  %v999 = vmul.f32 1.0, %v998
  %v1000 = vtanh.pop %v993
  %v1001 = vmul.f32 %v999, %v736
  %1003 = vrot.lane.b32.xlu0 %v1000, 64
  %v1004 = vpop.permute.xlu0 %1003
  %v1006 = vmul.f32 %v999, %v1004
  %1008 = vrot.lane.b32.xlu0 %v1006, 32
  %v1009 = vpop.permute.xlu0 %1008
  %v1011 = vadd.f32 %v1001, %v1009
  %v1012 = vtanh.pop %v1011
  %1014 = vrot.lane.b32.xlu0 %v1012, 64
  %v1015 = vpop.permute.xlu0 %1014
  %v1017 = vmul.f32 %v999, %v1015
  %v1018 = vsel %vm366, %v917, 0
  %1020 = vmatprep.subr.mxu0 0.0
  %1021 = vmatpush1.msra.mxu0 0.0
  %1022 = vmatprep.subr.mxu0 0.0
  %1023 = vmatpush1.msra.mxu0 0.0
  %1024 = vmatprep.subr.mxu0 0.0
  %1025 = vmatpush1.msra.mxu0 0.0
  %1026 = vmatprep.subr.mxu0 0.0
  %1027 = vmatpush1.msra.mxu0 0.0
  %1028 = vmatprep.subr.mxu0 0.0
  %1029 = vmatpush1.msra.mxu0 0.0
  %1030 = vmatprep.subr.mxu0 0.0
  %1031 = vmatpush1.msra.mxu0 0.0
  %1032 = vmatprep.subr.mxu0 0.0
  %1033 = vmatpush1.msra.mxu0 0.0
  %1034 = vmatprep.subr.mxu0 0.0
  %1035 = vmatpush1.msra.mxu0 0.0
  %1036 = vmatprep.subr.mxu0 0.0
  %1037 = vmatpush1.msra.mxu0 0.0
  %1038 = vmatprep.subr.mxu0 0.0
  %1039 = vmatpush1.msra.mxu0 0.0
  %1040 = vmatprep.subr.mxu0 0.0
  %1041 = vmatpush1.msra.mxu0 0.0
  %1042 = vmatprep.subr.mxu0 0.0
  %1043 = vmatpush1.msra.mxu0 0.0
  %1044 = vmatprep.subr.mxu0 0.0
  %1045 = vmatpush1.msra.mxu0 %v363
  %1046 = vmatprep.subr.mxu0 0.0
  %1047 = vmatpush1.msra.mxu0 %v362
  %1048 = vmatprep.subr.mxu0 0.0
  %1049 = vmatpush1.msra.mxu0 %v361
  %1050 = vmatprep.subr.mxu0 0.0
  %1051 = vmatpush1.msra.mxu0 %v360
  %1052 = vmatprep.subr.mxu0 0.0
  %1053 = vmatpush2.msra.mxu0 0.0
  %1054 = vmatprep.subr.mxu0 0.0
  %1055 = vmatpush2.msra.mxu0 0.0
  %1056 = vmatprep.subr.mxu0 0.0
  %1057 = vmatpush2.msra.mxu0 0.0
  %1058 = vmatprep.subr.mxu0 0.0
  %1059 = vmatpush2.msra.mxu0 0.0
  %1060 = vmatprep.subr.mxu0 0.0
  %1061 = vmatpush2.msra.mxu0 0.0
  %1062 = vmatprep.subr.mxu0 0.0
  %1063 = vmatpush2.msra.mxu0 0.0
  %1064 = vmatprep.subr.mxu0 0.0
  %1065 = vmatpush2.msra.mxu0 0.0
  %1066 = vmatprep.subr.mxu0 0.0
  %1067 = vmatpush2.msra.mxu0 0.0
  %1068 = vmatprep.subr.mxu0 0.0
  %1069 = vmatpush2.msra.mxu0 0.0
  %1070 = vmatprep.subr.mxu0 0.0
  %1071 = vmatpush2.msra.mxu0 0.0
  %1072 = vmatprep.subr.mxu0 0.0
  %1073 = vmatpush2.msra.mxu0 0.0
  %1074 = vmatprep.subr.mxu0 0.0
  %1075 = vmatpush2.msra.mxu0 0.0
  %1076 = vmatprep.subr.mxu0 0.0
  %1077 = vmatpush2.msra.mxu0 0.0
  %1078 = vmatprep.subr.mxu0 0.0
  %1079 = vmatpush2.msra.mxu0 0.0
  %1080 = vmatprep.subr.mxu0 0.0
  %1081 = vmatpush2.msra.mxu0 0.0
  %1082 = vmatprep.subr.mxu0 0.0
  %1083 = vmatpush2.msra.mxu0 0.0
  %1084 = vmatprep.mubr.f32.mxu0 0.0
  %1085 = vmatmul.mubr.f32.gmra.mxu0 %v1018
  %v1086 = vpop.f32.mrf.mxu0
  %v1087 = vadd.f32 0.0, %v1086
  %v1088 = vpop.f32.mrf.mxu0
  %1089 = vdwg.mxu0
  %1091 = vrot.lane.b32.xlu0 %v1017, 32
  %v1092 = vpop.permute.xlu0 %1091
  %v1093 = vsel %vm366, %v1092, 0
  %1095 = vmatprep.subr.mxu0 0.0
  %1096 = vmatpush1.msra.mxu0 0.0
  %1097 = vmatprep.subr.mxu0 0.0
  %1098 = vmatpush1.msra.mxu0 0.0
  %1099 = vmatprep.subr.mxu0 0.0
  %1100 = vmatpush1.msra.mxu0 0.0
  %1101 = vmatprep.subr.mxu0 0.0
  %1102 = vmatpush1.msra.mxu0 0.0
  %1103 = vmatprep.subr.mxu0 0.0
  %1104 = vmatpush1.msra.mxu0 0.0
  %1105 = vmatprep.subr.mxu0 0.0
  %1106 = vmatpush1.msra.mxu0 0.0
  %1107 = vmatprep.subr.mxu0 0.0
  %1108 = vmatpush1.msra.mxu0 0.0
  %1109 = vmatprep.subr.mxu0 0.0
  %1110 = vmatpush1.msra.mxu0 0.0
  %1111 = vmatprep.subr.mxu0 0.0
  %1112 = vmatpush1.msra.mxu0 0.0
  %1113 = vmatprep.subr.mxu0 0.0
  %1114 = vmatpush1.msra.mxu0 0.0
  %1115 = vmatprep.subr.mxu0 0.0
  %1116 = vmatpush1.msra.mxu0 0.0
  %1117 = vmatprep.subr.mxu0 0.0
  %1118 = vmatpush1.msra.mxu0 0.0
  %1119 = vmatprep.subr.mxu0 0.0
  %1120 = vmatpush1.msra.mxu0 %v359
  %1121 = vmatprep.subr.mxu0 0.0
  %1122 = vmatpush1.msra.mxu0 %v358
  %1123 = vmatprep.subr.mxu0 0.0
  %1124 = vmatpush1.msra.mxu0 %v357
  %1125 = vmatprep.subr.mxu0 0.0
  %1126 = vmatpush1.msra.mxu0 %v356
  %1127 = vmatprep.subr.mxu0 0.0
  %1128 = vmatpush2.msra.mxu0 0.0
  %1129 = vmatprep.subr.mxu0 0.0
  %1130 = vmatpush2.msra.mxu0 0.0
  %1131 = vmatprep.subr.mxu0 0.0
  %1132 = vmatpush2.msra.mxu0 0.0
  %1133 = vmatprep.subr.mxu0 0.0
  %1134 = vmatpush2.msra.mxu0 0.0
  %1135 = vmatprep.subr.mxu0 0.0
  %1136 = vmatpush2.msra.mxu0 0.0
  %1137 = vmatprep.subr.mxu0 0.0
  %1138 = vmatpush2.msra.mxu0 0.0
  %1139 = vmatprep.subr.mxu0 0.0
  %1140 = vmatpush2.msra.mxu0 0.0
  %1141 = vmatprep.subr.mxu0 0.0
  %1142 = vmatpush2.msra.mxu0 0.0
  %1143 = vmatprep.subr.mxu0 0.0
  %1144 = vmatpush2.msra.mxu0 0.0
  %1145 = vmatprep.subr.mxu0 0.0
  %1146 = vmatpush2.msra.mxu0 0.0
  %1147 = vmatprep.subr.mxu0 0.0
  %1148 = vmatpush2.msra.mxu0 0.0
  %1149 = vmatprep.subr.mxu0 0.0
  %1150 = vmatpush2.msra.mxu0 0.0
  %1151 = vmatprep.subr.mxu0 0.0
  %1152 = vmatpush2.msra.mxu0 0.0
  %1153 = vmatprep.subr.mxu0 0.0
  %1154 = vmatpush2.msra.mxu0 0.0
  %1155 = vmatprep.subr.mxu0 0.0
  %1156 = vmatpush2.msra.mxu0 0.0
  %1157 = vmatprep.subr.mxu0 0.0
  %1158 = vmatpush2.msra.mxu0 0.0
  %1159 = vmatprep.mubr.f32.mxu0 0.0
  %1160 = vmatmul.mubr.f32.gmra.mxu0 %v1093
  %v1161 = vpop.f32.mrf.mxu0
  %v1162 = vadd.f32 %v1087, %v1161
  %v1163 = vpop.f32.mrf.mxu0
  %1164 = vdwg.mxu0
  %v1165 = vadd.f32 %v1162, %v614
  %v1166 = vxor.u32 %v1165, 2147483648
  %v1167 = vmul.f32 %v1166, 1.442695
  %v1168 = vpow.pop %v1167
  %v1169 = vadd.f32 %v1168, 1.0
  %v1170 = vrcp.pop %v1169
  %v1171 = vmul.f32 1.0, %v1170
  %v1172 = vtanh.pop %v1165
  %v1173 = vmul.f32 %v1171, %v908
  %1175 = vrot.lane.b32.xlu0 %v1172, 64
  %v1176 = vpop.permute.xlu0 %1175
  %v1178 = vmul.f32 %v1171, %v1176
  %1180 = vrot.lane.b32.xlu0 %v1178, 32
  %v1181 = vpop.permute.xlu0 %1180
  %v1183 = vadd.f32 %v1173, %v1181
  %v1184 = vtanh.pop %v1183
  %1186 = vrot.lane.b32.xlu0 %v1184, 64
  %v1187 = vpop.permute.xlu0 %1186
  %v1189 = vmul.f32 %v1171, %v1187
  %1191 = vrot.lane.b32.xlu0 %v1189, 32
  %v1192 = vpop.permute.xlu0 %1191
  %s1194 = scalar_lea.vmem [#allocation3], 16
  %1195 = vst.msk [vmem:[%s1194] sm:$0xff] %vm366, %v1192
  %s1196 = scalar_lea.vmem [#allocation2], 24
  %v1197 = vld [vmem:[%s1196] sm:$0xff]
  %1198 = vmatprep.subr.mxu0 0.0
  %1199 = vmatpush1.msra.mxu0 0.0
  %1200 = vmatprep.subr.mxu0 0.0
  %1201 = vmatpush1.msra.mxu0 0.0
  %1202 = vmatprep.subr.mxu0 0.0
  %1203 = vmatpush1.msra.mxu0 0.0
  %1204 = vmatprep.subr.mxu0 0.0
  %1205 = vmatpush1.msra.mxu0 0.0
  %1206 = vmatprep.subr.mxu0 0.0
  %1207 = vmatpush1.msra.mxu0 0.0
  %1208 = vmatprep.subr.mxu0 0.0
  %1209 = vmatpush1.msra.mxu0 0.0
  %1210 = vmatprep.subr.mxu0 0.0
  %1211 = vmatpush1.msra.mxu0 0.0
  %1212 = vmatprep.subr.mxu0 0.0
  %1213 = vmatpush1.msra.mxu0 0.0
  %1214 = vmatprep.subr.mxu0 0.0
  %1215 = vmatpush1.msra.mxu0 0.0
  %1216 = vmatprep.subr.mxu0 0.0
  %1217 = vmatpush1.msra.mxu0 0.0
  %1218 = vmatprep.subr.mxu0 0.0
  %1219 = vmatpush1.msra.mxu0 0.0
  %1220 = vmatprep.subr.mxu0 0.0
  %1221 = vmatpush1.msra.mxu0 0.0
  %1222 = vmatprep.subr.mxu0 0.0
  %1223 = vmatpush1.msra.mxu0 %v355
  %1224 = vmatprep.subr.mxu0 0.0
  %1225 = vmatpush1.msra.mxu0 %v354
  %1226 = vmatprep.subr.mxu0 0.0
  %1227 = vmatpush1.msra.mxu0 %v353
  %1228 = vmatprep.subr.mxu0 0.0
  %1229 = vmatpush1.msra.mxu0 %v352
  %1230 = vmatprep.subr.mxu0 0.0
  %1231 = vmatpush2.msra.mxu0 0.0
  %1232 = vmatprep.subr.mxu0 0.0
  %1233 = vmatpush2.msra.mxu0 0.0
  %1234 = vmatprep.subr.mxu0 0.0
  %1235 = vmatpush2.msra.mxu0 0.0
  %1236 = vmatprep.subr.mxu0 0.0
  %1237 = vmatpush2.msra.mxu0 0.0
  %1238 = vmatprep.subr.mxu0 0.0
  %1239 = vmatpush2.msra.mxu0 0.0
  %1240 = vmatprep.subr.mxu0 0.0
  %1241 = vmatpush2.msra.mxu0 0.0
  %1242 = vmatprep.subr.mxu0 0.0
  %1243 = vmatpush2.msra.mxu0 0.0
  %1244 = vmatprep.subr.mxu0 0.0
  %1245 = vmatpush2.msra.mxu0 0.0
  %1246 = vmatprep.subr.mxu0 0.0
  %1247 = vmatpush2.msra.mxu0 0.0
  %1248 = vmatprep.subr.mxu0 0.0
  %1249 = vmatpush2.msra.mxu0 0.0
  %1250 = vmatprep.subr.mxu0 0.0
  %1251 = vmatpush2.msra.mxu0 0.0
  %1252 = vmatprep.subr.mxu0 0.0
  %1253 = vmatpush2.msra.mxu0 0.0
  %1254 = vmatprep.subr.mxu0 0.0
  %1255 = vmatpush2.msra.mxu0 0.0
  %1256 = vmatprep.subr.mxu0 0.0
  %1257 = vmatpush2.msra.mxu0 0.0
  %1258 = vmatprep.subr.mxu0 0.0
  %1259 = vmatpush2.msra.mxu0 0.0
  %1260 = vmatprep.subr.mxu0 0.0
  %1261 = vmatpush2.msra.mxu0 0.0
  %1262 = vmatprep.mubr.f32.mxu0 0.0
  %1263 = vmatmul.mubr.f32.gmra.mxu0 %v1093
  %v1264 = vpop.f32.mrf.mxu0
  %v1265 = vadd.f32 0.0, %v1264
  %v1266 = vpop.f32.mrf.mxu0
  %1267 = vdwg.mxu0
  %v1268 = vadd.f32 %v1197, %v1265
  %v1269 = vxor.u32 %v1268, 2147483648
  %v1270 = vmul.f32 %v1269, 1.442695
  %v1271 = vpow.pop %v1270
  %v1272 = vadd.f32 %v1271, 1.0
  %v1273 = vrcp.pop %v1272
  %v1274 = vmul.f32 1.0, %v1273
  %v1275 = vtanh.pop %v1268
  %v1276 = vmul.f32 %v1274, %v1011
  %1278 = vrot.lane.b32.xlu0 %v1275, 64
  %v1279 = vpop.permute.xlu0 %1278
  %v1281 = vmul.f32 %v1274, %v1279
  %1283 = vrot.lane.b32.xlu0 %v1281, 32
  %v1284 = vpop.permute.xlu0 %1283
  %v1286 = vadd.f32 %v1276, %v1284
  %v1287 = vtanh.pop %v1286
  %1289 = vrot.lane.b32.xlu0 %v1287, 64
  %v1290 = vpop.permute.xlu0 %1289
  %v1292 = vmul.f32 %v1274, %v1290
  %v1293 = vsel %vm366, %v1192, 0
  %1295 = vmatprep.subr.mxu0 0.0
  %1296 = vmatpush1.msra.mxu0 0.0
  %1297 = vmatprep.subr.mxu0 0.0
  %1298 = vmatpush1.msra.mxu0 0.0
  %1299 = vmatprep.subr.mxu0 0.0
  %1300 = vmatpush1.msra.mxu0 0.0
  %1301 = vmatprep.subr.mxu0 0.0
  %1302 = vmatpush1.msra.mxu0 0.0
  %1303 = vmatprep.subr.mxu0 0.0
  %1304 = vmatpush1.msra.mxu0 0.0
  %1305 = vmatprep.subr.mxu0 0.0
  %1306 = vmatpush1.msra.mxu0 0.0
  %1307 = vmatprep.subr.mxu0 0.0
  %1308 = vmatpush1.msra.mxu0 0.0
  %1309 = vmatprep.subr.mxu0 0.0
  %1310 = vmatpush1.msra.mxu0 0.0
  %1311 = vmatprep.subr.mxu0 0.0
  %1312 = vmatpush1.msra.mxu0 0.0
  %1313 = vmatprep.subr.mxu0 0.0
  %1314 = vmatpush1.msra.mxu0 0.0
  %1315 = vmatprep.subr.mxu0 0.0
  %1316 = vmatpush1.msra.mxu0 0.0
  %1317 = vmatprep.subr.mxu0 0.0
  %1318 = vmatpush1.msra.mxu0 0.0
  %1319 = vmatprep.subr.mxu0 0.0
  %1320 = vmatpush1.msra.mxu0 %v363
  %1321 = vmatprep.subr.mxu0 0.0
  %1322 = vmatpush1.msra.mxu0 %v362
  %1323 = vmatprep.subr.mxu0 0.0
  %1324 = vmatpush1.msra.mxu0 %v361
  %1325 = vmatprep.subr.mxu0 0.0
  %1326 = vmatpush1.msra.mxu0 %v360
  %1327 = vmatprep.subr.mxu0 0.0
  %1328 = vmatpush2.msra.mxu0 0.0
  %1329 = vmatprep.subr.mxu0 0.0
  %1330 = vmatpush2.msra.mxu0 0.0
  %1331 = vmatprep.subr.mxu0 0.0
  %1332 = vmatpush2.msra.mxu0 0.0
  %1333 = vmatprep.subr.mxu0 0.0
  %1334 = vmatpush2.msra.mxu0 0.0
  %1335 = vmatprep.subr.mxu0 0.0
  %1336 = vmatpush2.msra.mxu0 0.0
  %1337 = vmatprep.subr.mxu0 0.0
  %1338 = vmatpush2.msra.mxu0 0.0
  %1339 = vmatprep.subr.mxu0 0.0
  %1340 = vmatpush2.msra.mxu0 0.0
  %1341 = vmatprep.subr.mxu0 0.0
  %1342 = vmatpush2.msra.mxu0 0.0
  %1343 = vmatprep.subr.mxu0 0.0
  %1344 = vmatpush2.msra.mxu0 0.0
  %1345 = vmatprep.subr.mxu0 0.0
  %1346 = vmatpush2.msra.mxu0 0.0
  %1347 = vmatprep.subr.mxu0 0.0
  %1348 = vmatpush2.msra.mxu0 0.0
  %1349 = vmatprep.subr.mxu0 0.0
  %1350 = vmatpush2.msra.mxu0 0.0
  %1351 = vmatprep.subr.mxu0 0.0
  %1352 = vmatpush2.msra.mxu0 0.0
  %1353 = vmatprep.subr.mxu0 0.0
  %1354 = vmatpush2.msra.mxu0 0.0
  %1355 = vmatprep.subr.mxu0 0.0
  %1356 = vmatpush2.msra.mxu0 0.0
  %1357 = vmatprep.subr.mxu0 0.0
  %1358 = vmatpush2.msra.mxu0 0.0
  %1359 = vmatprep.mubr.f32.mxu0 0.0
  %1360 = vmatmul.mubr.f32.gmra.mxu0 %v1293
  %v1361 = vpop.f32.mrf.mxu0
  %v1362 = vadd.f32 0.0, %v1361
  %v1363 = vpop.f32.mrf.mxu0
  %1364 = vdwg.mxu0
  %1366 = vrot.lane.b32.xlu0 %v1292, 32
  %v1367 = vpop.permute.xlu0 %1366
  %v1368 = vsel %vm366, %v1367, 0
  %1370 = vmatprep.subr.mxu0 0.0
  %1371 = vmatpush1.msra.mxu0 0.0
  %1372 = vmatprep.subr.mxu0 0.0
  %1373 = vmatpush1.msra.mxu0 0.0
  %1374 = vmatprep.subr.mxu0 0.0
  %1375 = vmatpush1.msra.mxu0 0.0
  %1376 = vmatprep.subr.mxu0 0.0
  %1377 = vmatpush1.msra.mxu0 0.0
  %1378 = vmatprep.subr.mxu0 0.0
  %1379 = vmatpush1.msra.mxu0 0.0
  %1380 = vmatprep.subr.mxu0 0.0
  %1381 = vmatpush1.msra.mxu0 0.0
  %1382 = vmatprep.subr.mxu0 0.0
  %1383 = vmatpush1.msra.mxu0 0.0
  %1384 = vmatprep.subr.mxu0 0.0
  %1385 = vmatpush1.msra.mxu0 0.0
  %1386 = vmatprep.subr.mxu0 0.0
  %1387 = vmatpush1.msra.mxu0 0.0
  %1388 = vmatprep.subr.mxu0 0.0
  %1389 = vmatpush1.msra.mxu0 0.0
  %1390 = vmatprep.subr.mxu0 0.0
  %1391 = vmatpush1.msra.mxu0 0.0
  %1392 = vmatprep.subr.mxu0 0.0
  %1393 = vmatpush1.msra.mxu0 0.0
  %1394 = vmatprep.subr.mxu0 0.0
  %1395 = vmatpush1.msra.mxu0 %v359
  %1396 = vmatprep.subr.mxu0 0.0
  %1397 = vmatpush1.msra.mxu0 %v358
  %1398 = vmatprep.subr.mxu0 0.0
  %1399 = vmatpush1.msra.mxu0 %v357
  %1400 = vmatprep.subr.mxu0 0.0
  %1401 = vmatpush1.msra.mxu0 %v356
  %1402 = vmatprep.subr.mxu0 0.0
  %1403 = vmatpush2.msra.mxu0 0.0
  %1404 = vmatprep.subr.mxu0 0.0
  %1405 = vmatpush2.msra.mxu0 0.0
  %1406 = vmatprep.subr.mxu0 0.0
  %1407 = vmatpush2.msra.mxu0 0.0
  %1408 = vmatprep.subr.mxu0 0.0
  %1409 = vmatpush2.msra.mxu0 0.0
  %1410 = vmatprep.subr.mxu0 0.0
  %1411 = vmatpush2.msra.mxu0 0.0
  %1412 = vmatprep.subr.mxu0 0.0
  %1413 = vmatpush2.msra.mxu0 0.0
  %1414 = vmatprep.subr.mxu0 0.0
  %1415 = vmatpush2.msra.mxu0 0.0
  %1416 = vmatprep.subr.mxu0 0.0
  %1417 = vmatpush2.msra.mxu0 0.0
  %1418 = vmatprep.subr.mxu0 0.0
  %1419 = vmatpush2.msra.mxu0 0.0
  %1420 = vmatprep.subr.mxu0 0.0
  %1421 = vmatpush2.msra.mxu0 0.0
  %1422 = vmatprep.subr.mxu0 0.0
  %1423 = vmatpush2.msra.mxu0 0.0
  %1424 = vmatprep.subr.mxu0 0.0
  %1425 = vmatpush2.msra.mxu0 0.0
  %1426 = vmatprep.subr.mxu0 0.0
  %1427 = vmatpush2.msra.mxu0 0.0
  %1428 = vmatprep.subr.mxu0 0.0
  %1429 = vmatpush2.msra.mxu0 0.0
  %1430 = vmatprep.subr.mxu0 0.0
  %1431 = vmatpush2.msra.mxu0 0.0
  %1432 = vmatprep.subr.mxu0 0.0
  %1433 = vmatpush2.msra.mxu0 0.0
  %1434 = vmatprep.mubr.f32.mxu0 0.0
  %1435 = vmatmul.mubr.f32.gmra.mxu0 %v1368
  %v1436 = vpop.f32.mrf.mxu0
  %v1437 = vadd.f32 %v1362, %v1436
  %v1438 = vpop.f32.mrf.mxu0
  %1439 = vdwg.mxu0
  %v1440 = vadd.f32 %v1437, %v614
  %v1441 = vxor.u32 %v1440, 2147483648
  %v1442 = vmul.f32 %v1441, 1.442695
  %v1443 = vpow.pop %v1442
  %v1444 = vadd.f32 %v1443, 1.0
  %v1445 = vrcp.pop %v1444
  %v1446 = vmul.f32 1.0, %v1445
  %v1447 = vtanh.pop %v1440
  %v1448 = vmul.f32 %v1446, %v1183
  %1450 = vrot.lane.b32.xlu0 %v1447, 64
  %v1451 = vpop.permute.xlu0 %1450
  %v1453 = vmul.f32 %v1446, %v1451
  %1455 = vrot.lane.b32.xlu0 %v1453, 32
  %v1456 = vpop.permute.xlu0 %1455
  %v1458 = vadd.f32 %v1448, %v1456
  %v1459 = vtanh.pop %v1458
  %1461 = vrot.lane.b32.xlu0 %v1459, 64
  %v1462 = vpop.permute.xlu0 %1461
  %v1464 = vmul.f32 %v1446, %v1462
  %1466 = vrot.lane.b32.xlu0 %v1464, 32
  %v1467 = vpop.permute.xlu0 %1466
  %s1469 = scalar_lea.vmem [#allocation3], 24
  %1470 = vst.msk [vmem:[%s1469] sm:$0xff] %vm366, %v1467
  %s1471 = scalar_lea.vmem [#allocation2], 32
  %v1472 = vld [vmem:[%s1471] sm:$0xff]
  %1473 = vmatprep.subr.mxu0 0.0
  %1474 = vmatpush1.msra.mxu0 0.0
  %1475 = vmatprep.subr.mxu0 0.0
  %1476 = vmatpush1.msra.mxu0 0.0
  %1477 = vmatprep.subr.mxu0 0.0
  %1478 = vmatpush1.msra.mxu0 0.0
  %1479 = vmatprep.subr.mxu0 0.0
  %1480 = vmatpush1.msra.mxu0 0.0
  %1481 = vmatprep.subr.mxu0 0.0
  %1482 = vmatpush1.msra.mxu0 0.0
  %1483 = vmatprep.subr.mxu0 0.0
  %1484 = vmatpush1.msra.mxu0 0.0
  %1485 = vmatprep.subr.mxu0 0.0
  %1486 = vmatpush1.msra.mxu0 0.0
  %1487 = vmatprep.subr.mxu0 0.0
  %1488 = vmatpush1.msra.mxu0 0.0
  %1489 = vmatprep.subr.mxu0 0.0
  %1490 = vmatpush1.msra.mxu0 0.0
  %1491 = vmatprep.subr.mxu0 0.0
  %1492 = vmatpush1.msra.mxu0 0.0
  %1493 = vmatprep.subr.mxu0 0.0
  %1494 = vmatpush1.msra.mxu0 0.0
  %1495 = vmatprep.subr.mxu0 0.0
  %1496 = vmatpush1.msra.mxu0 0.0
  %1497 = vmatprep.subr.mxu0 0.0
  %1498 = vmatpush1.msra.mxu0 %v355
  %1499 = vmatprep.subr.mxu0 0.0
  %1500 = vmatpush1.msra.mxu0 %v354
  %1501 = vmatprep.subr.mxu0 0.0
  %1502 = vmatpush1.msra.mxu0 %v353
  %1503 = vmatprep.subr.mxu0 0.0
  %1504 = vmatpush1.msra.mxu0 %v352
  %1505 = vmatprep.subr.mxu0 0.0
  %1506 = vmatpush2.msra.mxu0 0.0
  %1507 = vmatprep.subr.mxu0 0.0
  %1508 = vmatpush2.msra.mxu0 0.0
  %1509 = vmatprep.subr.mxu0 0.0
  %1510 = vmatpush2.msra.mxu0 0.0
  %1511 = vmatprep.subr.mxu0 0.0
  %1512 = vmatpush2.msra.mxu0 0.0
  %1513 = vmatprep.subr.mxu0 0.0
  %1514 = vmatpush2.msra.mxu0 0.0
  %1515 = vmatprep.subr.mxu0 0.0
  %1516 = vmatpush2.msra.mxu0 0.0
  %1517 = vmatprep.subr.mxu0 0.0
  %1518 = vmatpush2.msra.mxu0 0.0
  %1519 = vmatprep.subr.mxu0 0.0
  %1520 = vmatpush2.msra.mxu0 0.0
  %1521 = vmatprep.subr.mxu0 0.0
  %1522 = vmatpush2.msra.mxu0 0.0
  %1523 = vmatprep.subr.mxu0 0.0
  %1524 = vmatpush2.msra.mxu0 0.0
  %1525 = vmatprep.subr.mxu0 0.0
  %1526 = vmatpush2.msra.mxu0 0.0
  %1527 = vmatprep.subr.mxu0 0.0
  %1528 = vmatpush2.msra.mxu0 0.0
  %1529 = vmatprep.subr.mxu0 0.0
  %1530 = vmatpush2.msra.mxu0 0.0
  %1531 = vmatprep.subr.mxu0 0.0
  %1532 = vmatpush2.msra.mxu0 0.0
  %1533 = vmatprep.subr.mxu0 0.0
  %1534 = vmatpush2.msra.mxu0 0.0
  %1535 = vmatprep.subr.mxu0 0.0
  %1536 = vmatpush2.msra.mxu0 0.0
  %1537 = vmatprep.mubr.f32.mxu0 0.0
  %1538 = vmatmul.mubr.f32.gmra.mxu0 %v1368
  %v1539 = vpop.f32.mrf.mxu0
  %v1540 = vadd.f32 0.0, %v1539
  %v1541 = vpop.f32.mrf.mxu0
  %1542 = vdwg.mxu0
  %v1543 = vadd.f32 %v1472, %v1540
  %v1544 = vxor.u32 %v1543, 2147483648
  %v1545 = vmul.f32 %v1544, 1.442695
  %v1546 = vpow.pop %v1545
  %v1547 = vadd.f32 %v1546, 1.0
  %v1548 = vrcp.pop %v1547
  %v1549 = vmul.f32 1.0, %v1548
  %v1550 = vtanh.pop %v1543
  %v1551 = vmul.f32 %v1549, %v1286
  %1553 = vrot.lane.b32.xlu0 %v1550, 64
  %v1554 = vpop.permute.xlu0 %1553
  %v1556 = vmul.f32 %v1549, %v1554
  %1558 = vrot.lane.b32.xlu0 %v1556, 32
  %v1559 = vpop.permute.xlu0 %1558
  %v1561 = vadd.f32 %v1551, %v1559
  %v1562 = vtanh.pop %v1561
  %1564 = vrot.lane.b32.xlu0 %v1562, 64
  %v1565 = vpop.permute.xlu0 %1564
  %v1567 = vmul.f32 %v1549, %v1565
  %v1568 = vsel %vm366, %v1467, 0
  %1570 = vmatprep.subr.mxu0 0.0
  %1571 = vmatpush1.msra.mxu0 0.0
  %1572 = vmatprep.subr.mxu0 0.0
  %1573 = vmatpush1.msra.mxu0 0.0
  %1574 = vmatprep.subr.mxu0 0.0
  %1575 = vmatpush1.msra.mxu0 0.0
  %1576 = vmatprep.subr.mxu0 0.0
  %1577 = vmatpush1.msra.mxu0 0.0
  %1578 = vmatprep.subr.mxu0 0.0
  %1579 = vmatpush1.msra.mxu0 0.0
  %1580 = vmatprep.subr.mxu0 0.0
  %1581 = vmatpush1.msra.mxu0 0.0
  %1582 = vmatprep.subr.mxu0 0.0
  %1583 = vmatpush1.msra.mxu0 0.0
  %1584 = vmatprep.subr.mxu0 0.0
  %1585 = vmatpush1.msra.mxu0 0.0
  %1586 = vmatprep.subr.mxu0 0.0
  %1587 = vmatpush1.msra.mxu0 0.0
  %1588 = vmatprep.subr.mxu0 0.0
  %1589 = vmatpush1.msra.mxu0 0.0
  %1590 = vmatprep.subr.mxu0 0.0
  %1591 = vmatpush1.msra.mxu0 0.0
  %1592 = vmatprep.subr.mxu0 0.0
  %1593 = vmatpush1.msra.mxu0 0.0
  %1594 = vmatprep.subr.mxu0 0.0
  %1595 = vmatpush1.msra.mxu0 %v363
  %1596 = vmatprep.subr.mxu0 0.0
  %1597 = vmatpush1.msra.mxu0 %v362
  %1598 = vmatprep.subr.mxu0 0.0
  %1599 = vmatpush1.msra.mxu0 %v361
  %1600 = vmatprep.subr.mxu0 0.0
  %1601 = vmatpush1.msra.mxu0 %v360
  %1602 = vmatprep.subr.mxu0 0.0
  %1603 = vmatpush2.msra.mxu0 0.0
  %1604 = vmatprep.subr.mxu0 0.0
  %1605 = vmatpush2.msra.mxu0 0.0
  %1606 = vmatprep.subr.mxu0 0.0
  %1607 = vmatpush2.msra.mxu0 0.0
  %1608 = vmatprep.subr.mxu0 0.0
  %1609 = vmatpush2.msra.mxu0 0.0
  %1610 = vmatprep.subr.mxu0 0.0
  %1611 = vmatpush2.msra.mxu0 0.0
  %1612 = vmatprep.subr.mxu0 0.0
  %1613 = vmatpush2.msra.mxu0 0.0
  %1614 = vmatprep.subr.mxu0 0.0
  %1615 = vmatpush2.msra.mxu0 0.0
  %1616 = vmatprep.subr.mxu0 0.0
  %1617 = vmatpush2.msra.mxu0 0.0
  %1618 = vmatprep.subr.mxu0 0.0
  %1619 = vmatpush2.msra.mxu0 0.0
  %1620 = vmatprep.subr.mxu0 0.0
  %1621 = vmatpush2.msra.mxu0 0.0
  %1622 = vmatprep.subr.mxu0 0.0
  %1623 = vmatpush2.msra.mxu0 0.0
  %1624 = vmatprep.subr.mxu0 0.0
  %1625 = vmatpush2.msra.mxu0 0.0
  %1626 = vmatprep.subr.mxu0 0.0
  %1627 = vmatpush2.msra.mxu0 0.0
  %1628 = vmatprep.subr.mxu0 0.0
  %1629 = vmatpush2.msra.mxu0 0.0
  %1630 = vmatprep.subr.mxu0 0.0
  %1631 = vmatpush2.msra.mxu0 0.0
  %1632 = vmatprep.subr.mxu0 0.0
  %1633 = vmatpush2.msra.mxu0 0.0
  %1634 = vmatprep.mubr.f32.mxu0 0.0
  %1635 = vmatmul.mubr.f32.gmra.mxu0 %v1568
  %v1636 = vpop.f32.mrf.mxu0
  %v1637 = vadd.f32 0.0, %v1636
  %v1638 = vpop.f32.mrf.mxu0
  %1639 = vdwg.mxu0
  %1641 = vrot.lane.b32.xlu0 %v1567, 32
  %v1642 = vpop.permute.xlu0 %1641
  %v1643 = vsel %vm366, %v1642, 0
  %1645 = vmatprep.subr.mxu0 0.0
  %1646 = vmatpush1.msra.mxu0 0.0
  %1647 = vmatprep.subr.mxu0 0.0
  %1648 = vmatpush1.msra.mxu0 0.0
  %1649 = vmatprep.subr.mxu0 0.0
  %1650 = vmatpush1.msra.mxu0 0.0
  %1651 = vmatprep.subr.mxu0 0.0
  %1652 = vmatpush1.msra.mxu0 0.0
  %1653 = vmatprep.subr.mxu0 0.0
  %1654 = vmatpush1.msra.mxu0 0.0
  %1655 = vmatprep.subr.mxu0 0.0
  %1656 = vmatpush1.msra.mxu0 0.0
  %1657 = vmatprep.subr.mxu0 0.0
  %1658 = vmatpush1.msra.mxu0 0.0
  %1659 = vmatprep.subr.mxu0 0.0
  %1660 = vmatpush1.msra.mxu0 0.0
  %1661 = vmatprep.subr.mxu0 0.0
  %1662 = vmatpush1.msra.mxu0 0.0
  %1663 = vmatprep.subr.mxu0 0.0
  %1664 = vmatpush1.msra.mxu0 0.0
  %1665 = vmatprep.subr.mxu0 0.0
  %1666 = vmatpush1.msra.mxu0 0.0
  %1667 = vmatprep.subr.mxu0 0.0
  %1668 = vmatpush1.msra.mxu0 0.0
  %1669 = vmatprep.subr.mxu0 0.0
  %1670 = vmatpush1.msra.mxu0 %v359
  %1671 = vmatprep.subr.mxu0 0.0
  %1672 = vmatpush1.msra.mxu0 %v358
  %1673 = vmatprep.subr.mxu0 0.0
  %1674 = vmatpush1.msra.mxu0 %v357
  %1675 = vmatprep.subr.mxu0 0.0
  %1676 = vmatpush1.msra.mxu0 %v356
  %1677 = vmatprep.subr.mxu0 0.0
  %1678 = vmatpush2.msra.mxu0 0.0
  %1679 = vmatprep.subr.mxu0 0.0
  %1680 = vmatpush2.msra.mxu0 0.0
  %1681 = vmatprep.subr.mxu0 0.0
  %1682 = vmatpush2.msra.mxu0 0.0
  %1683 = vmatprep.subr.mxu0 0.0
  %1684 = vmatpush2.msra.mxu0 0.0
  %1685 = vmatprep.subr.mxu0 0.0
  %1686 = vmatpush2.msra.mxu0 0.0
  %1687 = vmatprep.subr.mxu0 0.0
  %1688 = vmatpush2.msra.mxu0 0.0
  %1689 = vmatprep.subr.mxu0 0.0
  %1690 = vmatpush2.msra.mxu0 0.0
  %1691 = vmatprep.subr.mxu0 0.0
  %1692 = vmatpush2.msra.mxu0 0.0
  %1693 = vmatprep.subr.mxu0 0.0
  %1694 = vmatpush2.msra.mxu0 0.0
  %1695 = vmatprep.subr.mxu0 0.0
  %1696 = vmatpush2.msra.mxu0 0.0
  %1697 = vmatprep.subr.mxu0 0.0
  %1698 = vmatpush2.msra.mxu0 0.0
  %1699 = vmatprep.subr.mxu0 0.0
  %1700 = vmatpush2.msra.mxu0 0.0
  %1701 = vmatprep.subr.mxu0 0.0
  %1702 = vmatpush2.msra.mxu0 0.0
  %1703 = vmatprep.subr.mxu0 0.0
  %1704 = vmatpush2.msra.mxu0 0.0
  %1705 = vmatprep.subr.mxu0 0.0
  %1706 = vmatpush2.msra.mxu0 0.0
  %1707 = vmatprep.subr.mxu0 0.0
  %1708 = vmatpush2.msra.mxu0 0.0
  %1709 = vmatprep.mubr.f32.mxu0 0.0
  %1710 = vmatmul.mubr.f32.gmra.mxu0 %v1643
  %v1711 = vpop.f32.mrf.mxu0
  %v1712 = vadd.f32 %v1637, %v1711
  %v1713 = vpop.f32.mrf.mxu0
  %1714 = vdwg.mxu0
  %v1715 = vadd.f32 %v1712, %v614
  %v1716 = vxor.u32 %v1715, 2147483648
  %v1717 = vmul.f32 %v1716, 1.442695
  %v1718 = vpow.pop %v1717
  %v1719 = vadd.f32 %v1718, 1.0
  %v1720 = vrcp.pop %v1719
  %v1721 = vmul.f32 1.0, %v1720
  %v1722 = vtanh.pop %v1715
  %v1723 = vmul.f32 %v1721, %v1458
  %1725 = vrot.lane.b32.xlu0 %v1722, 64
  %v1726 = vpop.permute.xlu0 %1725
  %v1728 = vmul.f32 %v1721, %v1726
  %1730 = vrot.lane.b32.xlu0 %v1728, 32
  %v1731 = vpop.permute.xlu0 %1730
  %v1733 = vadd.f32 %v1723, %v1731
  %v1734 = vtanh.pop %v1733
  %1736 = vrot.lane.b32.xlu0 %v1734, 64
  %v1737 = vpop.permute.xlu0 %1736
  %v1739 = vmul.f32 %v1721, %v1737
  %1741 = vrot.lane.b32.xlu0 %v1739, 32
  %v1742 = vpop.permute.xlu0 %1741
  %s1744 = scalar_lea.vmem [#allocation3], 32
  %1745 = vst.msk [vmem:[%s1744] sm:$0xff] %vm366, %v1742
  %s1746 = scalar_lea.vmem [#allocation2], 40
  %v1747 = vld [vmem:[%s1746] sm:$0xff]
  %1748 = vmatprep.subr.mxu0 0.0
  %1749 = vmatpush1.msra.mxu0 0.0
  %1750 = vmatprep.subr.mxu0 0.0
  %1751 = vmatpush1.msra.mxu0 0.0
  %1752 = vmatprep.subr.mxu0 0.0
  %1753 = vmatpush1.msra.mxu0 0.0
  %1754 = vmatprep.subr.mxu0 0.0
  %1755 = vmatpush1.msra.mxu0 0.0
  %1756 = vmatprep.subr.mxu0 0.0
  %1757 = vmatpush1.msra.mxu0 0.0
  %1758 = vmatprep.subr.mxu0 0.0
  %1759 = vmatpush1.msra.mxu0 0.0
  %1760 = vmatprep.subr.mxu0 0.0
  %1761 = vmatpush1.msra.mxu0 0.0
  %1762 = vmatprep.subr.mxu0 0.0
  %1763 = vmatpush1.msra.mxu0 0.0
  %1764 = vmatprep.subr.mxu0 0.0
  %1765 = vmatpush1.msra.mxu0 0.0
  %1766 = vmatprep.subr.mxu0 0.0
  %1767 = vmatpush1.msra.mxu0 0.0
  %1768 = vmatprep.subr.mxu0 0.0
  %1769 = vmatpush1.msra.mxu0 0.0
  %1770 = vmatprep.subr.mxu0 0.0
  %1771 = vmatpush1.msra.mxu0 0.0
  %1772 = vmatprep.subr.mxu0 0.0
  %1773 = vmatpush1.msra.mxu0 %v355
  %1774 = vmatprep.subr.mxu0 0.0
  %1775 = vmatpush1.msra.mxu0 %v354
  %1776 = vmatprep.subr.mxu0 0.0
  %1777 = vmatpush1.msra.mxu0 %v353
  %1778 = vmatprep.subr.mxu0 0.0
  %1779 = vmatpush1.msra.mxu0 %v352
  %1780 = vmatprep.subr.mxu0 0.0
  %1781 = vmatpush2.msra.mxu0 0.0
  %1782 = vmatprep.subr.mxu0 0.0
  %1783 = vmatpush2.msra.mxu0 0.0
  %1784 = vmatprep.subr.mxu0 0.0
  %1785 = vmatpush2.msra.mxu0 0.0
  %1786 = vmatprep.subr.mxu0 0.0
  %1787 = vmatpush2.msra.mxu0 0.0
  %1788 = vmatprep.subr.mxu0 0.0
  %1789 = vmatpush2.msra.mxu0 0.0
  %1790 = vmatprep.subr.mxu0 0.0
  %1791 = vmatpush2.msra.mxu0 0.0
  %1792 = vmatprep.subr.mxu0 0.0
  %1793 = vmatpush2.msra.mxu0 0.0
  %1794 = vmatprep.subr.mxu0 0.0
  %1795 = vmatpush2.msra.mxu0 0.0
  %1796 = vmatprep.subr.mxu0 0.0
  %1797 = vmatpush2.msra.mxu0 0.0
  %1798 = vmatprep.subr.mxu0 0.0
  %1799 = vmatpush2.msra.mxu0 0.0
  %1800 = vmatprep.subr.mxu0 0.0
  %1801 = vmatpush2.msra.mxu0 0.0
  %1802 = vmatprep.subr.mxu0 0.0
  %1803 = vmatpush2.msra.mxu0 0.0
  %1804 = vmatprep.subr.mxu0 0.0
  %1805 = vmatpush2.msra.mxu0 0.0
  %1806 = vmatprep.subr.mxu0 0.0
  %1807 = vmatpush2.msra.mxu0 0.0
  %1808 = vmatprep.subr.mxu0 0.0
  %1809 = vmatpush2.msra.mxu0 0.0
  %1810 = vmatprep.subr.mxu0 0.0
  %1811 = vmatpush2.msra.mxu0 0.0
  %1812 = vmatprep.mubr.f32.mxu0 0.0
  %1813 = vmatmul.mubr.f32.gmra.mxu0 %v1643
  %v1814 = vpop.f32.mrf.mxu0
  %v1815 = vadd.f32 0.0, %v1814
  %v1816 = vpop.f32.mrf.mxu0
  %1817 = vdwg.mxu0
  %v1818 = vadd.f32 %v1747, %v1815
  %v1819 = vxor.u32 %v1818, 2147483648
  %v1820 = vmul.f32 %v1819, 1.442695
  %v1821 = vpow.pop %v1820
  %v1822 = vadd.f32 %v1821, 1.0
  %v1823 = vrcp.pop %v1822
  %v1824 = vmul.f32 1.0, %v1823
  %v1825 = vtanh.pop %v1818
  %v1826 = vmul.f32 %v1824, %v1561
  %1828 = vrot.lane.b32.xlu0 %v1825, 64
  %v1829 = vpop.permute.xlu0 %1828
  %v1831 = vmul.f32 %v1824, %v1829
  %1833 = vrot.lane.b32.xlu0 %v1831, 32
  %v1834 = vpop.permute.xlu0 %1833
  %v1836 = vadd.f32 %v1826, %v1834
  %v1837 = vtanh.pop %v1836
  %1839 = vrot.lane.b32.xlu0 %v1837, 64
  %v1840 = vpop.permute.xlu0 %1839
  %v1842 = vmul.f32 %v1824, %v1840
  %v1843 = vsel %vm366, %v1742, 0
  %1845 = vmatprep.subr.mxu0 0.0
  %1846 = vmatpush1.msra.mxu0 0.0
  %1847 = vmatprep.subr.mxu0 0.0
  %1848 = vmatpush1.msra.mxu0 0.0
  %1849 = vmatprep.subr.mxu0 0.0
  %1850 = vmatpush1.msra.mxu0 0.0
  %1851 = vmatprep.subr.mxu0 0.0
  %1852 = vmatpush1.msra.mxu0 0.0
  %1853 = vmatprep.subr.mxu0 0.0
  %1854 = vmatpush1.msra.mxu0 0.0
  %1855 = vmatprep.subr.mxu0 0.0
  %1856 = vmatpush1.msra.mxu0 0.0
  %1857 = vmatprep.subr.mxu0 0.0
  %1858 = vmatpush1.msra.mxu0 0.0
  %1859 = vmatprep.subr.mxu0 0.0
  %1860 = vmatpush1.msra.mxu0 0.0
  %1861 = vmatprep.subr.mxu0 0.0
  %1862 = vmatpush1.msra.mxu0 0.0
  %1863 = vmatprep.subr.mxu0 0.0
  %1864 = vmatpush1.msra.mxu0 0.0
  %1865 = vmatprep.subr.mxu0 0.0
  %1866 = vmatpush1.msra.mxu0 0.0
  %1867 = vmatprep.subr.mxu0 0.0
  %1868 = vmatpush1.msra.mxu0 0.0
  %1869 = vmatprep.subr.mxu0 0.0
  %1870 = vmatpush1.msra.mxu0 %v363
  %1871 = vmatprep.subr.mxu0 0.0
  %1872 = vmatpush1.msra.mxu0 %v362
  %1873 = vmatprep.subr.mxu0 0.0
  %1874 = vmatpush1.msra.mxu0 %v361
  %1875 = vmatprep.subr.mxu0 0.0
  %1876 = vmatpush1.msra.mxu0 %v360
  %1877 = vmatprep.subr.mxu0 0.0
  %1878 = vmatpush2.msra.mxu0 0.0
  %1879 = vmatprep.subr.mxu0 0.0
  %1880 = vmatpush2.msra.mxu0 0.0
  %1881 = vmatprep.subr.mxu0 0.0
  %1882 = vmatpush2.msra.mxu0 0.0
  %1883 = vmatprep.subr.mxu0 0.0
  %1884 = vmatpush2.msra.mxu0 0.0
  %1885 = vmatprep.subr.mxu0 0.0
  %1886 = vmatpush2.msra.mxu0 0.0
  %1887 = vmatprep.subr.mxu0 0.0
  %1888 = vmatpush2.msra.mxu0 0.0
  %1889 = vmatprep.subr.mxu0 0.0
  %1890 = vmatpush2.msra.mxu0 0.0
  %1891 = vmatprep.subr.mxu0 0.0
  %1892 = vmatpush2.msra.mxu0 0.0
  %1893 = vmatprep.subr.mxu0 0.0
  %1894 = vmatpush2.msra.mxu0 0.0
  %1895 = vmatprep.subr.mxu0 0.0
  %1896 = vmatpush2.msra.mxu0 0.0
  %1897 = vmatprep.subr.mxu0 0.0
  %1898 = vmatpush2.msra.mxu0 0.0
  %1899 = vmatprep.subr.mxu0 0.0
  %1900 = vmatpush2.msra.mxu0 0.0
  %1901 = vmatprep.subr.mxu0 0.0
  %1902 = vmatpush2.msra.mxu0 0.0
  %1903 = vmatprep.subr.mxu0 0.0
  %1904 = vmatpush2.msra.mxu0 0.0
  %1905 = vmatprep.subr.mxu0 0.0
  %1906 = vmatpush2.msra.mxu0 0.0
  %1907 = vmatprep.subr.mxu0 0.0
  %1908 = vmatpush2.msra.mxu0 0.0
  %1909 = vmatprep.mubr.f32.mxu0 0.0
  %1910 = vmatmul.mubr.f32.gmra.mxu0 %v1843
  %v1911 = vpop.f32.mrf.mxu0
  %v1912 = vadd.f32 0.0, %v1911
  %v1913 = vpop.f32.mrf.mxu0
  %1914 = vdwg.mxu0
  %1916 = vrot.lane.b32.xlu0 %v1842, 32
  %v1917 = vpop.permute.xlu0 %1916
  %v1918 = vsel %vm366, %v1917, 0
  %1920 = vmatprep.subr.mxu0 0.0
  %1921 = vmatpush1.msra.mxu0 0.0
  %1922 = vmatprep.subr.mxu0 0.0
  %1923 = vmatpush1.msra.mxu0 0.0
  %1924 = vmatprep.subr.mxu0 0.0
  %1925 = vmatpush1.msra.mxu0 0.0
  %1926 = vmatprep.subr.mxu0 0.0
  %1927 = vmatpush1.msra.mxu0 0.0
  %1928 = vmatprep.subr.mxu0 0.0
  %1929 = vmatpush1.msra.mxu0 0.0
  %1930 = vmatprep.subr.mxu0 0.0
  %1931 = vmatpush1.msra.mxu0 0.0
  %1932 = vmatprep.subr.mxu0 0.0
  %1933 = vmatpush1.msra.mxu0 0.0
  %1934 = vmatprep.subr.mxu0 0.0
  %1935 = vmatpush1.msra.mxu0 0.0
  %1936 = vmatprep.subr.mxu0 0.0
  %1937 = vmatpush1.msra.mxu0 0.0
  %1938 = vmatprep.subr.mxu0 0.0
  %1939 = vmatpush1.msra.mxu0 0.0
  %1940 = vmatprep.subr.mxu0 0.0
  %1941 = vmatpush1.msra.mxu0 0.0
  %1942 = vmatprep.subr.mxu0 0.0
  %1943 = vmatpush1.msra.mxu0 0.0
  %1944 = vmatprep.subr.mxu0 0.0
  %1945 = vmatpush1.msra.mxu0 %v359
  %1946 = vmatprep.subr.mxu0 0.0
  %1947 = vmatpush1.msra.mxu0 %v358
  %1948 = vmatprep.subr.mxu0 0.0
  %1949 = vmatpush1.msra.mxu0 %v357
  %1950 = vmatprep.subr.mxu0 0.0
  %1951 = vmatpush1.msra.mxu0 %v356
  %1952 = vmatprep.subr.mxu0 0.0
  %1953 = vmatpush2.msra.mxu0 0.0
  %1954 = vmatprep.subr.mxu0 0.0
  %1955 = vmatpush2.msra.mxu0 0.0
  %1956 = vmatprep.subr.mxu0 0.0
  %1957 = vmatpush2.msra.mxu0 0.0
  %1958 = vmatprep.subr.mxu0 0.0
  %1959 = vmatpush2.msra.mxu0 0.0
  %1960 = vmatprep.subr.mxu0 0.0
  %1961 = vmatpush2.msra.mxu0 0.0
  %1962 = vmatprep.subr.mxu0 0.0
  %1963 = vmatpush2.msra.mxu0 0.0
  %1964 = vmatprep.subr.mxu0 0.0
  %1965 = vmatpush2.msra.mxu0 0.0
  %1966 = vmatprep.subr.mxu0 0.0
  %1967 = vmatpush2.msra.mxu0 0.0
  %1968 = vmatprep.subr.mxu0 0.0
  %1969 = vmatpush2.msra.mxu0 0.0
  %1970 = vmatprep.subr.mxu0 0.0
  %1971 = vmatpush2.msra.mxu0 0.0
  %1972 = vmatprep.subr.mxu0 0.0
  %1973 = vmatpush2.msra.mxu0 0.0
  %1974 = vmatprep.subr.mxu0 0.0
  %1975 = vmatpush2.msra.mxu0 0.0
  %1976 = vmatprep.subr.mxu0 0.0
  %1977 = vmatpush2.msra.mxu0 0.0
  %1978 = vmatprep.subr.mxu0 0.0
  %1979 = vmatpush2.msra.mxu0 0.0
  %1980 = vmatprep.subr.mxu0 0.0
  %1981 = vmatpush2.msra.mxu0 0.0
  %1982 = vmatprep.subr.mxu0 0.0
  %1983 = vmatpush2.msra.mxu0 0.0
  %1984 = vmatprep.mubr.f32.mxu0 0.0
  %1985 = vmatmul.mubr.f32.gmra.mxu0 %v1918
  %v1986 = vpop.f32.mrf.mxu0
  %v1987 = vadd.f32 %v1912, %v1986
  %v1988 = vpop.f32.mrf.mxu0
  %1989 = vdwg.mxu0
  %v1990 = vadd.f32 %v1987, %v614
  %v1991 = vxor.u32 %v1990, 2147483648
  %v1992 = vmul.f32 %v1991, 1.442695
  %v1993 = vpow.pop %v1992
  %v1994 = vadd.f32 %v1993, 1.0
  %v1995 = vrcp.pop %v1994
  %v1996 = vmul.f32 1.0, %v1995
  %v1997 = vtanh.pop %v1990
  %v1998 = vmul.f32 %v1996, %v1733
  %2000 = vrot.lane.b32.xlu0 %v1997, 64
  %v2001 = vpop.permute.xlu0 %2000
  %v2003 = vmul.f32 %v1996, %v2001
  %2005 = vrot.lane.b32.xlu0 %v2003, 32
  %v2006 = vpop.permute.xlu0 %2005
  %v2008 = vadd.f32 %v1998, %v2006
  %v2009 = vtanh.pop %v2008
  %2011 = vrot.lane.b32.xlu0 %v2009, 64
  %v2012 = vpop.permute.xlu0 %2011
  %v2014 = vmul.f32 %v1996, %v2012
  %2016 = vrot.lane.b32.xlu0 %v2014, 32
  %v2017 = vpop.permute.xlu0 %2016
  %s2019 = scalar_lea.vmem [#allocation3], 40
  %2020 = vst.msk [vmem:[%s2019] sm:$0xff] %vm366, %v2017
  %s2021 = scalar_lea.vmem [#allocation2], 48
  %v2022 = vld [vmem:[%s2021] sm:$0xff]
  %2023 = vmatprep.subr.mxu0 0.0
  %2024 = vmatpush1.msra.mxu0 0.0
  %2025 = vmatprep.subr.mxu0 0.0
  %2026 = vmatpush1.msra.mxu0 0.0
  %2027 = vmatprep.subr.mxu0 0.0
  %2028 = vmatpush1.msra.mxu0 0.0
  %2029 = vmatprep.subr.mxu0 0.0
  %2030 = vmatpush1.msra.mxu0 0.0
  %2031 = vmatprep.subr.mxu0 0.0
  %2032 = vmatpush1.msra.mxu0 0.0
  %2033 = vmatprep.subr.mxu0 0.0
  %2034 = vmatpush1.msra.mxu0 0.0
  %2035 = vmatprep.subr.mxu0 0.0
  %2036 = vmatpush1.msra.mxu0 0.0
  %2037 = vmatprep.subr.mxu0 0.0
  %2038 = vmatpush1.msra.mxu0 0.0
  %2039 = vmatprep.subr.mxu0 0.0
  %2040 = vmatpush1.msra.mxu0 0.0
  %2041 = vmatprep.subr.mxu0 0.0
  %2042 = vmatpush1.msra.mxu0 0.0
  %2043 = vmatprep.subr.mxu0 0.0
  %2044 = vmatpush1.msra.mxu0 0.0
  %2045 = vmatprep.subr.mxu0 0.0
  %2046 = vmatpush1.msra.mxu0 0.0
  %2047 = vmatprep.subr.mxu0 0.0
  %2048 = vmatpush1.msra.mxu0 %v355
  %2049 = vmatprep.subr.mxu0 0.0
  %2050 = vmatpush1.msra.mxu0 %v354
  %2051 = vmatprep.subr.mxu0 0.0
  %2052 = vmatpush1.msra.mxu0 %v353
  %2053 = vmatprep.subr.mxu0 0.0
  %2054 = vmatpush1.msra.mxu0 %v352
  %2055 = vmatprep.subr.mxu0 0.0
  %2056 = vmatpush2.msra.mxu0 0.0
  %2057 = vmatprep.subr.mxu0 0.0
  %2058 = vmatpush2.msra.mxu0 0.0
  %2059 = vmatprep.subr.mxu0 0.0
  %2060 = vmatpush2.msra.mxu0 0.0
  %2061 = vmatprep.subr.mxu0 0.0
  %2062 = vmatpush2.msra.mxu0 0.0
  %2063 = vmatprep.subr.mxu0 0.0
  %2064 = vmatpush2.msra.mxu0 0.0
  %2065 = vmatprep.subr.mxu0 0.0
  %2066 = vmatpush2.msra.mxu0 0.0
  %2067 = vmatprep.subr.mxu0 0.0
  %2068 = vmatpush2.msra.mxu0 0.0
  %2069 = vmatprep.subr.mxu0 0.0
  %2070 = vmatpush2.msra.mxu0 0.0
  %2071 = vmatprep.subr.mxu0 0.0
  %2072 = vmatpush2.msra.mxu0 0.0
  %2073 = vmatprep.subr.mxu0 0.0
  %2074 = vmatpush2.msra.mxu0 0.0
  %2075 = vmatprep.subr.mxu0 0.0
  %2076 = vmatpush2.msra.mxu0 0.0
  %2077 = vmatprep.subr.mxu0 0.0
  %2078 = vmatpush2.msra.mxu0 0.0
  %2079 = vmatprep.subr.mxu0 0.0
  %2080 = vmatpush2.msra.mxu0 0.0
  %2081 = vmatprep.subr.mxu0 0.0
  %2082 = vmatpush2.msra.mxu0 0.0
  %2083 = vmatprep.subr.mxu0 0.0
  %2084 = vmatpush2.msra.mxu0 0.0
  %2085 = vmatprep.subr.mxu0 0.0
  %2086 = vmatpush2.msra.mxu0 0.0
  %2087 = vmatprep.mubr.f32.mxu0 0.0
  %2088 = vmatmul.mubr.f32.gmra.mxu0 %v1918
  %v2089 = vpop.f32.mrf.mxu0
  %v2090 = vadd.f32 0.0, %v2089
  %v2091 = vpop.f32.mrf.mxu0
  %2092 = vdwg.mxu0
  %v2093 = vadd.f32 %v2022, %v2090
  %v2094 = vxor.u32 %v2093, 2147483648
  %v2095 = vmul.f32 %v2094, 1.442695
  %v2096 = vpow.pop %v2095
  %v2097 = vadd.f32 %v2096, 1.0
  %v2098 = vrcp.pop %v2097
  %v2099 = vmul.f32 1.0, %v2098
  %v2100 = vtanh.pop %v2093
  %v2101 = vmul.f32 %v2099, %v1836
  %2103 = vrot.lane.b32.xlu0 %v2100, 64
  %v2104 = vpop.permute.xlu0 %2103
  %v2106 = vmul.f32 %v2099, %v2104
  %2108 = vrot.lane.b32.xlu0 %v2106, 32
  %v2109 = vpop.permute.xlu0 %2108
  %v2111 = vadd.f32 %v2101, %v2109
  %v2112 = vtanh.pop %v2111
  %2114 = vrot.lane.b32.xlu0 %v2112, 64
  %v2115 = vpop.permute.xlu0 %2114
  %v2117 = vmul.f32 %v2099, %v2115
  %v2118 = vsel %vm366, %v2017, 0
  %2120 = vmatprep.subr.mxu0 0.0
  %2121 = vmatpush1.msra.mxu0 0.0
  %2122 = vmatprep.subr.mxu0 0.0
  %2123 = vmatpush1.msra.mxu0 0.0
  %2124 = vmatprep.subr.mxu0 0.0
  %2125 = vmatpush1.msra.mxu0 0.0
  %2126 = vmatprep.subr.mxu0 0.0
  %2127 = vmatpush1.msra.mxu0 0.0
  %2128 = vmatprep.subr.mxu0 0.0
  %2129 = vmatpush1.msra.mxu0 0.0
  %2130 = vmatprep.subr.mxu0 0.0
  %2131 = vmatpush1.msra.mxu0 0.0
  %2132 = vmatprep.subr.mxu0 0.0
  %2133 = vmatpush1.msra.mxu0 0.0
  %2134 = vmatprep.subr.mxu0 0.0
  %2135 = vmatpush1.msra.mxu0 0.0
  %2136 = vmatprep.subr.mxu0 0.0
  %2137 = vmatpush1.msra.mxu0 0.0
  %2138 = vmatprep.subr.mxu0 0.0
  %2139 = vmatpush1.msra.mxu0 0.0
  %2140 = vmatprep.subr.mxu0 0.0
  %2141 = vmatpush1.msra.mxu0 0.0
  %2142 = vmatprep.subr.mxu0 0.0
  %2143 = vmatpush1.msra.mxu0 0.0
  %2144 = vmatprep.subr.mxu0 0.0
  %2145 = vmatpush1.msra.mxu0 %v363
  %2146 = vmatprep.subr.mxu0 0.0
  %2147 = vmatpush1.msra.mxu0 %v362
  %2148 = vmatprep.subr.mxu0 0.0
  %2149 = vmatpush1.msra.mxu0 %v361
  %2150 = vmatprep.subr.mxu0 0.0
  %2151 = vmatpush1.msra.mxu0 %v360
  %2152 = vmatprep.subr.mxu0 0.0
  %2153 = vmatpush2.msra.mxu0 0.0
  %2154 = vmatprep.subr.mxu0 0.0
  %2155 = vmatpush2.msra.mxu0 0.0
  %2156 = vmatprep.subr.mxu0 0.0
  %2157 = vmatpush2.msra.mxu0 0.0
  %2158 = vmatprep.subr.mxu0 0.0
  %2159 = vmatpush2.msra.mxu0 0.0
  %2160 = vmatprep.subr.mxu0 0.0
  %2161 = vmatpush2.msra.mxu0 0.0
  %2162 = vmatprep.subr.mxu0 0.0
  %2163 = vmatpush2.msra.mxu0 0.0
  %2164 = vmatprep.subr.mxu0 0.0
  %2165 = vmatpush2.msra.mxu0 0.0
  %2166 = vmatprep.subr.mxu0 0.0
  %2167 = vmatpush2.msra.mxu0 0.0
  %2168 = vmatprep.subr.mxu0 0.0
  %2169 = vmatpush2.msra.mxu0 0.0
  %2170 = vmatprep.subr.mxu0 0.0
  %2171 = vmatpush2.msra.mxu0 0.0
  %2172 = vmatprep.subr.mxu0 0.0
  %2173 = vmatpush2.msra.mxu0 0.0
  %2174 = vmatprep.subr.mxu0 0.0
  %2175 = vmatpush2.msra.mxu0 0.0
  %2176 = vmatprep.subr.mxu0 0.0
  %2177 = vmatpush2.msra.mxu0 0.0
  %2178 = vmatprep.subr.mxu0 0.0
  %2179 = vmatpush2.msra.mxu0 0.0
  %2180 = vmatprep.subr.mxu0 0.0
  %2181 = vmatpush2.msra.mxu0 0.0
  %2182 = vmatprep.subr.mxu0 0.0
  %2183 = vmatpush2.msra.mxu0 0.0
  %2184 = vmatprep.mubr.f32.mxu0 0.0
  %2185 = vmatmul.mubr.f32.gmra.mxu0 %v2118
  %v2186 = vpop.f32.mrf.mxu0
  %v2187 = vadd.f32 0.0, %v2186
  %v2188 = vpop.f32.mrf.mxu0
  %2189 = vdwg.mxu0
  %2191 = vrot.lane.b32.xlu0 %v2117, 32
  %v2192 = vpop.permute.xlu0 %2191
  %v2193 = vsel %vm366, %v2192, 0
  %2195 = vmatprep.subr.mxu0 0.0
  %2196 = vmatpush1.msra.mxu0 0.0
  %2197 = vmatprep.subr.mxu0 0.0
  %2198 = vmatpush1.msra.mxu0 0.0
  %2199 = vmatprep.subr.mxu0 0.0
  %2200 = vmatpush1.msra.mxu0 0.0
  %2201 = vmatprep.subr.mxu0 0.0
  %2202 = vmatpush1.msra.mxu0 0.0
  %2203 = vmatprep.subr.mxu0 0.0
  %2204 = vmatpush1.msra.mxu0 0.0
  %2205 = vmatprep.subr.mxu0 0.0
  %2206 = vmatpush1.msra.mxu0 0.0
  %2207 = vmatprep.subr.mxu0 0.0
  %2208 = vmatpush1.msra.mxu0 0.0
  %2209 = vmatprep.subr.mxu0 0.0
  %2210 = vmatpush1.msra.mxu0 0.0
  %2211 = vmatprep.subr.mxu0 0.0
  %2212 = vmatpush1.msra.mxu0 0.0
  %2213 = vmatprep.subr.mxu0 0.0
  %2214 = vmatpush1.msra.mxu0 0.0
  %2215 = vmatprep.subr.mxu0 0.0
  %2216 = vmatpush1.msra.mxu0 0.0
  %2217 = vmatprep.subr.mxu0 0.0
  %2218 = vmatpush1.msra.mxu0 0.0
  %2219 = vmatprep.subr.mxu0 0.0
  %2220 = vmatpush1.msra.mxu0 %v359
  %2221 = vmatprep.subr.mxu0 0.0
  %2222 = vmatpush1.msra.mxu0 %v358
  %2223 = vmatprep.subr.mxu0 0.0
  %2224 = vmatpush1.msra.mxu0 %v357
  %2225 = vmatprep.subr.mxu0 0.0
  %2226 = vmatpush1.msra.mxu0 %v356
  %2227 = vmatprep.subr.mxu0 0.0
  %2228 = vmatpush2.msra.mxu0 0.0
  %2229 = vmatprep.subr.mxu0 0.0
  %2230 = vmatpush2.msra.mxu0 0.0
  %2231 = vmatprep.subr.mxu0 0.0
  %2232 = vmatpush2.msra.mxu0 0.0
  %2233 = vmatprep.subr.mxu0 0.0
  %2234 = vmatpush2.msra.mxu0 0.0
  %2235 = vmatprep.subr.mxu0 0.0
  %2236 = vmatpush2.msra.mxu0 0.0
  %2237 = vmatprep.subr.mxu0 0.0
  %2238 = vmatpush2.msra.mxu0 0.0
  %2239 = vmatprep.subr.mxu0 0.0
  %2240 = vmatpush2.msra.mxu0 0.0
  %2241 = vmatprep.subr.mxu0 0.0
  %2242 = vmatpush2.msra.mxu0 0.0
  %2243 = vmatprep.subr.mxu0 0.0
  %2244 = vmatpush2.msra.mxu0 0.0
  %2245 = vmatprep.subr.mxu0 0.0
  %2246 = vmatpush2.msra.mxu0 0.0
  %2247 = vmatprep.subr.mxu0 0.0
  %2248 = vmatpush2.msra.mxu0 0.0
  %2249 = vmatprep.subr.mxu0 0.0
  %2250 = vmatpush2.msra.mxu0 0.0
  %2251 = vmatprep.subr.mxu0 0.0
  %2252 = vmatpush2.msra.mxu0 0.0
  %2253 = vmatprep.subr.mxu0 0.0
  %2254 = vmatpush2.msra.mxu0 0.0
  %2255 = vmatprep.subr.mxu0 0.0
  %2256 = vmatpush2.msra.mxu0 0.0
  %2257 = vmatprep.subr.mxu0 0.0
  %2258 = vmatpush2.msra.mxu0 0.0
  %2259 = vmatprep.mubr.f32.mxu0 0.0
  %2260 = vmatmul.mubr.f32.gmra.mxu0 %v2193
  %v2261 = vpop.f32.mrf.mxu0
  %v2262 = vadd.f32 %v2187, %v2261
  %v2263 = vpop.f32.mrf.mxu0
  %2264 = vdwg.mxu0
  %v2265 = vadd.f32 %v2262, %v614
  %v2266 = vxor.u32 %v2265, 2147483648
  %v2267 = vmul.f32 %v2266, 1.442695
  %v2268 = vpow.pop %v2267
  %v2269 = vadd.f32 %v2268, 1.0
  %v2270 = vrcp.pop %v2269
  %v2271 = vmul.f32 1.0, %v2270
  %v2272 = vtanh.pop %v2265
  %v2273 = vmul.f32 %v2271, %v2008
  %2275 = vrot.lane.b32.xlu0 %v2272, 64
  %v2276 = vpop.permute.xlu0 %2275
  %v2278 = vmul.f32 %v2271, %v2276
  %2280 = vrot.lane.b32.xlu0 %v2278, 32
  %v2281 = vpop.permute.xlu0 %2280
  %v2283 = vadd.f32 %v2273, %v2281
  %v2284 = vtanh.pop %v2283
  %2286 = vrot.lane.b32.xlu0 %v2284, 64
  %v2287 = vpop.permute.xlu0 %2286
  %v2289 = vmul.f32 %v2271, %v2287
  %2291 = vrot.lane.b32.xlu0 %v2289, 32
  %v2292 = vpop.permute.xlu0 %2291
  %s2294 = scalar_lea.vmem [#allocation3], 48
  %2295 = vst.msk [vmem:[%s2294] sm:$0xff] %vm366, %v2292
  %s2296 = scalar_lea.vmem [#allocation2], 56
  %v2297 = vld [vmem:[%s2296] sm:$0xff]
  %2298 = vmatprep.subr.mxu0 0.0
  %2299 = vmatpush1.msra.mxu0 0.0
  %2300 = vmatprep.subr.mxu0 0.0
  %2301 = vmatpush1.msra.mxu0 0.0
  %2302 = vmatprep.subr.mxu0 0.0
  %2303 = vmatpush1.msra.mxu0 0.0
  %2304 = vmatprep.subr.mxu0 0.0
  %2305 = vmatpush1.msra.mxu0 0.0
  %2306 = vmatprep.subr.mxu0 0.0
  %2307 = vmatpush1.msra.mxu0 0.0
  %2308 = vmatprep.subr.mxu0 0.0
  %2309 = vmatpush1.msra.mxu0 0.0
  %2310 = vmatprep.subr.mxu0 0.0
  %2311 = vmatpush1.msra.mxu0 0.0
  %2312 = vmatprep.subr.mxu0 0.0
  %2313 = vmatpush1.msra.mxu0 0.0
  %2314 = vmatprep.subr.mxu0 0.0
  %2315 = vmatpush1.msra.mxu0 0.0
  %2316 = vmatprep.subr.mxu0 0.0
  %2317 = vmatpush1.msra.mxu0 0.0
  %2318 = vmatprep.subr.mxu0 0.0
  %2319 = vmatpush1.msra.mxu0 0.0
  %2320 = vmatprep.subr.mxu0 0.0
  %2321 = vmatpush1.msra.mxu0 0.0
  %2322 = vmatprep.subr.mxu0 0.0
  %2323 = vmatpush1.msra.mxu0 %v355
  %2324 = vmatprep.subr.mxu0 0.0
  %2325 = vmatpush1.msra.mxu0 %v354
  %2326 = vmatprep.subr.mxu0 0.0
  %2327 = vmatpush1.msra.mxu0 %v353
  %2328 = vmatprep.subr.mxu0 0.0
  %2329 = vmatpush1.msra.mxu0 %v352
  %2330 = vmatprep.subr.mxu0 0.0
  %2331 = vmatpush2.msra.mxu0 0.0
  %2332 = vmatprep.subr.mxu0 0.0
  %2333 = vmatpush2.msra.mxu0 0.0
  %2334 = vmatprep.subr.mxu0 0.0
  %2335 = vmatpush2.msra.mxu0 0.0
  %2336 = vmatprep.subr.mxu0 0.0
  %2337 = vmatpush2.msra.mxu0 0.0
  %2338 = vmatprep.subr.mxu0 0.0
  %2339 = vmatpush2.msra.mxu0 0.0
  %2340 = vmatprep.subr.mxu0 0.0
  %2341 = vmatpush2.msra.mxu0 0.0
  %2342 = vmatprep.subr.mxu0 0.0
  %2343 = vmatpush2.msra.mxu0 0.0
  %2344 = vmatprep.subr.mxu0 0.0
  %2345 = vmatpush2.msra.mxu0 0.0
  %2346 = vmatprep.subr.mxu0 0.0
  %2347 = vmatpush2.msra.mxu0 0.0
  %2348 = vmatprep.subr.mxu0 0.0
  %2349 = vmatpush2.msra.mxu0 0.0
  %2350 = vmatprep.subr.mxu0 0.0
  %2351 = vmatpush2.msra.mxu0 0.0
  %2352 = vmatprep.subr.mxu0 0.0
  %2353 = vmatpush2.msra.mxu0 0.0
  %2354 = vmatprep.subr.mxu0 0.0
  %2355 = vmatpush2.msra.mxu0 0.0
  %2356 = vmatprep.subr.mxu0 0.0
  %2357 = vmatpush2.msra.mxu0 0.0
  %2358 = vmatprep.subr.mxu0 0.0
  %2359 = vmatpush2.msra.mxu0 0.0
  %2360 = vmatprep.subr.mxu0 0.0
  %2361 = vmatpush2.msra.mxu0 0.0
  %2362 = vmatprep.mubr.f32.mxu0 0.0
  %2363 = vmatmul.mubr.f32.gmra.mxu0 %v2193
  %v2364 = vpop.f32.mrf.mxu0
  %v2365 = vadd.f32 0.0, %v2364
  %v2366 = vpop.f32.mrf.mxu0
  %2367 = vdwg.mxu0
  %v2368 = vadd.f32 %v2297, %v2365
  %v2369 = vxor.u32 %v2368, 2147483648
  %v2370 = vmul.f32 %v2369, 1.442695
  %v2371 = vpow.pop %v2370
  %v2372 = vadd.f32 %v2371, 1.0
  %v2373 = vrcp.pop %v2372
  %v2374 = vmul.f32 1.0, %v2373
  %v2375 = vtanh.pop %v2368
  %v2376 = vmul.f32 %v2374, %v2111
  %2378 = vrot.lane.b32.xlu0 %v2375, 64
  %v2379 = vpop.permute.xlu0 %2378
  %v2381 = vmul.f32 %v2374, %v2379
  %2383 = vrot.lane.b32.xlu0 %v2381, 32
  %v2384 = vpop.permute.xlu0 %2383
  %v2386 = vadd.f32 %v2376, %v2384
  %v2387 = vtanh.pop %v2386
  %2389 = vrot.lane.b32.xlu0 %v2387, 64
  %v2390 = vpop.permute.xlu0 %2389
  %v2392 = vmul.f32 %v2374, %v2390
  %v2393 = vsel %vm366, %v2292, 0
  %2395 = vmatprep.subr.mxu0 0.0
  %2396 = vmatpush1.msra.mxu0 0.0
  %2397 = vmatprep.subr.mxu0 0.0
  %2398 = vmatpush1.msra.mxu0 0.0
  %2399 = vmatprep.subr.mxu0 0.0
  %2400 = vmatpush1.msra.mxu0 0.0
  %2401 = vmatprep.subr.mxu0 0.0
  %2402 = vmatpush1.msra.mxu0 0.0
  %2403 = vmatprep.subr.mxu0 0.0
  %2404 = vmatpush1.msra.mxu0 0.0
  %2405 = vmatprep.subr.mxu0 0.0
  %2406 = vmatpush1.msra.mxu0 0.0
  %2407 = vmatprep.subr.mxu0 0.0
  %2408 = vmatpush1.msra.mxu0 0.0
  %2409 = vmatprep.subr.mxu0 0.0
  %2410 = vmatpush1.msra.mxu0 0.0
  %2411 = vmatprep.subr.mxu0 0.0
  %2412 = vmatpush1.msra.mxu0 0.0
  %2413 = vmatprep.subr.mxu0 0.0
  %2414 = vmatpush1.msra.mxu0 0.0
  %2415 = vmatprep.subr.mxu0 0.0
  %2416 = vmatpush1.msra.mxu0 0.0
  %2417 = vmatprep.subr.mxu0 0.0
  %2418 = vmatpush1.msra.mxu0 0.0
  %2419 = vmatprep.subr.mxu0 0.0
  %2420 = vmatpush1.msra.mxu0 %v363
  %2421 = vmatprep.subr.mxu0 0.0
  %2422 = vmatpush1.msra.mxu0 %v362
  %2423 = vmatprep.subr.mxu0 0.0
  %2424 = vmatpush1.msra.mxu0 %v361
  %2425 = vmatprep.subr.mxu0 0.0
  %2426 = vmatpush1.msra.mxu0 %v360
  %2427 = vmatprep.subr.mxu0 0.0
  %2428 = vmatpush2.msra.mxu0 0.0
  %2429 = vmatprep.subr.mxu0 0.0
  %2430 = vmatpush2.msra.mxu0 0.0
  %2431 = vmatprep.subr.mxu0 0.0
  %2432 = vmatpush2.msra.mxu0 0.0
  %2433 = vmatprep.subr.mxu0 0.0
  %2434 = vmatpush2.msra.mxu0 0.0
  %2435 = vmatprep.subr.mxu0 0.0
  %2436 = vmatpush2.msra.mxu0 0.0
  %2437 = vmatprep.subr.mxu0 0.0
  %2438 = vmatpush2.msra.mxu0 0.0
  %2439 = vmatprep.subr.mxu0 0.0
  %2440 = vmatpush2.msra.mxu0 0.0
  %2441 = vmatprep.subr.mxu0 0.0
  %2442 = vmatpush2.msra.mxu0 0.0
  %2443 = vmatprep.subr.mxu0 0.0
  %2444 = vmatpush2.msra.mxu0 0.0
  %2445 = vmatprep.subr.mxu0 0.0
  %2446 = vmatpush2.msra.mxu0 0.0
  %2447 = vmatprep.subr.mxu0 0.0
  %2448 = vmatpush2.msra.mxu0 0.0
  %2449 = vmatprep.subr.mxu0 0.0
  %2450 = vmatpush2.msra.mxu0 0.0
  %2451 = vmatprep.subr.mxu0 0.0
  %2452 = vmatpush2.msra.mxu0 0.0
  %2453 = vmatprep.subr.mxu0 0.0
  %2454 = vmatpush2.msra.mxu0 0.0
  %2455 = vmatprep.subr.mxu0 0.0
  %2456 = vmatpush2.msra.mxu0 0.0
  %2457 = vmatprep.subr.mxu0 0.0
  %2458 = vmatpush2.msra.mxu0 0.0
  %2459 = vmatprep.mubr.f32.mxu0 0.0
  %2460 = vmatmul.mubr.f32.gmra.mxu0 %v2393
  %v2461 = vpop.f32.mrf.mxu0
  %v2462 = vadd.f32 0.0, %v2461
  %v2463 = vpop.f32.mrf.mxu0
  %2464 = vdwg.mxu0
  %2466 = vrot.lane.b32.xlu0 %v2392, 32
  %v2467 = vpop.permute.xlu0 %2466
  %v2468 = vsel %vm366, %v2467, 0
  %2470 = vmatprep.subr.mxu0 0.0
  %2471 = vmatpush1.msra.mxu0 0.0
  %2472 = vmatprep.subr.mxu0 0.0
  %2473 = vmatpush1.msra.mxu0 0.0
  %2474 = vmatprep.subr.mxu0 0.0
  %2475 = vmatpush1.msra.mxu0 0.0
  %2476 = vmatprep.subr.mxu0 0.0
  %2477 = vmatpush1.msra.mxu0 0.0
  %2478 = vmatprep.subr.mxu0 0.0
  %2479 = vmatpush1.msra.mxu0 0.0
  %2480 = vmatprep.subr.mxu0 0.0
  %2481 = vmatpush1.msra.mxu0 0.0
  %2482 = vmatprep.subr.mxu0 0.0
  %2483 = vmatpush1.msra.mxu0 0.0
  %2484 = vmatprep.subr.mxu0 0.0
  %2485 = vmatpush1.msra.mxu0 0.0
  %2486 = vmatprep.subr.mxu0 0.0
  %2487 = vmatpush1.msra.mxu0 0.0
  %2488 = vmatprep.subr.mxu0 0.0
  %2489 = vmatpush1.msra.mxu0 0.0
  %2490 = vmatprep.subr.mxu0 0.0
  %2491 = vmatpush1.msra.mxu0 0.0
  %2492 = vmatprep.subr.mxu0 0.0
  %2493 = vmatpush1.msra.mxu0 0.0
  %2494 = vmatprep.subr.mxu0 0.0
  %2495 = vmatpush1.msra.mxu0 %v359
  %2496 = vmatprep.subr.mxu0 0.0
  %2497 = vmatpush1.msra.mxu0 %v358
  %2498 = vmatprep.subr.mxu0 0.0
  %2499 = vmatpush1.msra.mxu0 %v357
  %2500 = vmatprep.subr.mxu0 0.0
  %2501 = vmatpush1.msra.mxu0 %v356
  %2502 = vmatprep.subr.mxu0 0.0
  %2503 = vmatpush2.msra.mxu0 0.0
  %2504 = vmatprep.subr.mxu0 0.0
  %2505 = vmatpush2.msra.mxu0 0.0
  %2506 = vmatprep.subr.mxu0 0.0
  %2507 = vmatpush2.msra.mxu0 0.0
  %2508 = vmatprep.subr.mxu0 0.0
  %2509 = vmatpush2.msra.mxu0 0.0
  %2510 = vmatprep.subr.mxu0 0.0
  %2511 = vmatpush2.msra.mxu0 0.0
  %2512 = vmatprep.subr.mxu0 0.0
  %2513 = vmatpush2.msra.mxu0 0.0
  %2514 = vmatprep.subr.mxu0 0.0
  %2515 = vmatpush2.msra.mxu0 0.0
  %2516 = vmatprep.subr.mxu0 0.0
  %2517 = vmatpush2.msra.mxu0 0.0
  %2518 = vmatprep.subr.mxu0 0.0
  %2519 = vmatpush2.msra.mxu0 0.0
  %2520 = vmatprep.subr.mxu0 0.0
  %2521 = vmatpush2.msra.mxu0 0.0
  %2522 = vmatprep.subr.mxu0 0.0
  %2523 = vmatpush2.msra.mxu0 0.0
  %2524 = vmatprep.subr.mxu0 0.0
  %2525 = vmatpush2.msra.mxu0 0.0
  %2526 = vmatprep.subr.mxu0 0.0
  %2527 = vmatpush2.msra.mxu0 0.0
  %2528 = vmatprep.subr.mxu0 0.0
  %2529 = vmatpush2.msra.mxu0 0.0
  %2530 = vmatprep.subr.mxu0 0.0
  %2531 = vmatpush2.msra.mxu0 0.0
  %2532 = vmatprep.subr.mxu0 0.0
  %2533 = vmatpush2.msra.mxu0 0.0
  %2534 = vmatprep.mubr.f32.mxu0 0.0
  %2535 = vmatmul.mubr.f32.gmra.mxu0 %v2468
  %v2536 = vpop.f32.mrf.mxu0
  %v2537 = vadd.f32 %v2462, %v2536
  %v2538 = vpop.f32.mrf.mxu0
  %2539 = vdwg.mxu0
  %v2540 = vadd.f32 %v2537, %v614
  %v2541 = vxor.u32 %v2540, 2147483648
  %v2542 = vmul.f32 %v2541, 1.442695
  %v2543 = vpow.pop %v2542
  %v2544 = vadd.f32 %v2543, 1.0
  %v2545 = vrcp.pop %v2544
  %v2546 = vmul.f32 1.0, %v2545
  %v2547 = vtanh.pop %v2540
  %v2548 = vmul.f32 %v2546, %v2283
  %2550 = vrot.lane.b32.xlu0 %v2547, 64
  %v2551 = vpop.permute.xlu0 %2550
  %v2553 = vmul.f32 %v2546, %v2551
  %2555 = vrot.lane.b32.xlu0 %v2553, 32
  %v2556 = vpop.permute.xlu0 %2555
  %v2558 = vadd.f32 %v2548, %v2556
  %v2559 = vtanh.pop %v2558
  %2561 = vrot.lane.b32.xlu0 %v2559, 64
  %v2562 = vpop.permute.xlu0 %2561
  %v2564 = vmul.f32 %v2546, %v2562
  %2566 = vrot.lane.b32.xlu0 %v2564, 32
  %v2567 = vpop.permute.xlu0 %2566
  %s2569 = scalar_lea.vmem [#allocation3], 56
  %2570 = vst.msk [vmem:[%s2569] sm:$0xff] %vm366, %v2567
  %v2571 = vld [vmem:[#allocation3] sm:$0xff]
  %v2572 = vld [vmem:[#allocation3 + $0x8] sm:$0xff]
  %v2573 = vld [vmem:[#allocation3 + $0x10] sm:$0xff]
  %v2574 = vld [vmem:[#allocation3 + $0x18] sm:$0xff]
  %v2575 = vld [vmem:[#allocation3 + $0x20] sm:$0xff]
  %v2576 = vld [vmem:[#allocation3 + $0x28] sm:$0xff]
  %v2577 = vld [vmem:[#allocation3 + $0x30] sm:$0xff]
  %v2578 = vld [vmem:[#allocation3 + $0x38] sm:$0xff]
  %v2579 = vld [vmem:[%s10] sm:$0xff]
  %v2580 = vld [vmem:[%s10 + $0x8] sm:$0xff]
  %v2581 = vld [vmem:[%s10 + $0x10] sm:$0xff]
  %v2582 = vld [vmem:[%s10 + $0x18] sm:$0xff]
  %v2583 = vld [vmem:[%s11] sm:$0x1]
  %v2585 = vlaneseq
  %v2586 = vshrl.u32 %v2585, 7
  %v2587 = vsub.s32 0, %v2586
  %v2588 = vrot.slane %v2583, %v2587
  %v2591 = vsel %vm366, %v2571, 0
  %v2594 = vsel %vm366, %v2572, 0
  %v2597 = vsel %vm366, %v2573, 0
  %v2600 = vsel %vm366, %v2574, 0
  %v2603 = vsel %vm366, %v2575, 0
  %v2606 = vsel %vm366, %v2576, 0
  %v2609 = vsel %vm366, %v2577, 0
  %v2612 = vsel %vm366, %v2578, 0
  %2614 = vmatprep.subr.mxu0 0.0
  %2615 = vmatpush1.msra.mxu0 0.0
  %2616 = vmatprep.subr.mxu0 0.0
  %2617 = vmatpush1.msra.mxu0 0.0
  %2618 = vmatprep.subr.mxu0 0.0
  %2619 = vmatpush1.msra.mxu0 0.0
  %2620 = vmatprep.subr.mxu0 0.0
  %2621 = vmatpush1.msra.mxu0 0.0
  %2622 = vmatprep.subr.mxu0 0.0
  %2623 = vmatpush1.msra.mxu0 0.0
  %2624 = vmatprep.subr.mxu0 0.0
  %2625 = vmatpush1.msra.mxu0 0.0
  %2626 = vmatprep.subr.mxu0 0.0
  %2627 = vmatpush1.msra.mxu0 0.0
  %2628 = vmatprep.subr.mxu0 0.0
  %2629 = vmatpush1.msra.mxu0 0.0
  %2630 = vmatprep.subr.mxu0 0.0
  %2631 = vmatpush1.msra.mxu0 0.0
  %2632 = vmatprep.subr.mxu0 0.0
  %2633 = vmatpush1.msra.mxu0 0.0
  %2634 = vmatprep.subr.mxu0 0.0
  %2635 = vmatpush1.msra.mxu0 0.0
  %2636 = vmatprep.subr.mxu0 0.0
  %2637 = vmatpush1.msra.mxu0 0.0
  %2638 = vmatprep.subr.mxu0 0.0
  %2639 = vmatpush1.msra.mxu0 %v2582
  %2640 = vmatprep.subr.mxu0 0.0
  %2641 = vmatpush1.msra.mxu0 %v2581
  %2642 = vmatprep.subr.mxu0 0.0
  %2643 = vmatpush1.msra.mxu0 %v2580
  %2644 = vmatprep.subr.mxu0 0.0
  %2645 = vmatpush1.msra.mxu0 %v2579
  %2646 = vmatprep.subr.mxu0 0.0
  %2647 = vmatpush2.msra.mxu0 0.0
  %2648 = vmatprep.subr.mxu0 0.0
  %2649 = vmatpush2.msra.mxu0 0.0
  %2650 = vmatprep.subr.mxu0 0.0
  %2651 = vmatpush2.msra.mxu0 0.0
  %2652 = vmatprep.subr.mxu0 0.0
  %2653 = vmatpush2.msra.mxu0 0.0
  %2654 = vmatprep.subr.mxu0 0.0
  %2655 = vmatpush2.msra.mxu0 0.0
  %2656 = vmatprep.subr.mxu0 0.0
  %2657 = vmatpush2.msra.mxu0 0.0
  %2658 = vmatprep.subr.mxu0 0.0
  %2659 = vmatpush2.msra.mxu0 0.0
  %2660 = vmatprep.subr.mxu0 0.0
  %2661 = vmatpush2.msra.mxu0 0.0
  %2662 = vmatprep.subr.mxu0 0.0
  %2663 = vmatpush2.msra.mxu0 0.0
  %2664 = vmatprep.subr.mxu0 0.0
  %2665 = vmatpush2.msra.mxu0 0.0
  %2666 = vmatprep.subr.mxu0 0.0
  %2667 = vmatpush2.msra.mxu0 0.0
  %2668 = vmatprep.subr.mxu0 0.0
  %2669 = vmatpush2.msra.mxu0 0.0
  %2670 = vmatprep.subr.mxu0 0.0
  %2671 = vmatpush2.msra.mxu0 0.0
  %2672 = vmatprep.subr.mxu0 0.0
  %2673 = vmatpush2.msra.mxu0 0.0
  %2674 = vmatprep.subr.mxu0 0.0
  %2675 = vmatpush2.msra.mxu0 0.0
  %2676 = vmatprep.subr.mxu0 0.0
  %2677 = vmatpush2.msra.mxu0 0.0
  %2678 = vmatprep.mubr.f32.mxu0 0.0
  %2679 = vmatmul.mubr.f32.gmra.mxu0 %v2591
  %v2680 = vpop.f32.mrf.mxu0
  %v2681 = vadd.f32 %v2588, %v2680
  %v2682 = vpop.f32.mrf.mxu0
  %2683 = vmatprep.mubr.f32.mxu0 0.0
  %2684 = vmatmul.mubr.f32.gmra.mxu0 %v2594
  %v2685 = vpop.f32.mrf.mxu0
  %v2686 = vadd.f32 %v2588, %v2685
  %v2687 = vpop.f32.mrf.mxu0
  %2688 = vmatprep.mubr.f32.mxu0 0.0
  %2689 = vmatmul.mubr.f32.gmra.mxu0 %v2597
  %v2690 = vpop.f32.mrf.mxu0
  %v2691 = vadd.f32 %v2588, %v2690
  %v2692 = vpop.f32.mrf.mxu0
  %2693 = vmatprep.mubr.f32.mxu0 0.0
  %2694 = vmatmul.mubr.f32.gmra.mxu0 %v2600
  %v2695 = vpop.f32.mrf.mxu0
  %v2696 = vadd.f32 %v2588, %v2695
  %v2697 = vpop.f32.mrf.mxu0
  %2698 = vmatprep.mubr.f32.mxu0 0.0
  %2699 = vmatmul.mubr.f32.gmra.mxu0 %v2603
  %v2700 = vpop.f32.mrf.mxu0
  %v2701 = vadd.f32 %v2588, %v2700
  %v2702 = vpop.f32.mrf.mxu0
  %2703 = vmatprep.mubr.f32.mxu0 0.0
  %2704 = vmatmul.mubr.f32.gmra.mxu0 %v2606
  %v2705 = vpop.f32.mrf.mxu0
  %v2706 = vadd.f32 %v2588, %v2705
  %v2707 = vpop.f32.mrf.mxu0
  %2708 = vmatprep.mubr.f32.mxu0 0.0
  %2709 = vmatmul.mubr.f32.gmra.mxu0 %v2609
  %v2710 = vpop.f32.mrf.mxu0
  %v2711 = vadd.f32 %v2588, %v2710
  %v2712 = vpop.f32.mrf.mxu0
  %2713 = vmatprep.mubr.f32.mxu0 0.0
  %2714 = vmatmul.mubr.f32.gmra.mxu0 %v2612
  %v2715 = vpop.f32.mrf.mxu0
  %v2716 = vadd.f32 %v2588, %v2715
  %v2717 = vpop.f32.mrf.mxu0
  %2718 = vdwg.mxu0
  %v2719 = vld [vmem:[%s2] sm:$0xff]
  %v2720 = vld [vmem:[%s2 + $0x8] sm:$0xff]
  %v2721 = vld [vmem:[%s2 + $0x10] sm:$0xff]
  %v2722 = vld [vmem:[%s2 + $0x18] sm:$0xff]
  %v2723 = vld [vmem:[%s2 + $0x20] sm:$0xff]
  %v2724 = vld [vmem:[%s2 + $0x28] sm:$0xff]
  %v2725 = vld [vmem:[%s2 + $0x30] sm:$0xff]
  %v2726 = vld [vmem:[%s2 + $0x38] sm:$0xff]
  %2728 = vset.pattern.permute.xlu0 0
  %2729 = vperm.xlu0 %2728, %v2719
  %v2730 = vpop.permute.xlu0 %2729
  %2733 = vset.pattern.permute.xlu0 0
  %2734 = vperm.xlu0 %2733, %v2720
  %v2735 = vpop.permute.xlu0 %2734
  %2738 = vset.pattern.permute.xlu0 0
  %2739 = vperm.xlu0 %2738, %v2721
  %v2740 = vpop.permute.xlu0 %2739
  %2743 = vset.pattern.permute.xlu0 0
  %2744 = vperm.xlu0 %2743, %v2722
  %v2745 = vpop.permute.xlu0 %2744
  %2748 = vset.pattern.permute.xlu0 0
  %2749 = vperm.xlu0 %2748, %v2723
  %v2750 = vpop.permute.xlu0 %2749
  %2753 = vset.pattern.permute.xlu0 0
  %2754 = vperm.xlu0 %2753, %v2724
  %v2755 = vpop.permute.xlu0 %2754
  %2758 = vset.pattern.permute.xlu0 0
  %2759 = vperm.xlu0 %2758, %v2725
  %v2760 = vpop.permute.xlu0 %2759
  %2763 = vset.pattern.permute.xlu0 0
  %2764 = vperm.xlu0 %2763, %v2726
  %v2765 = vpop.permute.xlu0 %2764
  %v2767 = vmul.f32 %v2681, %v2730
  %v2768 = vmul.f32 %v2686, %v2735
  %v2769 = vmul.f32 %v2691, %v2740
  %v2770 = vmul.f32 %v2696, %v2745
  %v2771 = vmul.f32 %v2701, %v2750
  %v2772 = vmul.f32 %v2706, %v2755
  %v2773 = vmul.f32 %v2711, %v2760
  %v2774 = vmul.f32 %v2716, %v2765
  %2775 = vst [vmem:[%s12] sm:$0xff] %v2767
  %2776 = vst [vmem:[%s12 + $0x8] sm:$0xff] %v2768
  %2777 = vst [vmem:[%s12 + $0x10] sm:$0xff] %v2769
  %2778 = vst [vmem:[%s12 + $0x18] sm:$0xff] %v2770
  %2779 = vst [vmem:[%s12 + $0x20] sm:$0xff] %v2771
  %2780 = vst [vmem:[%s12 + $0x28] sm:$0xff] %v2772
  %2781 = vst [vmem:[%s12 + $0x30] sm:$0xff] %v2773
  %2782 = vst [vmem:[%s12 + $0x38] sm:$0xff] %v2774
  // Predicated region
  $region50: #{encoding_forward.1} parent=0 // pred_check
    _
  $region51: #{encoding_forward.1} parent=0 // pred_check_branch
    %2784 = sbr.rel (0) target = $region53
  $region52: #{encoding_forward.1} parent=0 // pred_region
    _
  $region53: #{encoding_forward.1} parent=0 // pred_fallthru
    _
  // Predicated region
  $region54: #{encoding_forward.1} parent=0 // pred_check
    _
  $region55: #{encoding_forward.1} parent=0 // pred_check_branch
    %2786 = sbr.rel (0) target = $region57
  $region56: #{encoding_forward.1} parent=0 // pred_region
    _
  $region57: #{encoding_forward.1} parent=0 // pred_fallthru
    _

</llo_original>
